<compile_context>
chip_gen: v5e
topology: v5e:2x2
jax: 0.10.0
libtpu: 0.0.40
codegen_flags: <defaults>
</compile_context>

<pallas_src>
import functools
import math

import jax
import jax.numpy as jnp
from jax.experimental import pallas as pl
from jax.experimental.pallas import tpu as pltpu


# Logical hidden widths (from the PyTorch module) and their lane-aligned pads.
H1, H2, H3 = 400, 300, 300
H1_P, H2_P, H3_P = 512, 384, 384          # multiples of 128


def _round_up(x, m):
    return ((x + m - 1) // m) * m


# ---------------------------------------------------------------------------
# Kernel
# ---------------------------------------------------------------------------
def actor_kernel(x_ref, w1_ref, w234_ref, b_ref, out_ref, *,
                 h1_p, h2_p, h3_p, a_p, max_action):
    """Fused 4-layer MLP forward on one (TILE_B, S_P) batch tile.

    w1_ref   : bf16 (s_p, h1_p) slab holding W1 (one DMA, constant index_map).
    w234_ref : bf16 (h1_p+h2_p+h3_p, max(h2_p,h3_p,a_p)) slab holding W2,W3,W4
               row-stacked (one DMA, constant index_map).  All slice offsets
               are static and (8,128)/(16,128)-aligned -> tile-aligned views.
    b_ref    : f32 (32, cols) slab; bias for layer L lives at rows [8L, 8L+8)
               (replicated across the 8 sublanes), read at sublane offset 0.
    Matmuls: bf16 x bf16 -> f32 accumulation on the MXU.
    Elementwise (bias add, ReLU, sigmoid) in f32.
    """
    x = x_ref[...]                                            # (TILE_B, S_P) bf16

    # Layer 1: Linear(state_dim, 400) + ReLU      (dropout d1 = identity)
    h = jnp.dot(x, w1_ref[...], preferred_element_type=jnp.float32)
    h = jnp.maximum(h + b_ref[0:1, :h1_p], 0.0)

    r2, r3, r4 = 0, h1_p, h1_p + h2_p

    # Layer 2: Linear(400, 300) + ReLU            (dropout d2 = identity)
    h = jnp.dot(h.astype(jnp.bfloat16), w234_ref[r2:r3, :h2_p],
                preferred_element_type=jnp.float32)
    h = jnp.maximum(h + b_ref[8:9, :h2_p], 0.0)

    # Layer 3: Linear(300, 300) + ReLU            (dropout d3 = identity)
    h = jnp.dot(h.astype(jnp.bfloat16), w234_ref[r3:r4, :h3_p],
                preferred_element_type=jnp.float32)
    h = jnp.maximum(h + b_ref[16:17, :h3_p], 0.0)

    # Layer 4: Linear(300, action_dim) -> max_action * (sigmoid(.) - 0.5)
    z = jnp.dot(h.astype(jnp.bfloat16), w234_ref[r4:r4 + h3_p, :a_p],
                preferred_element_type=jnp.float32)
    z = z + b_ref[24:25, :a_p]
    out_ref[...] = max_action * (jax.nn.sigmoid(z) - 0.5)


# ---------------------------------------------------------------------------
# Parameter packing (done once, outside the per-step call path)
# ---------------------------------------------------------------------------
def pack_actor_params(params, state_dim, action_dim):
    """Pack the 8 Linear tensors into two bf16 weight slabs + one f32 bias slab.

    Splitting W1 (512-wide) from W2/W3/W4 (384-wide) removes the ~36% of dead
    zero lanes the previous single 512-wide slab carried.
    """
    (w1, b1, w2, b2, w3, b3, w4, b4) = params
    s_p = _round_up(max(state_dim, 1), 128)
    a_p = _round_up(max(action_dim, 1), 128)

    # Slab A: W1 only, (s_p, 512).
    w1_slab = jnp.zeros((s_p, H1_P), jnp.float32)
    w1_slab = w1_slab.at[:w1.shape[0], :w1.shape[1]].set(w1)
    w1_slab = w1_slab.astype(jnp.bfloat16)          # cast weights once, here

    # Slab B: W2, W3, W4 row-stacked, width max(h2_p, h3_p, a_p) = 384 typ.
    cols234 = max(H2_P, H3_P, a_p)
    rows234 = H1_P + H2_P + H3_P
    w234_slab = jnp.zeros((rows234, cols234), jnp.float32)
    for w, r0 in zip((w2, w3, w4), (0, H1_P, H1_P + H2_P)):
        w234_slab = w234_slab.at[r0:r0 + w.shape[0], :w.shape[1]].set(w)
    w234_slab = w234_slab.astype(jnp.bfloat16)

    # Bias slab: 4 groups of 8 sublanes, each bias replicated across its group
    # so every layer's bias is read from sublane 0 of a tile-aligned block.
    cols_b = max(H1_P, cols234)
    b_slab = jnp.zeros((32, cols_b), jnp.float32)
    for i, b in enumerate((b1, b2, b3, b4)):
        b_slab = b_slab.at[8 * i:8 * i + 8, :b.shape[0]].set(
            jnp.broadcast_to(b, (8, b.shape[0])))

    dims = dict(s_p=s_p, h1_p=H1_P, h2_p=H2_P, h3_p=H3_P, a_p=a_p)
    return w1_slab, w234_slab, b_slab, dims


# ---------------------------------------------------------------------------
# Wrapper
# ---------------------------------------------------------------------------
def actor_forward(x, w1_slab, w234_slab, b_slab, dims, max_action, action_dim):
    batch, state_dim = x.shape
    s_p, a_p = dims["s_p"], dims["a_p"]

    # Adaptive batch tiling:
    #   * small batches (<=256 padded rows): one grid step, tile_b = whole batch
    #     (no per-step overhead, M>=128 fills the MXU on all generations).
    #   * larger batches: 256-row tiles; shard across v7x TensorCores only once
    #     the batch is big enough that compute (not the weight DMA) dominates.
    b_pad = _round_up(max(batch, 1), 8)
    if b_pad <= 256:
        tile_b = b_pad
    else:
        tile_b = 256
        b_pad = _round_up(batch, tile_b)
    grid = (b_pad // tile_b,)
    semantics = ("parallel",) if b_pad > 2048 else ("arbitrary",)

    # Fused pad + cast of x (no f32 intermediate in the latency-bound path).
    x_p = jnp.pad(x.astype(jnp.bfloat16),
                  ((0, b_pad - batch), (0, s_p - state_dim)))

    flops = 2 * b_pad * (s_p * dims["h1_p"] + dims["h1_p"] * dims["h2_p"]
                         + dims["h2_p"] * dims["h3_p"] + dims["h3_p"] * a_p)
    bytes_accessed = (x_p.size * 2 + w1_slab.size * 2 + w234_slab.size * 2
                      + b_slab.size * 4 + b_pad * a_p * 4)

    # Constant-index slabs: single DMA, reused across grid steps; Buffered(1)
    # avoids allocating a pointless second VMEM copy of ~1 MiB of weights.
    def const_spec(shape):
        return pl.BlockSpec(tuple(shape), lambda i: (0, 0),
                            pipeline_mode=pl.Buffered(1))

    out = pl.pallas_call(
        functools.partial(actor_kernel, max_action=float(max_action),
                          h1_p=dims["h1_p"], h2_p=dims["h2_p"],
                          h3_p=dims["h3_p"], a_p=a_p),
        out_shape=jax.ShapeDtypeStruct((b_pad, a_p), jnp.float32),
        grid=grid,
        in_specs=[
            pl.BlockSpec((tile_b, s_p), lambda i: (i, 0)),   # batch tile
            const_spec(w1_slab.shape),                       # W1 slab
            const_spec(w234_slab.shape),                     # W2/W3/W4 slab
            const_spec(b_slab.shape),                        # bias slab
        ],
        out_specs=pl.BlockSpec((tile_b, a_p), lambda i: (i, 0)),
        compiler_params=pltpu.CompilerParams(dimension_semantics=semantics),
        cost_estimate=pl.CostEstimate(
            flops=flops,
            transcendentals=b_pad * a_p,
            bytes_accessed=bytes_accessed),
    )(x_p, w1_slab, w234_slab, b_slab)

    return out[:batch, :action_dim]


# ---------------------------------------------------------------------------
# Parameter init (PyTorch nn.Linear default) + pure-JAX reference
# ---------------------------------------------------------------------------
def init_linear_params(key, fan_in, fan_out):
    """U(-1/sqrt(fan_in), 1/sqrt(fan_in)) for weight and bias.
    Weight returned as (in_features, out_features); bias as (out_features,)."""
    kw, kb = jax.random.split(key)
    bound = 1.0 / math.sqrt(fan_in)
    w = jax.random.uniform(kw, (fan_in, fan_out), jnp.float32, -bound, bound)
    b = jax.random.uniform(kb, (fan_out,), jnp.float32, -bound, bound)
    return w, b


def make_actor_params(key, state_dim, action_dim):
    k1, k2, k3, k4 = jax.random.split(key, 4)
    w1, b1 = init_linear_params(k1, state_dim, H1)
    w2, b2 = init_linear_params(k2, H1, H2)
    w3, b3 = init_linear_params(k3, H2, H3)
    w4, b4 = init_linear_params(k4, H3, action_dim)
    return (w1, b1, w2, b2, w3, b3, w4, b4)


def actor_forward_ref(x, params, max_action, *, cast_bf16=True):
    """Pure-JAX reference (optionally with the same bf16 matmul casts)."""
    (w1, b1, w2, b2, w3, b3, w4, b4) = params

    def mm(a, w):
        if cast_bf16:
            a = a.astype(jnp.bfloat16)
            w = w.astype(jnp.bfloat16)
        return jnp.dot(a, w, preferred_element_type=jnp.float32)

    h = jnp.maximum(mm(x, w1) + b1, 0.0)
    h = jnp.maximum(mm(h, w2) + b2, 0.0)
    h = jnp.maximum(mm(h, w3) + b3, 0.0)
    return max_action * (jax.nn.sigmoid(mm(h, w4) + b4) - 0.5)


if __name__ == "__main__":
    state_dim = 24
    action_dim = 6
    max_action = 1.0

    root = jax.random.PRNGKey(0)
    k_params, k_x1, k_x2 = jax.random.split(root, 3)

    params = make_actor_params(k_params, state_dim, action_dim)
    w1_slab, w234_slab, b_slab, dims = pack_actor_params(params, state_dim, action_dim)

    # --- Case 1: typical TD3-scale batch -> single grid step (tile_b = batch).
    batch = 128
    x = jax.random.normal(k_x1, (batch, state_dim), jnp.float32)
    out = actor_forward(x, w1_slab, w234_slab, b_slab, dims, max_action, action_dim)
    out = jax.block_until_ready(out)

    ref_bf16 = actor_forward_ref(x, params, max_action, cast_bf16=True)
    ref_f32 = actor_forward_ref(x, params, max_action, cast_bf16=False)
    assert out.shape == (batch, action_dim)
    assert jnp.allclose(out, ref_bf16, atol=2e-3, rtol=2e-3), "mismatch vs bf16 reference"
    assert jnp.allclose(out, ref_f32, atol=5e-2, rtol=5e-2), "mismatch vs f32 reference"

    # --- Case 2: larger, ragged batch -> 256-row tiles, multi-step grid,
    #             constant-index slabs reused across steps.
    batch2 = 300
    x2 = jax.random.normal(k_x2, (batch2, state_dim), jnp.float32)
    out2 = actor_forward(x2, w1_slab, w234_slab, b_slab, dims, max_action, action_dim)
    out2 = jax.block_until_ready(out2)

    ref2 = actor_forward_ref(x2, params, max_action, cast_bf16=True)
    assert out2.shape == (batch2, action_dim)
    assert jnp.allclose(out2, ref2, atol=2e-3, rtol=2e-3), "mismatch vs bf16 reference (batch2)"

    print("KERNEL_OK")
</pallas_src>

<mosaic_0001>
module attributes {stable_mosaic.version = 11 : i64} {
  func.func @actor_kernel(%arg0: i32, %arg1: memref<128x128xbf16, #tpu.memory_space<vmem>>, %arg2: memref<128x512xbf16, #tpu.memory_space<vmem>>, %arg3: memref<1280x384xbf16, #tpu.memory_space<vmem>>, %arg4: memref<32x512xf32, #tpu.memory_space<vmem>>, %arg5: memref<128x128xf32, #tpu.memory_space<vmem>>) attributes {dimension_semantics = [#tpu.dimension_semantics<arbitrary>], iteration_bounds = array<i64: 1>, scalar_prefetch = 0 : i64, scratch_operands = 0 : i64, tpu.core_type = #tpu.core_type<tc>, window_params = [{transform_indices = @transform_0, window_bounds = array<i64: 128, 128>}, {pipeline_mode = #tpu.pipeline_mode<synchronous>, transform_indices = @transform_1, window_bounds = array<i64: 128, 512>}, {pipeline_mode = #tpu.pipeline_mode<synchronous>, transform_indices = @transform_2, window_bounds = array<i64: 1280, 384>}, {pipeline_mode = #tpu.pipeline_mode<synchronous>, transform_indices = @transform_3, window_bounds = array<i64: 32, 512>}, {transform_indices = @transform_4, window_bounds = array<i64: 128, 128>}]} {
    %c0 = arith.constant 0 : index
    %c0_0 = arith.constant 0 : index
    %0 = vector.load %arg1[%c0, %c0_0] : memref<128x128xbf16, #tpu.memory_space<vmem>>, vector<128x128xbf16>
    %c0_1 = arith.constant 0 : index
    %c0_2 = arith.constant 0 : index
    %1 = vector.load %arg2[%c0_1, %c0_2] : memref<128x512xbf16, #tpu.memory_space<vmem>>, vector<128x512xbf16>
    %cst = arith.constant dense<0.000000e+00> : vector<128x512xf32>
    %2 = tpu.matmul %0, %1, %cst {dimension_numbers = #tpu.dot_dimension_numbers<[1], [0], [0], [1], [0, 0, 1, 1], [], []>} : vector<128x128xbf16>, vector<128x512xbf16>, vector<128x512xf32> -> vector<128x512xf32>
    %c0_3 = arith.constant 0 : index
    %c0_4 = arith.constant 0 : index
    %3 = vector.load %arg4[%c0_3, %c0_4] : memref<32x512xf32, #tpu.memory_space<vmem>>, vector<1x512xf32>
    %4 = vector.broadcast %3 : vector<1x512xf32> to vector<128x512xf32>
    %5 = arith.addf %2, %4 : vector<128x512xf32>
    %cst_5 = arith.constant 0.000000e+00 : f32
    %6 = vector.broadcast %cst_5 : f32 to vector<128x512xf32>
    %7 = arith.maximumf %5, %6 : vector<128x512xf32>
    %8 = arith.truncf %7 : vector<128x512xf32> to vector<128x512xbf16>
    %c0_6 = arith.constant 0 : index
    %c0_7 = arith.constant 0 : index
    %9 = vector.load %arg3[%c0_6, %c0_7] : memref<1280x384xbf16, #tpu.memory_space<vmem>>, vector<512x384xbf16>
    %cst_8 = arith.constant dense<0.000000e+00> : vector<128x384xf32>
    %10 = tpu.matmul %8, %9, %cst_8 {dimension_numbers = #tpu.dot_dimension_numbers<[1], [0], [0], [1], [0, 0, 1, 1], [], []>} : vector<128x512xbf16>, vector<512x384xbf16>, vector<128x384xf32> -> vector<128x384xf32>
    %c8 = arith.constant 8 : index
    %c0_9 = arith.constant 0 : index
    %11 = vector.load %arg4[%c8, %c0_9] : memref<32x512xf32, #tpu.memory_space<vmem>>, vector<1x384xf32>
    %12 = vector.broadcast %11 : vector<1x384xf32> to vector<128x384xf32>
    %13 = arith.addf %10, %12 : vector<128x384xf32>
    %cst_10 = arith.constant 0.000000e+00 : f32
    %14 = vector.broadcast %cst_10 : f32 to vector<128x384xf32>
    %15 = arith.maximumf %13, %14 : vector<128x384xf32>
    %16 = arith.truncf %15 : vector<128x384xf32> to vector<128x384xbf16>
    %c512 = arith.constant 512 : index
    %c0_11 = arith.constant 0 : index
    %17 = vector.load %arg3[%c512, %c0_11] : memref<1280x384xbf16, #tpu.memory_space<vmem>>, vector<384x384xbf16>
    %cst_12 = arith.constant dense<0.000000e+00> : vector<128x384xf32>
    %18 = tpu.matmul %16, %17, %cst_12 {dimension_numbers = #tpu.dot_dimension_numbers<[1], [0], [0], [1], [0, 0, 1, 1], [], []>} : vector<128x384xbf16>, vector<384x384xbf16>, vector<128x384xf32> -> vector<128x384xf32>
    %c16 = arith.constant 16 : index
    %c0_13 = arith.constant 0 : index
    %19 = vector.load %arg4[%c16, %c0_13] : memref<32x512xf32, #tpu.memory_space<vmem>>, vector<1x384xf32>
    %20 = vector.broadcast %19 : vector<1x384xf32> to vector<128x384xf32>
    %21 = arith.addf %18, %20 : vector<128x384xf32>
    %cst_14 = arith.constant 0.000000e+00 : f32
    %22 = vector.broadcast %cst_14 : f32 to vector<128x384xf32>
    %23 = arith.maximumf %21, %22 : vector<128x384xf32>
    %24 = arith.truncf %23 : vector<128x384xf32> to vector<128x384xbf16>
    %c896 = arith.constant 896 : index
    %c0_15 = arith.constant 0 : index
    %25 = vector.load %arg3[%c896, %c0_15] : memref<1280x384xbf16, #tpu.memory_space<vmem>>, vector<384x128xbf16>
    %cst_16 = arith.constant dense<0.000000e+00> : vector<128x128xf32>
    %26 = tpu.matmul %24, %25, %cst_16 {dimension_numbers = #tpu.dot_dimension_numbers<[1], [0], [0], [1], [0, 0, 1, 1], [], []>} : vector<128x384xbf16>, vector<384x128xbf16>, vector<128x128xf32> -> vector<128x128xf32>
    %c24 = arith.constant 24 : index
    %c0_17 = arith.constant 0 : index
    %27 = vector.load %arg4[%c24, %c0_17] : memref<32x512xf32, #tpu.memory_space<vmem>>, vector<1x128xf32>
    %28 = vector.broadcast %27 : vector<1x128xf32> to vector<128x128xf32>
    %29 = arith.addf %26, %28 : vector<128x128xf32>
    %30 = arith.negf %29 : vector<128x128xf32>
    %31 = math.exp %30 : vector<128x128xf32>
    %cst_18 = arith.constant 1.000000e+00 : f32
    %32 = vector.broadcast %cst_18 : f32 to vector<128x128xf32>
    %33 = arith.addf %32, %31 : vector<128x128xf32>
    %34 = arith.divf %32, %33 : vector<128x128xf32>
    %cst_19 = arith.constant 5.000000e-01 : f32
    %35 = vector.broadcast %cst_19 : f32 to vector<128x128xf32>
    %36 = arith.subf %34, %35 : vector<128x128xf32>
    %cst_20 = arith.constant 1.000000e+00 : f32
    %37 = vector.broadcast %cst_20 : f32 to vector<128x128xf32>
    %38 = arith.mulf %37, %36 : vector<128x128xf32>
    %c0_21 = arith.constant 0 : index
    %c0_22 = arith.constant 0 : index
    %39 = vector.load %arg5[%c0_21, %c0_22] : memref<128x128xf32, #tpu.memory_space<vmem>>, vector<128x128xf32>
    tpu.vector_store %arg5[%c0_21, %c0_22], %38 {strides = array<i32>} : memref<128x128xf32, #tpu.memory_space<vmem>>, vector<128x128xf32>,
    return
  }
  func.func @transform_0(%arg0: i32) -> (i32, i32) {
    %c0_i32 = arith.constant 0 : i32
    %c0_i32_0 = arith.constant 0 : i32
    return %arg0, %c0_i32 : i32, i32
  }
  func.func @transform_1(%arg0: i32) -> (i32, i32) {
    %c0_i32 = arith.constant 0 : i32
    %c0_i32_0 = arith.constant 0 : i32
    %c0_i32_1 = arith.constant 0 : i32
    return %c0_i32, %c0_i32_0 : i32, i32
  }
  func.func @transform_2(%arg0: i32) -> (i32, i32) {
    %c0_i32 = arith.constant 0 : i32
    %c0_i32_0 = arith.constant 0 : i32
    %c0_i32_1 = arith.constant 0 : i32
    return %c0_i32, %c0_i32_0 : i32, i32
  }
  func.func @transform_3(%arg0: i32) -> (i32, i32) {
    %c0_i32 = arith.constant 0 : i32
    %c0_i32_0 = arith.constant 0 : i32
    %c0_i32_1 = arith.constant 0 : i32
    return %c0_i32, %c0_i32_0 : i32, i32
  }
  func.func @transform_4(%arg0: i32) -> (i32, i32) {
    %c0_i32 = arith.constant 0 : i32
    %c0_i32_0 = arith.constant 0 : i32
    return %arg0, %c0_i32 : i32, i32
  }
}

</mosaic_0001>

<llo_original>
// kernel: tpu_custom_call.1
$region0: #{tpu_custom_call.1}
  #allocation0 [shape = 'u32[]', space=smem, size = 0x4, offset = 0x4, fixed_abs, tag = 'smem constant byte address 0x4 - core index']
  #allocation1 [shape = 'u32[72,128]{1,0:T(1,128)}', space=vmem, size = 0x9000, scoped, tag = 'internal scratch']
  %s0 = inlined_call_operand.hbm [shape: bf16[128,128], index: 0, kind: input, shape index: {}]
  %s1 = inlined_call_operand.hbm [shape: bf16[128,512], index: 1, kind: input, shape index: {}]
  %s2 = inlined_call_operand.hbm [shape: bf16[1280,384], index: 2, kind: input, shape index: {}]
  %s3 = inlined_call_operand.hbm [shape: f32[32,512], index: 3, kind: input, shape index: {}]
  %s4 = inlined_call_operand.hbm [shape: f32[128,128], index: 4, kind: output, shape index: {}]
  %s5 = sld [smem:[#allocation0]]
  $region42: #{tpu_custom_call.1} parent=0
    _
  %s7 = ssub.s32 1, %s5
  %s8 = scalar_select 0, %s7, %s5
  $region1: #{tpu_custom_call.1} parent=0
    #allocation2 [shape = 'u8[32768]{0}', space=vmem, size = 0x8000, scoped, tag = 'input window, operand 0, single buffered']
    #allocation3 [shape = 's32[1]{0}', space=sflag, size = 0x4, scoped, tag = 'scoped memory for tpu_custom_call.1']
    #allocation4 [shape = 's32[1]{0}', space=sflag, size = 0x4, scoped, tag = 'scoped memory for tpu_custom_call.1']
    #allocation5 [shape = 'u8[131072]{0}', space=vmem, size = 0x20000, scoped, tag = 'input window, operand 1, single buffered']
    #allocation6 [shape = 's32[1]{0}', space=sflag, size = 0x4, scoped, tag = 'scoped memory for tpu_custom_call.1']
    #allocation7 [shape = 'u8[983040]{0}', space=vmem, size = 0xf0000, scoped, tag = 'input window, operand 2, single buffered']
    #allocation8 [shape = 'u8[65536]{0}', space=vmem, size = 0x10000, scoped, tag = 'input window, operand 3, single buffered']
    #allocation9 [shape = 's32[1]{0}', space=sflag, size = 0x4, scoped, tag = 'scoped memory for tpu_custom_call.1']
    #allocation10 [shape = 'u8[65536]{0}', space=vmem, size = 0x10000, scoped, tag = 'output window, operand 0, single buffered']
    %9 = vsyncpa [#allocation3], 0
    %10 = vsyncpa [#allocation6], 0
    %11 = vsyncpa [#allocation9], 0
    %12 = vsyncpa [#allocation4], 0
    // Predicated region
    $region2: #{tpu_custom_call.1} parent=1 // pred_check
      _
    $region3: #{tpu_custom_call.1} parent=1 // pred_check_branch
      %14 = sbr.rel (0) target = $region5
    $region4: #{tpu_custom_call.1} parent=1 // pred_region
      %16 = vsyncadd [#allocation3], 0
      %s17 = sshll.u32 %s0, 4
      %s18 = int_to_ptr.hbm [resolvable:$true] %s17
      %s19 = sshll.u32 [#allocation2], 4
      %s20 = int_to_ptr.vmem [resolvable:$true] %s19
      %25 = dma.hbm_to_vmem [thread:$0]  %s18, 1024, %s20, [#allocation3], 64, 64, 4
    $region5: #{tpu_custom_call.1} parent=1 // pred_fallthru
      _
    // Predicated region
    $region6: #{tpu_custom_call.1} parent=1 // pred_check
      _
    $region7: #{tpu_custom_call.1} parent=1 // pred_check_branch
      %27 = sbr.rel (0) target = $region9
    $region8: #{tpu_custom_call.1} parent=1 // pred_region
      %29 = vsyncadd [#allocation6], 0
      %s30 = sshll.u32 %s1, 4
      %s31 = int_to_ptr.hbm [resolvable:$true] %s30
      %s32 = sshll.u32 [#allocation5], 4
      %s33 = int_to_ptr.vmem [resolvable:$true] %s32
      %38 = dma.hbm_to_vmem [thread:$0]  %s31, 4096, %s33, [#allocation6], 256, 256, 16
    $region9: #{tpu_custom_call.1} parent=1 // pred_fallthru
      _
    // Predicated region
    $region10: #{tpu_custom_call.1} parent=1 // pred_check
      _
    $region11: #{tpu_custom_call.1} parent=1 // pred_check_branch
      %40 = sbr.rel (0) target = $region13
    $region12: #{tpu_custom_call.1} parent=1 // pred_region
      %42 = vsyncadd [#allocation6], 0
      %s43 = sshll.u32 %s2, 4
      %s44 = int_to_ptr.hbm [resolvable:$true] %s43
      %s45 = sshll.u32 [#allocation7], 4
      %s46 = int_to_ptr.vmem [resolvable:$true] %s45
      %51 = dma.hbm_to_vmem [thread:$0]  %s44, 30720, %s46, [#allocation6], 192, 192, 12
    $region13: #{tpu_custom_call.1} parent=1 // pred_fallthru
      _
    // Predicated region
    $region14: #{tpu_custom_call.1} parent=1 // pred_check
      _
    $region15: #{tpu_custom_call.1} parent=1 // pred_check_branch
      %53 = sbr.rel (0) target = $region17
    $region16: #{tpu_custom_call.1} parent=1 // pred_region
      %55 = vsyncadd [#allocation9], 0
      %s56 = sshll.u32 %s3, 4
      %s57 = int_to_ptr.hbm [resolvable:$true] %s56
      %s58 = sshll.u32 [#allocation8], 4
      %s59 = int_to_ptr.vmem [resolvable:$true] %s58
      %64 = dma.hbm_to_vmem [thread:$0]  %s57, 2048, %s59, [#allocation9], 512, 512, 32
    $region17: #{tpu_custom_call.1} parent=1 // pred_fallthru
      _
    // Predicated region
    $region18: #{tpu_custom_call.1} parent=1 // pred_check
      _
    $region19: #{tpu_custom_call.1} parent=1 // pred_check_branch
      %66 = sbr.rel (0) target = $region21
    $region20: #{tpu_custom_call.1} parent=1 // pred_region
      %68 = dma.done [#allocation3], 1024
    $region21: #{tpu_custom_call.1} parent=1 // pred_fallthru
      _
    // Predicated region
    $region22: #{tpu_custom_call.1} parent=1 // pred_check
      _
    $region23: #{tpu_custom_call.1} parent=1 // pred_check_branch
      %70 = sbr.rel (0) target = $region25
    $region24: #{tpu_custom_call.1} parent=1 // pred_region
      %72 = dma.done [#allocation6], 4096
    $region25: #{tpu_custom_call.1} parent=1 // pred_fallthru
      _
    // Predicated region
    $region26: #{tpu_custom_call.1} parent=1 // pred_check
      _
    $region27: #{tpu_custom_call.1} parent=1 // pred_check_branch
      %74 = sbr.rel (0) target = $region29
    $region28: #{tpu_custom_call.1} parent=1 // pred_region
      %76 = dma.done [#allocation6], 30720
    $region29: #{tpu_custom_call.1} parent=1 // pred_fallthru
      _
    // Predicated region
    $region30: #{tpu_custom_call.1} parent=1 // pred_check
      _
    $region31: #{tpu_custom_call.1} parent=1 // pred_check_branch
      %78 = sbr.rel (0) target = $region33
    $region32: #{tpu_custom_call.1} parent=1 // pred_region
      %80 = dma.done [#allocation9], 2048
    $region33: #{tpu_custom_call.1} parent=1 // pred_fallthru
      _
    %v81 = vld [vmem:[#allocation2] sm:$0xf]
    %v82 = vld [vmem:[#allocation2 + $0x4] sm:$0xf]
    %v83 = vld [vmem:[#allocation2 + $0x8] sm:$0xf]
    %v84 = vld [vmem:[#allocation2 + $0xc] sm:$0xf]
    %v85 = vld [vmem:[#allocation2 + $0x10] sm:$0xf]
    %v86 = vld [vmem:[#allocation2 + $0x14] sm:$0xf]
    %v87 = vld [vmem:[#allocation2 + $0x18] sm:$0xf]
    %v88 = vld [vmem:[#allocation2 + $0x1c] sm:$0xf]
    %v89 = vld [vmem:[#allocation2 + $0x20] sm:$0xf]
    %v90 = vld [vmem:[#allocation2 + $0x24] sm:$0xf]
    %v91 = vld [vmem:[#allocation2 + $0x28] sm:$0xf]
    %v92 = vld [vmem:[#allocation2 + $0x2c] sm:$0xf]
    %v93 = vld [vmem:[#allocation2 + $0x30] sm:$0xf]
    %v94 = vld [vmem:[#allocation2 + $0x34] sm:$0xf]
    %v95 = vld [vmem:[#allocation2 + $0x38] sm:$0xf]
    %v96 = vld [vmem:[#allocation2 + $0x3c] sm:$0xf]
    %v97 = vld [vmem:[#allocation5] sm:$0xff]
    %v98 = vld [vmem:[#allocation5 + $0x8] sm:$0xff]
    %v99 = vld [vmem:[#allocation5 + $0x10] sm:$0xff]
    %v100 = vld [vmem:[#allocation5 + $0x18] sm:$0xff]
    %v101 = vld [vmem:[#allocation5 + $0x20] sm:$0xff]
    %v102 = vld [vmem:[#allocation5 + $0x28] sm:$0xff]
    %v103 = vld [vmem:[#allocation5 + $0x30] sm:$0xff]
    %v104 = vld [vmem:[#allocation5 + $0x38] sm:$0xff]
    %v105 = vld [vmem:[#allocation5 + $0x40] sm:$0xff]
    %v106 = vld [vmem:[#allocation5 + $0x48] sm:$0xff]
    %v107 = vld [vmem:[#allocation5 + $0x50] sm:$0xff]
    %v108 = vld [vmem:[#allocation5 + $0x58] sm:$0xff]
    %v109 = vld [vmem:[#allocation5 + $0x60] sm:$0xff]
    %v110 = vld [vmem:[#allocation5 + $0x68] sm:$0xff]
    %v111 = vld [vmem:[#allocation5 + $0x70] sm:$0xff]
    %v112 = vld [vmem:[#allocation5 + $0x78] sm:$0xff]
    %v113 = vld [vmem:[#allocation5 + $0x80] sm:$0xff]
    %v114 = vld [vmem:[#allocation5 + $0x88] sm:$0xff]
    %v115 = vld [vmem:[#allocation5 + $0x90] sm:$0xff]
    %v116 = vld [vmem:[#allocation5 + $0x98] sm:$0xff]
    %v117 = vld [vmem:[#allocation5 + $0xa0] sm:$0xff]
    %v118 = vld [vmem:[#allocation5 + $0xa8] sm:$0xff]
    %v119 = vld [vmem:[#allocation5 + $0xb0] sm:$0xff]
    %v120 = vld [vmem:[#allocation5 + $0xb8] sm:$0xff]
    %v121 = vld [vmem:[#allocation5 + $0xc0] sm:$0xff]
    %v122 = vld [vmem:[#allocation5 + $0xc8] sm:$0xff]
    %v123 = vld [vmem:[#allocation5 + $0xd0] sm:$0xff]
    %v124 = vld [vmem:[#allocation5 + $0xd8] sm:$0xff]
    %v125 = vld [vmem:[#allocation5 + $0xe0] sm:$0xff]
    %v126 = vld [vmem:[#allocation5 + $0xe8] sm:$0xff]
    %v127 = vld [vmem:[#allocation5 + $0xf0] sm:$0xff]
    %v128 = vld [vmem:[#allocation5 + $0xf8] sm:$0xff]
    %v129 = vld [vmem:[#allocation8] ss:$8 sm:$0xf]
    %v131 = vperm.slane %v129, 0
    %v132 = vperm.slane %v129, 1
    %v133 = vperm.slane %v129, 2
    %v134 = vperm.slane %v129, 3
    %v155 = vunpack.c.l.b16 %v81
    %v156 = vunpack.c.l.b16 %v82
    %v157 = vunpack.c.l.b16 %v83
    %v158 = vunpack.c.l.b16 %v84
    %v159 = vunpack.c.l.b16 %v85
    %v160 = vunpack.c.l.b16 %v86
    %v161 = vunpack.c.l.b16 %v87
    %v162 = vunpack.c.l.b16 %v88
    %v163 = vunpack.c.l.b16 %v89
    %v164 = vunpack.c.l.b16 %v90
    %v165 = vunpack.c.l.b16 %v91
    %v166 = vunpack.c.l.b16 %v92
    %v167 = vunpack.c.l.b16 %v93
    %v168 = vunpack.c.l.b16 %v94
    %v169 = vunpack.c.l.b16 %v95
    %v170 = vunpack.c.l.b16 %v96
    %v171 = vpack.c.b16 %v156, %v155
    %v172 = vpack.c.b16 %v158, %v157
    %v173 = vpack.c.b16 %v160, %v159
    %v174 = vpack.c.b16 %v162, %v161
    %v175 = vpack.c.b16 %v164, %v163
    %v176 = vpack.c.b16 %v166, %v165
    %v177 = vpack.c.b16 %v168, %v167
    %v178 = vpack.c.b16 %v170, %v169
    %v219 = vunpack.c.l.b16 %v97
    %v220 = vunpack.c.h.b16 %v97
    %v221 = vunpack.c.l.b16 %v98
    %v222 = vunpack.c.h.b16 %v98
    %v223 = vunpack.c.l.b16 %v99
    %v224 = vunpack.c.h.b16 %v99
    %v225 = vunpack.c.l.b16 %v100
    %v226 = vunpack.c.h.b16 %v100
    %v227 = vunpack.c.l.b16 %v101
    %v228 = vunpack.c.h.b16 %v101
    %v229 = vunpack.c.l.b16 %v102
    %v230 = vunpack.c.h.b16 %v102
    %v231 = vunpack.c.l.b16 %v103
    %v232 = vunpack.c.h.b16 %v103
    %v233 = vunpack.c.l.b16 %v104
    %v234 = vunpack.c.h.b16 %v104
    %v235 = vunpack.c.l.b16 %v105
    %v236 = vunpack.c.h.b16 %v105
    %v237 = vunpack.c.l.b16 %v106
    %v238 = vunpack.c.h.b16 %v106
    %v239 = vunpack.c.l.b16 %v107
    %v240 = vunpack.c.h.b16 %v107
    %v241 = vunpack.c.l.b16 %v108
    %v242 = vunpack.c.h.b16 %v108
    %v243 = vunpack.c.l.b16 %v109
    %v244 = vunpack.c.h.b16 %v109
    %v245 = vunpack.c.l.b16 %v110
    %v246 = vunpack.c.h.b16 %v110
    %v247 = vunpack.c.l.b16 %v111
    %v248 = vunpack.c.h.b16 %v111
    %v249 = vunpack.c.l.b16 %v112
    %v250 = vunpack.c.h.b16 %v112
    %v251 = vunpack.c.l.b16 %v113
    %v252 = vunpack.c.h.b16 %v113
    %v253 = vunpack.c.l.b16 %v114
    %v254 = vunpack.c.h.b16 %v114
    %v255 = vunpack.c.l.b16 %v115
    %v256 = vunpack.c.h.b16 %v115
    %v257 = vunpack.c.l.b16 %v116
    %v258 = vunpack.c.h.b16 %v116
    %v259 = vunpack.c.l.b16 %v117
    %v260 = vunpack.c.h.b16 %v117
    %v261 = vunpack.c.l.b16 %v118
    %v262 = vunpack.c.h.b16 %v118
    %v263 = vunpack.c.l.b16 %v119
    %v264 = vunpack.c.h.b16 %v119
    %v265 = vunpack.c.l.b16 %v120
    %v266 = vunpack.c.h.b16 %v120
    %v267 = vunpack.c.l.b16 %v121
    %v268 = vunpack.c.h.b16 %v121
    %v269 = vunpack.c.l.b16 %v122
    %v270 = vunpack.c.h.b16 %v122
    %v271 = vunpack.c.l.b16 %v123
    %v272 = vunpack.c.h.b16 %v123
    %v273 = vunpack.c.l.b16 %v124
    %v274 = vunpack.c.h.b16 %v124
    %v275 = vunpack.c.l.b16 %v125
    %v276 = vunpack.c.h.b16 %v125
    %v277 = vunpack.c.l.b16 %v126
    %v278 = vunpack.c.h.b16 %v126
    %v279 = vunpack.c.l.b16 %v127
    %v280 = vunpack.c.h.b16 %v127
    %v281 = vunpack.c.l.b16 %v128
    %v282 = vunpack.c.h.b16 %v128
    %v283 = vpack.c.b16 %v223, %v219
    %v284 = vpack.c.b16 %v224, %v220
    %v285 = vpack.c.b16 %v225, %v221
    %v286 = vpack.c.b16 %v226, %v222
    %v287 = vpack.c.b16 %v231, %v227
    %v288 = vpack.c.b16 %v232, %v228
    %v289 = vpack.c.b16 %v233, %v229
    %v290 = vpack.c.b16 %v234, %v230
    %v291 = vpack.c.b16 %v239, %v235
    %v292 = vpack.c.b16 %v240, %v236
    %v293 = vpack.c.b16 %v241, %v237
    %v294 = vpack.c.b16 %v242, %v238
    %v295 = vpack.c.b16 %v247, %v243
    %v296 = vpack.c.b16 %v248, %v244
    %v297 = vpack.c.b16 %v249, %v245
    %v298 = vpack.c.b16 %v250, %v246
    %v299 = vpack.c.b16 %v255, %v251
    %v300 = vpack.c.b16 %v256, %v252
    %v301 = vpack.c.b16 %v257, %v253
    %v302 = vpack.c.b16 %v258, %v254
    %v303 = vpack.c.b16 %v263, %v259
    %v304 = vpack.c.b16 %v264, %v260
    %v305 = vpack.c.b16 %v265, %v261
    %v306 = vpack.c.b16 %v266, %v262
    %v307 = vpack.c.b16 %v271, %v267
    %v308 = vpack.c.b16 %v272, %v268
    %v309 = vpack.c.b16 %v273, %v269
    %v310 = vpack.c.b16 %v274, %v270
    %v311 = vpack.c.b16 %v279, %v275
    %v312 = vpack.c.b16 %v280, %v276
    %v313 = vpack.c.b16 %v281, %v277
    %v314 = vpack.c.b16 %v282, %v278
    %347 = vmatpush.bf16.msra.mxu0 %v311
    %348 = vmatpush.bf16.msra.mxu0 %v307
    %349 = vmatpush.bf16.msra.mxu0 %v303
    %350 = vmatpush.bf16.msra.mxu0 %v299
    %351 = vmatpush.bf16.msra.mxu0 %v295
    %352 = vmatpush.bf16.msra.mxu0 %v291
    %353 = vmatpush.bf16.msra.mxu0 %v287
    %354 = vmatpush.bf16.msra.mxu0 %v283
    %355 = vmatmul.bf16.gmra.mxu0 %v171
    %v356 = vpop.f32.mrf.mxu0
    %v357 = vadd.f32 %v131, %v356
    %v358 = vpop.f32.mrf.mxu0
    %v359 = vadd.f32 %v131, %v358
    %360 = vmatmul.bf16.gmra.mxu0 %v172
    %v361 = vpop.f32.mrf.mxu0
    %v362 = vadd.f32 %v131, %v361
    %v363 = vpop.f32.mrf.mxu0
    %v364 = vadd.f32 %v131, %v363
    %365 = vmatmul.bf16.gmra.mxu0 %v173
    %v366 = vpop.f32.mrf.mxu0
    %v367 = vadd.f32 %v131, %v366
    %v368 = vpop.f32.mrf.mxu0
    %v369 = vadd.f32 %v131, %v368
    %370 = vmatmul.bf16.gmra.mxu0 %v174
    %v371 = vpop.f32.mrf.mxu0
    %v372 = vadd.f32 %v131, %v371
    %v373 = vpop.f32.mrf.mxu0
    %v374 = vadd.f32 %v131, %v373
    %375 = vmatmul.bf16.gmra.mxu0 %v175
    %v376 = vpop.f32.mrf.mxu0
    %v377 = vadd.f32 %v131, %v376
    %v378 = vpop.f32.mrf.mxu0
    %v379 = vadd.f32 %v131, %v378
    %380 = vmatmul.bf16.gmra.mxu0 %v176
    %v381 = vpop.f32.mrf.mxu0
    %v382 = vadd.f32 %v131, %v381
    %v383 = vpop.f32.mrf.mxu0
    %v384 = vadd.f32 %v131, %v383
    %385 = vmatmul.bf16.gmra.mxu0 %v177
    %v386 = vpop.f32.mrf.mxu0
    %v387 = vadd.f32 %v131, %v386
    %v388 = vpop.f32.mrf.mxu0
    %v389 = vadd.f32 %v131, %v388
    %390 = vmatmul.bf16.gmra.mxu0 %v178
    %v391 = vpop.f32.mrf.mxu0
    %v392 = vadd.f32 %v131, %v391
    %v393 = vpop.f32.mrf.mxu0
    %v394 = vadd.f32 %v131, %v393
    %395 = vdwg.mxu0
    %396 = vmatpush.bf16.msra.mxu0 %v312
    %397 = vmatpush.bf16.msra.mxu0 %v308
    %398 = vmatpush.bf16.msra.mxu0 %v304
    %399 = vmatpush.bf16.msra.mxu0 %v300
    %400 = vmatpush.bf16.msra.mxu0 %v296
    %401 = vmatpush.bf16.msra.mxu0 %v292
    %402 = vmatpush.bf16.msra.mxu0 %v288
    %403 = vmatpush.bf16.msra.mxu0 %v284
    %404 = vmatmul.bf16.gmra.mxu0 %v171
    %v405 = vpop.f32.mrf.mxu0
    %v406 = vadd.f32 %v132, %v405
    %v407 = vpop.f32.mrf.mxu0
    %v408 = vadd.f32 %v132, %v407
    %409 = vmatmul.bf16.gmra.mxu0 %v172
    %v410 = vpop.f32.mrf.mxu0
    %v411 = vadd.f32 %v132, %v410
    %v412 = vpop.f32.mrf.mxu0
    %v413 = vadd.f32 %v132, %v412
    %414 = vmatmul.bf16.gmra.mxu0 %v173
    %v415 = vpop.f32.mrf.mxu0
    %v416 = vadd.f32 %v132, %v415
    %v417 = vpop.f32.mrf.mxu0
    %v418 = vadd.f32 %v132, %v417
    %419 = vmatmul.bf16.gmra.mxu0 %v174
    %v420 = vpop.f32.mrf.mxu0
    %v421 = vadd.f32 %v132, %v420
    %v422 = vpop.f32.mrf.mxu0
    %v423 = vadd.f32 %v132, %v422
    %424 = vmatmul.bf16.gmra.mxu0 %v175
    %v425 = vpop.f32.mrf.mxu0
    %v426 = vadd.f32 %v132, %v425
    %v427 = vpop.f32.mrf.mxu0
    %v428 = vadd.f32 %v132, %v427
    %429 = vmatmul.bf16.gmra.mxu0 %v176
    %v430 = vpop.f32.mrf.mxu0
    %v431 = vadd.f32 %v132, %v430
    %v432 = vpop.f32.mrf.mxu0
    %v433 = vadd.f32 %v132, %v432
    %434 = vmatmul.bf16.gmra.mxu0 %v177
    %v435 = vpop.f32.mrf.mxu0
    %v436 = vadd.f32 %v132, %v435
    %v437 = vpop.f32.mrf.mxu0
    %v438 = vadd.f32 %v132, %v437
    %439 = vmatmul.bf16.gmra.mxu0 %v178
    %v440 = vpop.f32.mrf.mxu0
    %v441 = vadd.f32 %v132, %v440
    %v442 = vpop.f32.mrf.mxu0
    %v443 = vadd.f32 %v132, %v442
    %444 = vdwg.mxu0
    %445 = vmatpush.bf16.msra.mxu0 %v313
    %446 = vmatpush.bf16.msra.mxu0 %v309
    %447 = vmatpush.bf16.msra.mxu0 %v305
    %448 = vmatpush.bf16.msra.mxu0 %v301
    %449 = vmatpush.bf16.msra.mxu0 %v297
    %450 = vmatpush.bf16.msra.mxu0 %v293
    %451 = vmatpush.bf16.msra.mxu0 %v289
    %452 = vmatpush.bf16.msra.mxu0 %v285
    %453 = vmatmul.bf16.gmra.mxu0 %v171
    %v454 = vpop.f32.mrf.mxu0
    %v455 = vadd.f32 %v133, %v454
    %v456 = vpop.f32.mrf.mxu0
    %v457 = vadd.f32 %v133, %v456
    %458 = vmatmul.bf16.gmra.mxu0 %v172
    %v459 = vpop.f32.mrf.mxu0
    %v460 = vadd.f32 %v133, %v459
    %v461 = vpop.f32.mrf.mxu0
    %v462 = vadd.f32 %v133, %v461
    %463 = vmatmul.bf16.gmra.mxu0 %v173
    %v464 = vpop.f32.mrf.mxu0
    %v465 = vadd.f32 %v133, %v464
    %v466 = vpop.f32.mrf.mxu0
    %v467 = vadd.f32 %v133, %v466
    %468 = vmatmul.bf16.gmra.mxu0 %v174
    %v469 = vpop.f32.mrf.mxu0
    %v470 = vadd.f32 %v133, %v469
    %v471 = vpop.f32.mrf.mxu0
    %v472 = vadd.f32 %v133, %v471
    %473 = vmatmul.bf16.gmra.mxu0 %v175
    %v474 = vpop.f32.mrf.mxu0
    %v475 = vadd.f32 %v133, %v474
    %v476 = vpop.f32.mrf.mxu0
    %v477 = vadd.f32 %v133, %v476
    %478 = vmatmul.bf16.gmra.mxu0 %v176
    %v479 = vpop.f32.mrf.mxu0
    %v480 = vadd.f32 %v133, %v479
    %v481 = vpop.f32.mrf.mxu0
    %v482 = vadd.f32 %v133, %v481
    %483 = vmatmul.bf16.gmra.mxu0 %v177
    %v484 = vpop.f32.mrf.mxu0
    %v485 = vadd.f32 %v133, %v484
    %v486 = vpop.f32.mrf.mxu0
    %v487 = vadd.f32 %v133, %v486
    %488 = vmatmul.bf16.gmra.mxu0 %v178
    %v489 = vpop.f32.mrf.mxu0
    %v490 = vadd.f32 %v133, %v489
    %v491 = vpop.f32.mrf.mxu0
    %v492 = vadd.f32 %v133, %v491
    %493 = vdwg.mxu0
    %494 = vmatpush.bf16.msra.mxu0 %v314
    %495 = vmatpush.bf16.msra.mxu0 %v310
    %496 = vmatpush.bf16.msra.mxu0 %v306
    %497 = vmatpush.bf16.msra.mxu0 %v302
    %498 = vmatpush.bf16.msra.mxu0 %v298
    %499 = vmatpush.bf16.msra.mxu0 %v294
    %500 = vmatpush.bf16.msra.mxu0 %v290
    %501 = vmatpush.bf16.msra.mxu0 %v286
    %502 = vmatmul.bf16.gmra.mxu0 %v171
    %v503 = vpop.f32.mrf.mxu0
    %v504 = vadd.f32 %v134, %v503
    %v505 = vpop.f32.mrf.mxu0
    %v506 = vadd.f32 %v134, %v505
    %507 = vmatmul.bf16.gmra.mxu0 %v172
    %v508 = vpop.f32.mrf.mxu0
    %v509 = vadd.f32 %v134, %v508
    %v510 = vpop.f32.mrf.mxu0
    %v511 = vadd.f32 %v134, %v510
    %512 = vmatmul.bf16.gmra.mxu0 %v173
    %v513 = vpop.f32.mrf.mxu0
    %v514 = vadd.f32 %v134, %v513
    %v515 = vpop.f32.mrf.mxu0
    %v516 = vadd.f32 %v134, %v515
    %517 = vmatmul.bf16.gmra.mxu0 %v174
    %v518 = vpop.f32.mrf.mxu0
    %v519 = vadd.f32 %v134, %v518
    %v520 = vpop.f32.mrf.mxu0
    %v521 = vadd.f32 %v134, %v520
    %522 = vmatmul.bf16.gmra.mxu0 %v175
    %v523 = vpop.f32.mrf.mxu0
    %v524 = vadd.f32 %v134, %v523
    %v525 = vpop.f32.mrf.mxu0
    %v526 = vadd.f32 %v134, %v525
    %527 = vmatmul.bf16.gmra.mxu0 %v176
    %v528 = vpop.f32.mrf.mxu0
    %v529 = vadd.f32 %v134, %v528
    %v530 = vpop.f32.mrf.mxu0
    %v531 = vadd.f32 %v134, %v530
    %532 = vmatmul.bf16.gmra.mxu0 %v177
    %v533 = vpop.f32.mrf.mxu0
    %v534 = vadd.f32 %v134, %v533
    %v535 = vpop.f32.mrf.mxu0
    %v536 = vadd.f32 %v134, %v535
    %537 = vmatmul.bf16.gmra.mxu0 %v178
    %v538 = vpop.f32.mrf.mxu0
    %v539 = vadd.f32 %v134, %v538
    %v540 = vpop.f32.mrf.mxu0
    %v541 = vadd.f32 %v134, %v540
    %542 = vdwg.mxu0
    %v543 = vmax.f32 %v357, 0.0
    %v544 = vmax.f32 %v406, 0.0
    %v545 = vmax.f32 %v455, 0.0
    %v546 = vmax.f32 %v504, 0.0
    %v547 = vmax.f32 %v359, 0.0
    %v548 = vmax.f32 %v408, 0.0
    %v549 = vmax.f32 %v457, 0.0
    %v550 = vmax.f32 %v506, 0.0
    %v551 = vmax.f32 %v362, 0.0
    %v552 = vmax.f32 %v411, 0.0
    %v553 = vmax.f32 %v460, 0.0
    %v554 = vmax.f32 %v509, 0.0
    %v555 = vmax.f32 %v364, 0.0
    %v556 = vmax.f32 %v413, 0.0
    %v557 = vmax.f32 %v462, 0.0
    %v558 = vmax.f32 %v511, 0.0
    %v559 = vmax.f32 %v367, 0.0
    %v560 = vmax.f32 %v416, 0.0
    %v561 = vmax.f32 %v465, 0.0
    %v562 = vmax.f32 %v514, 0.0
    %v563 = vmax.f32 %v369, 0.0
    %v564 = vmax.f32 %v418, 0.0
    %v565 = vmax.f32 %v467, 0.0
    %v566 = vmax.f32 %v516, 0.0
    %v567 = vmax.f32 %v372, 0.0
    %v568 = vmax.f32 %v421, 0.0
    %v569 = vmax.f32 %v470, 0.0
    %v570 = vmax.f32 %v519, 0.0
    %v571 = vmax.f32 %v374, 0.0
    %v572 = vmax.f32 %v423, 0.0
    %v573 = vmax.f32 %v472, 0.0
    %v574 = vmax.f32 %v521, 0.0
    %v575 = vmax.f32 %v377, 0.0
    %v576 = vmax.f32 %v426, 0.0
    %v577 = vmax.f32 %v475, 0.0
    %v578 = vmax.f32 %v524, 0.0
    %v579 = vmax.f32 %v379, 0.0
    %v580 = vmax.f32 %v428, 0.0
    %v581 = vmax.f32 %v477, 0.0
    %v582 = vmax.f32 %v526, 0.0
    %v583 = vmax.f32 %v382, 0.0
    %v584 = vmax.f32 %v431, 0.0
    %v585 = vmax.f32 %v480, 0.0
    %v586 = vmax.f32 %v529, 0.0
    %v587 = vmax.f32 %v384, 0.0
    %v588 = vmax.f32 %v433, 0.0
    %v589 = vmax.f32 %v482, 0.0
    %v590 = vmax.f32 %v531, 0.0
    %v591 = vmax.f32 %v387, 0.0
    %v592 = vmax.f32 %v436, 0.0
    %v593 = vmax.f32 %v485, 0.0
    %v594 = vmax.f32 %v534, 0.0
    %v595 = vmax.f32 %v389, 0.0
    %v596 = vmax.f32 %v438, 0.0
    %v597 = vmax.f32 %v487, 0.0
    %v598 = vmax.f32 %v536, 0.0
    %v599 = vmax.f32 %v392, 0.0
    %v600 = vmax.f32 %v441, 0.0
    %v601 = vmax.f32 %v490, 0.0
    %v602 = vmax.f32 %v539, 0.0
    %v603 = vmax.f32 %v394, 0.0
    %v604 = vmax.f32 %v443, 0.0
    %v605 = vmax.f32 %v492, 0.0
    %v606 = vmax.f32 %v541, 0.0
    %v607 = vpack.c.bf16 %v547, %v543
    %v608 = vpack.c.bf16 %v548, %v544
    %v609 = vpack.c.bf16 %v549, %v545
    %v610 = vpack.c.bf16 %v550, %v546
    %v611 = vpack.c.bf16 %v555, %v551
    %v612 = vpack.c.bf16 %v556, %v552
    %v613 = vpack.c.bf16 %v557, %v553
    %v614 = vpack.c.bf16 %v558, %v554
    %v615 = vpack.c.bf16 %v563, %v559
    %v616 = vpack.c.bf16 %v564, %v560
    %v617 = vpack.c.bf16 %v565, %v561
    %v618 = vpack.c.bf16 %v566, %v562
    %v619 = vpack.c.bf16 %v571, %v567
    %v620 = vpack.c.bf16 %v572, %v568
    %v621 = vpack.c.bf16 %v573, %v569
    %v622 = vpack.c.bf16 %v574, %v570
    %v623 = vpack.c.bf16 %v579, %v575
    %v624 = vpack.c.bf16 %v580, %v576
    %v625 = vpack.c.bf16 %v581, %v577
    %v626 = vpack.c.bf16 %v582, %v578
    %v627 = vpack.c.bf16 %v587, %v583
    %v628 = vpack.c.bf16 %v588, %v584
    %v629 = vpack.c.bf16 %v589, %v585
    %v630 = vpack.c.bf16 %v590, %v586
    %v631 = vpack.c.bf16 %v595, %v591
    %v632 = vpack.c.bf16 %v596, %v592
    %v633 = vpack.c.bf16 %v597, %v593
    %v634 = vpack.c.bf16 %v598, %v594
    %v635 = vpack.c.bf16 %v603, %v599
    %v636 = vpack.c.bf16 %v604, %v600
    %v637 = vpack.c.bf16 %v605, %v601
    %v638 = vpack.c.bf16 %v606, %v602
    %v639 = vld [vmem:[#allocation7] sm:$0xff]
    %v640 = vld [vmem:[#allocation7 + $0x8] sm:$0xf]
    %v641 = vld [vmem:[#allocation7 + $0xc] sm:$0xff]
    %v642 = vld [vmem:[#allocation7 + $0x14] sm:$0xf]
    %v643 = vld [vmem:[#allocation7 + $0x18] sm:$0xff]
    %v644 = vld [vmem:[#allocation7 + $0x20] sm:$0xf]
    %v645 = vld [vmem:[#allocation7 + $0x24] sm:$0xff]
    %v646 = vld [vmem:[#allocation7 + $0x2c] sm:$0xf]
    %v647 = vld [vmem:[#allocation7 + $0x30] sm:$0xff]
    %v648 = vld [vmem:[#allocation7 + $0x38] sm:$0xf]
    %v649 = vld [vmem:[#allocation7 + $0x3c] sm:$0xff]
    %v650 = vld [vmem:[#allocation7 + $0x44] sm:$0xf]
    %v651 = vld [vmem:[#allocation7 + $0x48] sm:$0xff]
    %v652 = vld [vmem:[#allocation7 + $0x50] sm:$0xf]
    %v653 = vld [vmem:[#allocation7 + $0x54] sm:$0xff]
    %v654 = vld [vmem:[#allocation7 + $0x5c] sm:$0xf]
    %v655 = vld [vmem:[#allocation7 + $0x60] sm:$0xff]
    %v656 = vld [vmem:[#allocation7 + $0x68] sm:$0xf]
    %v657 = vld [vmem:[#allocation7 + $0x6c] sm:$0xff]
    %v658 = vld [vmem:[#allocation7 + $0x74] sm:$0xf]
    %v659 = vld [vmem:[#allocation7 + $0x78] sm:$0xff]
    %v660 = vld [vmem:[#allocation7 + $0x80] sm:$0xf]
    %v661 = vld [vmem:[#allocation7 + $0x84] sm:$0xff]
    %v662 = vld [vmem:[#allocation7 + $0x8c] sm:$0xf]
    %v663 = vld [vmem:[#allocation7 + $0x90] sm:$0xff]
    %v664 = vld [vmem:[#allocation7 + $0x98] sm:$0xf]
    %v665 = vld [vmem:[#allocation7 + $0x9c] sm:$0xff]
    %v666 = vld [vmem:[#allocation7 + $0xa4] sm:$0xf]
    %v667 = vld [vmem:[#allocation7 + $0xa8] sm:$0xff]
    %v668 = vld [vmem:[#allocation7 + $0xb0] sm:$0xf]
    %v669 = vld [vmem:[#allocation7 + $0xb4] sm:$0xff]
    %v670 = vld [vmem:[#allocation7 + $0xbc] sm:$0xf]
    %v671 = vld [vmem:[#allocation7 + $0xc0] sm:$0xff]
    %v672 = vld [vmem:[#allocation7 + $0xc8] sm:$0xf]
    %v673 = vld [vmem:[#allocation7 + $0xcc] sm:$0xff]
    %v674 = vld [vmem:[#allocation7 + $0xd4] sm:$0xf]
    %v675 = vld [vmem:[#allocation7 + $0xd8] sm:$0xff]
    %v676 = vld [vmem:[#allocation7 + $0xe0] sm:$0xf]
    %v677 = vld [vmem:[#allocation7 + $0xe4] sm:$0xff]
    %v678 = vld [vmem:[#allocation7 + $0xec] sm:$0xf]
    %v679 = vld [vmem:[#allocation7 + $0xf0] sm:$0xff]
    %v680 = vld [vmem:[#allocation7 + $0xf8] sm:$0xf]
    %v681 = vld [vmem:[#allocation7 + $0xfc] sm:$0xff]
    %v682 = vld [vmem:[#allocation7 + $0x104] sm:$0xf]
    %v683 = vld [vmem:[#allocation7 + $0x108] sm:$0xff]
    %v684 = vld [vmem:[#allocation7 + $0x110] sm:$0xf]
    %v685 = vld [vmem:[#allocation7 + $0x114] sm:$0xff]
    %v686 = vld [vmem:[#allocation7 + $0x11c] sm:$0xf]
    %v687 = vld [vmem:[#allocation7 + $0x120] sm:$0xff]
    %v688 = vld [vmem:[#allocation7 + $0x128] sm:$0xf]
    %v689 = vld [vmem:[#allocation7 + $0x12c] sm:$0xff]
    %v690 = vld [vmem:[#allocation7 + $0x134] sm:$0xf]
    %v691 = vld [vmem:[#allocation7 + $0x138] sm:$0xff]
    %v692 = vld [vmem:[#allocation7 + $0x140] sm:$0xf]
    %v693 = vld [vmem:[#allocation7 + $0x144] sm:$0xff]
    %v694 = vld [vmem:[#allocation7 + $0x14c] sm:$0xf]
    %v695 = vld [vmem:[#allocation7 + $0x150] sm:$0xff]
    %v696 = vld [vmem:[#allocation7 + $0x158] sm:$0xf]
    %v697 = vld [vmem:[#allocation7 + $0x15c] sm:$0xff]
    %v698 = vld [vmem:[#allocation7 + $0x164] sm:$0xf]
    %v699 = vld [vmem:[#allocation7 + $0x168] sm:$0xff]
    %v700 = vld [vmem:[#allocation7 + $0x170] sm:$0xf]
    %v701 = vld [vmem:[#allocation7 + $0x174] sm:$0xff]
    %v702 = vld [vmem:[#allocation7 + $0x17c] sm:$0xf]
    %v703 = vld [vmem:[#allocation7 + $0x180] sm:$0xff]
    %v704 = vld [vmem:[#allocation7 + $0x188] sm:$0xf]
    %v705 = vld [vmem:[#allocation7 + $0x18c] sm:$0xff]
    %v706 = vld [vmem:[#allocation7 + $0x194] sm:$0xf]
    %v707 = vld [vmem:[#allocation7 + $0x198] sm:$0xff]
    %v708 = vld [vmem:[#allocation7 + $0x1a0] sm:$0xf]
    %v709 = vld [vmem:[#allocation7 + $0x1a4] sm:$0xff]
    %v710 = vld [vmem:[#allocation7 + $0x1ac] sm:$0xf]
    %v711 = vld [vmem:[#allocation7 + $0x1b0] sm:$0xff]
    %v712 = vld [vmem:[#allocation7 + $0x1b8] sm:$0xf]
    %v713 = vld [vmem:[#allocation7 + $0x1bc] sm:$0xff]
    %v714 = vld [vmem:[#allocation7 + $0x1c4] sm:$0xf]
    %v715 = vld [vmem:[#allocation7 + $0x1c8] sm:$0xff]
    %v716 = vld [vmem:[#allocation7 + $0x1d0] sm:$0xf]
    %v717 = vld [vmem:[#allocation7 + $0x1d4] sm:$0xff]
    %v718 = vld [vmem:[#allocation7 + $0x1dc] sm:$0xf]
    %v719 = vld [vmem:[#allocation7 + $0x1e0] sm:$0xff]
    %v720 = vld [vmem:[#allocation7 + $0x1e8] sm:$0xf]
    %v721 = vld [vmem:[#allocation7 + $0x1ec] sm:$0xff]
    %v722 = vld [vmem:[#allocation7 + $0x1f4] sm:$0xf]
    %v723 = vld [vmem:[#allocation7 + $0x1f8] sm:$0xff]
    %v724 = vld [vmem:[#allocation7 + $0x200] sm:$0xf]
    %v725 = vld [vmem:[#allocation7 + $0x204] sm:$0xff]
    %v726 = vld [vmem:[#allocation7 + $0x20c] sm:$0xf]
    %v727 = vld [vmem:[#allocation7 + $0x210] sm:$0xff]
    %v728 = vld [vmem:[#allocation7 + $0x218] sm:$0xf]
    %v729 = vld [vmem:[#allocation7 + $0x21c] sm:$0xff]
    %v730 = vld [vmem:[#allocation7 + $0x224] sm:$0xf]
    %v731 = vld [vmem:[#allocation7 + $0x228] sm:$0xff]
    %v732 = vld [vmem:[#allocation7 + $0x230] sm:$0xf]
    %v733 = vld [vmem:[#allocation7 + $0x234] sm:$0xff]
    %v734 = vld [vmem:[#allocation7 + $0x23c] sm:$0xf]
    %v735 = vld [vmem:[#allocation7 + $0x240] sm:$0xff]
    %v736 = vld [vmem:[#allocation7 + $0x248] sm:$0xf]
    %v737 = vld [vmem:[#allocation7 + $0x24c] sm:$0xff]
    %v738 = vld [vmem:[#allocation7 + $0x254] sm:$0xf]
    %v739 = vld [vmem:[#allocation7 + $0x258] sm:$0xff]
    %v740 = vld [vmem:[#allocation7 + $0x260] sm:$0xf]
    %v741 = vld [vmem:[#allocation7 + $0x264] sm:$0xff]
    %v742 = vld [vmem:[#allocation7 + $0x26c] sm:$0xf]
    %v743 = vld [vmem:[#allocation7 + $0x270] sm:$0xff]
    %v744 = vld [vmem:[#allocation7 + $0x278] sm:$0xf]
    %v745 = vld [vmem:[#allocation7 + $0x27c] sm:$0xff]
    %v746 = vld [vmem:[#allocation7 + $0x284] sm:$0xf]
    %v747 = vld [vmem:[#allocation7 + $0x288] sm:$0xff]
    %v748 = vld [vmem:[#allocation7 + $0x290] sm:$0xf]
    %v749 = vld [vmem:[#allocation7 + $0x294] sm:$0xff]
    %v750 = vld [vmem:[#allocation7 + $0x29c] sm:$0xf]
    %v751 = vld [vmem:[#allocation7 + $0x2a0] sm:$0xff]
    %v752 = vld [vmem:[#allocation7 + $0x2a8] sm:$0xf]
    %v753 = vld [vmem:[#allocation7 + $0x2ac] sm:$0xff]
    %v754 = vld [vmem:[#allocation7 + $0x2b4] sm:$0xf]
    %v755 = vld [vmem:[#allocation7 + $0x2b8] sm:$0xff]
    %v756 = vld [vmem:[#allocation7 + $0x2c0] sm:$0xf]
    %v757 = vld [vmem:[#allocation7 + $0x2c4] sm:$0xff]
    %v758 = vld [vmem:[#allocation7 + $0x2cc] sm:$0xf]
    %v759 = vld [vmem:[#allocation7 + $0x2d0] sm:$0xff]
    %v760 = vld [vmem:[#allocation7 + $0x2d8] sm:$0xf]
    %v761 = vld [vmem:[#allocation7 + $0x2dc] sm:$0xff]
    %v762 = vld [vmem:[#allocation7 + $0x2e4] sm:$0xf]
    %v763 = vld [vmem:[#allocation7 + $0x2e8] sm:$0xff]
    %v764 = vld [vmem:[#allocation7 + $0x2f0] sm:$0xf]
    %v765 = vld [vmem:[#allocation7 + $0x2f4] sm:$0xff]
    %v766 = vld [vmem:[#allocation7 + $0x2fc] sm:$0xf]
    %s767 = scalar_lea.vmem [#allocation8], 32
    %v768 = vld [vmem:[%s767] ss:$8 sm:$0x7]
    %v770 = vperm.slane %v768, 0
    %v771 = vperm.slane %v768, 1
    %v772 = vperm.slane %v768, 2
    %v904 = vunpack.c.l.b16 %v639
    %v905 = vunpack.c.h.b16 %v639
    %v906 = vunpack.c.l.b16 %v640
    %v907 = vunpack.c.l.b16 %v641
    %v908 = vunpack.c.h.b16 %v641
    %v909 = vunpack.c.l.b16 %v642
    %v910 = vunpack.c.l.b16 %v643
    %v911 = vunpack.c.h.b16 %v643
    %v912 = vunpack.c.l.b16 %v644
    %v913 = vunpack.c.l.b16 %v645
    %v914 = vunpack.c.h.b16 %v645
    %v915 = vunpack.c.l.b16 %v646
    %v916 = vunpack.c.l.b16 %v647
    %v917 = vunpack.c.h.b16 %v647
    %v918 = vunpack.c.l.b16 %v648
    %v919 = vunpack.c.l.b16 %v649
    %v920 = vunpack.c.h.b16 %v649
    %v921 = vunpack.c.l.b16 %v650
    %v922 = vunpack.c.l.b16 %v651
    %v923 = vunpack.c.h.b16 %v651
    %v924 = vunpack.c.l.b16 %v652
    %v925 = vunpack.c.l.b16 %v653
    %v926 = vunpack.c.h.b16 %v653
    %v927 = vunpack.c.l.b16 %v654
    %v928 = vunpack.c.l.b16 %v655
    %v929 = vunpack.c.h.b16 %v655
    %v930 = vunpack.c.l.b16 %v656
    %v931 = vunpack.c.l.b16 %v657
    %v932 = vunpack.c.h.b16 %v657
    %v933 = vunpack.c.l.b16 %v658
    %v934 = vunpack.c.l.b16 %v659
    %v935 = vunpack.c.h.b16 %v659
    %v936 = vunpack.c.l.b16 %v660
    %v937 = vunpack.c.l.b16 %v661
    %v938 = vunpack.c.h.b16 %v661
    %v939 = vunpack.c.l.b16 %v662
    %v940 = vunpack.c.l.b16 %v663
    %v941 = vunpack.c.h.b16 %v663
    %v942 = vunpack.c.l.b16 %v664
    %v943 = vunpack.c.l.b16 %v665
    %v944 = vunpack.c.h.b16 %v665
    %v945 = vunpack.c.l.b16 %v666
    %v946 = vunpack.c.l.b16 %v667
    %v947 = vunpack.c.h.b16 %v667
    %v948 = vunpack.c.l.b16 %v668
    %v949 = vunpack.c.l.b16 %v669
    %v950 = vunpack.c.h.b16 %v669
    %v951 = vunpack.c.l.b16 %v670
    %v952 = vunpack.c.l.b16 %v671
    %v953 = vunpack.c.h.b16 %v671
    %v954 = vunpack.c.l.b16 %v672
    %v955 = vunpack.c.l.b16 %v673
    %v956 = vunpack.c.h.b16 %v673
    %v957 = vunpack.c.l.b16 %v674
    %v958 = vunpack.c.l.b16 %v675
    %v959 = vunpack.c.h.b16 %v675
    %v960 = vunpack.c.l.b16 %v676
    %v961 = vunpack.c.l.b16 %v677
    %v962 = vunpack.c.h.b16 %v677
    %v963 = vunpack.c.l.b16 %v678
    %v964 = vunpack.c.l.b16 %v679
    %v965 = vunpack.c.h.b16 %v679
    %v966 = vunpack.c.l.b16 %v680
    %v967 = vunpack.c.l.b16 %v681
    %v968 = vunpack.c.h.b16 %v681
    %v969 = vunpack.c.l.b16 %v682
    %v970 = vunpack.c.l.b16 %v683
    %v971 = vunpack.c.h.b16 %v683
    %v972 = vunpack.c.l.b16 %v684
    %v973 = vunpack.c.l.b16 %v685
    %v974 = vunpack.c.h.b16 %v685
    %v975 = vunpack.c.l.b16 %v686
    %v976 = vunpack.c.l.b16 %v687
    %v977 = vunpack.c.h.b16 %v687
    %v978 = vunpack.c.l.b16 %v688
    %v979 = vunpack.c.l.b16 %v689
    %v980 = vunpack.c.h.b16 %v689
    %v981 = vunpack.c.l.b16 %v690
    %v982 = vunpack.c.l.b16 %v691
    %v983 = vunpack.c.h.b16 %v691
    %v984 = vunpack.c.l.b16 %v692
    %v985 = vunpack.c.l.b16 %v693
    %v986 = vunpack.c.h.b16 %v693
    %v987 = vunpack.c.l.b16 %v694
    %v988 = vunpack.c.l.b16 %v695
    %v989 = vunpack.c.h.b16 %v695
    %v990 = vunpack.c.l.b16 %v696
    %v991 = vunpack.c.l.b16 %v697
    %v992 = vunpack.c.h.b16 %v697
    %v993 = vunpack.c.l.b16 %v698
    %v994 = vunpack.c.l.b16 %v699
    %v995 = vunpack.c.h.b16 %v699
    %v996 = vunpack.c.l.b16 %v700
    %v997 = vunpack.c.l.b16 %v701
    %v998 = vunpack.c.h.b16 %v701
    %v999 = vunpack.c.l.b16 %v702
    %v1000 = vunpack.c.l.b16 %v703
    %v1001 = vunpack.c.h.b16 %v703
    %v1002 = vunpack.c.l.b16 %v704
    %v1003 = vunpack.c.l.b16 %v705
    %v1004 = vunpack.c.h.b16 %v705
    %v1005 = vunpack.c.l.b16 %v706
    %v1006 = vunpack.c.l.b16 %v707
    %v1007 = vunpack.c.h.b16 %v707
    %v1008 = vunpack.c.l.b16 %v708
    %v1009 = vunpack.c.l.b16 %v709
    %v1010 = vunpack.c.h.b16 %v709
    %v1011 = vunpack.c.l.b16 %v710
    %v1012 = vunpack.c.l.b16 %v711
    %v1013 = vunpack.c.h.b16 %v711
    %v1014 = vunpack.c.l.b16 %v712
    %v1015 = vunpack.c.l.b16 %v713
    %v1016 = vunpack.c.h.b16 %v713
    %v1017 = vunpack.c.l.b16 %v714
    %v1018 = vunpack.c.l.b16 %v715
    %v1019 = vunpack.c.h.b16 %v715
    %v1020 = vunpack.c.l.b16 %v716
    %v1021 = vunpack.c.l.b16 %v717
    %v1022 = vunpack.c.h.b16 %v717
    %v1023 = vunpack.c.l.b16 %v718
    %v1024 = vunpack.c.l.b16 %v719
    %v1025 = vunpack.c.h.b16 %v719
    %v1026 = vunpack.c.l.b16 %v720
    %v1027 = vunpack.c.l.b16 %v721
    %v1028 = vunpack.c.h.b16 %v721
    %v1029 = vunpack.c.l.b16 %v722
    %v1030 = vunpack.c.l.b16 %v723
    %v1031 = vunpack.c.h.b16 %v723
    %v1032 = vunpack.c.l.b16 %v724
    %v1033 = vunpack.c.l.b16 %v725
    %v1034 = vunpack.c.h.b16 %v725
    %v1035 = vunpack.c.l.b16 %v726
    %v1036 = vunpack.c.l.b16 %v727
    %v1037 = vunpack.c.h.b16 %v727
    %v1038 = vunpack.c.l.b16 %v728
    %v1039 = vunpack.c.l.b16 %v729
    %v1040 = vunpack.c.h.b16 %v729
    %v1041 = vunpack.c.l.b16 %v730
    %v1042 = vunpack.c.l.b16 %v731
    %v1043 = vunpack.c.h.b16 %v731
    %v1044 = vunpack.c.l.b16 %v732
    %v1045 = vunpack.c.l.b16 %v733
    %v1046 = vunpack.c.h.b16 %v733
    %v1047 = vunpack.c.l.b16 %v734
    %v1048 = vunpack.c.l.b16 %v735
    %v1049 = vunpack.c.h.b16 %v735
    %v1050 = vunpack.c.l.b16 %v736
    %v1051 = vunpack.c.l.b16 %v737
    %v1052 = vunpack.c.h.b16 %v737
    %v1053 = vunpack.c.l.b16 %v738
    %v1054 = vunpack.c.l.b16 %v739
    %v1055 = vunpack.c.h.b16 %v739
    %v1056 = vunpack.c.l.b16 %v740
    %v1057 = vunpack.c.l.b16 %v741
    %v1058 = vunpack.c.h.b16 %v741
    %v1059 = vunpack.c.l.b16 %v742
    %v1060 = vunpack.c.l.b16 %v743
    %v1061 = vunpack.c.h.b16 %v743
    %v1062 = vunpack.c.l.b16 %v744
    %v1063 = vunpack.c.l.b16 %v745
    %v1064 = vunpack.c.h.b16 %v745
    %v1065 = vunpack.c.l.b16 %v746
    %v1066 = vunpack.c.l.b16 %v747
    %v1067 = vunpack.c.h.b16 %v747
    %v1068 = vunpack.c.l.b16 %v748
    %v1069 = vunpack.c.l.b16 %v749
    %v1070 = vunpack.c.h.b16 %v749
    %v1071 = vunpack.c.l.b16 %v750
    %v1072 = vunpack.c.l.b16 %v751
    %v1073 = vunpack.c.h.b16 %v751
    %v1074 = vunpack.c.l.b16 %v752
    %v1075 = vunpack.c.l.b16 %v753
    %v1076 = vunpack.c.h.b16 %v753
    %v1077 = vunpack.c.l.b16 %v754
    %v1078 = vunpack.c.l.b16 %v755
    %v1079 = vunpack.c.h.b16 %v755
    %v1080 = vunpack.c.l.b16 %v756
    %v1081 = vunpack.c.l.b16 %v757
    %v1082 = vunpack.c.h.b16 %v757
    %v1083 = vunpack.c.l.b16 %v758
    %v1084 = vunpack.c.l.b16 %v759
    %v1085 = vunpack.c.h.b16 %v759
    %v1086 = vunpack.c.l.b16 %v760
    %v1087 = vunpack.c.l.b16 %v761
    %v1088 = vunpack.c.h.b16 %v761
    %v1089 = vunpack.c.l.b16 %v762
    %v1090 = vunpack.c.l.b16 %v763
    %v1091 = vunpack.c.h.b16 %v763
    %v1092 = vunpack.c.l.b16 %v764
    %v1093 = vunpack.c.l.b16 %v765
    %v1094 = vunpack.c.h.b16 %v765
    %v1095 = vunpack.c.l.b16 %v766
    %v1096 = vpack.c.b16 %v907, %v904
    %v1097 = vpack.c.b16 %v908, %v905
    %v1098 = vpack.c.b16 %v909, %v906
    %v1099 = vpack.c.b16 %v913, %v910
    %v1100 = vpack.c.b16 %v914, %v911
    %v1101 = vpack.c.b16 %v915, %v912
    %v1102 = vpack.c.b16 %v919, %v916
    %v1103 = vpack.c.b16 %v920, %v917
    %v1104 = vpack.c.b16 %v921, %v918
    %v1105 = vpack.c.b16 %v925, %v922
    %v1106 = vpack.c.b16 %v926, %v923
    %v1107 = vpack.c.b16 %v927, %v924
    %v1108 = vpack.c.b16 %v931, %v928
    %v1109 = vpack.c.b16 %v932, %v929
    %v1110 = vpack.c.b16 %v933, %v930
    %v1111 = vpack.c.b16 %v937, %v934
    %v1112 = vpack.c.b16 %v938, %v935
    %v1113 = vpack.c.b16 %v939, %v936
    %v1114 = vpack.c.b16 %v943, %v940
    %v1115 = vpack.c.b16 %v944, %v941
    %v1116 = vpack.c.b16 %v945, %v942
    %v1117 = vpack.c.b16 %v949, %v946
    %v1118 = vpack.c.b16 %v950, %v947
    %v1119 = vpack.c.b16 %v951, %v948
    %v1120 = vpack.c.b16 %v955, %v952
    %v1121 = vpack.c.b16 %v956, %v953
    %v1122 = vpack.c.b16 %v957, %v954
    %v1123 = vpack.c.b16 %v961, %v958
    %v1124 = vpack.c.b16 %v962, %v959
    %v1125 = vpack.c.b16 %v963, %v960
    %v1126 = vpack.c.b16 %v967, %v964
    %v1127 = vpack.c.b16 %v968, %v965
    %v1128 = vpack.c.b16 %v969, %v966
    %v1129 = vpack.c.b16 %v973, %v970
    %v1130 = vpack.c.b16 %v974, %v971
    %v1131 = vpack.c.b16 %v975, %v972
    %v1132 = vpack.c.b16 %v979, %v976
    %v1133 = vpack.c.b16 %v980, %v977
    %v1134 = vpack.c.b16 %v981, %v978
    %v1135 = vpack.c.b16 %v985, %v982
    %v1136 = vpack.c.b16 %v986, %v983
    %v1137 = vpack.c.b16 %v987, %v984
    %v1138 = vpack.c.b16 %v991, %v988
    %v1139 = vpack.c.b16 %v992, %v989
    %v1140 = vpack.c.b16 %v993, %v990
    %v1141 = vpack.c.b16 %v997, %v994
    %v1142 = vpack.c.b16 %v998, %v995
    %v1143 = vpack.c.b16 %v999, %v996
    %v1144 = vpack.c.b16 %v1003, %v1000
    %v1145 = vpack.c.b16 %v1004, %v1001
    %v1146 = vpack.c.b16 %v1005, %v1002
    %v1147 = vpack.c.b16 %v1009, %v1006
    %v1148 = vpack.c.b16 %v1010, %v1007
    %v1149 = vpack.c.b16 %v1011, %v1008
    %v1150 = vpack.c.b16 %v1015, %v1012
    %v1151 = vpack.c.b16 %v1016, %v1013
    %v1152 = vpack.c.b16 %v1017, %v1014
    %v1153 = vpack.c.b16 %v1021, %v1018
    %v1154 = vpack.c.b16 %v1022, %v1019
    %v1155 = vpack.c.b16 %v1023, %v1020
    %v1156 = vpack.c.b16 %v1027, %v1024
    %v1157 = vpack.c.b16 %v1028, %v1025
    %v1158 = vpack.c.b16 %v1029, %v1026
    %v1159 = vpack.c.b16 %v1033, %v1030
    %v1160 = vpack.c.b16 %v1034, %v1031
    %v1161 = vpack.c.b16 %v1035, %v1032
    %v1162 = vpack.c.b16 %v1039, %v1036
    %v1163 = vpack.c.b16 %v1040, %v1037
    %v1164 = vpack.c.b16 %v1041, %v1038
    %v1165 = vpack.c.b16 %v1045, %v1042
    %v1166 = vpack.c.b16 %v1046, %v1043
    %v1167 = vpack.c.b16 %v1047, %v1044
    %v1168 = vpack.c.b16 %v1051, %v1048
    %v1169 = vpack.c.b16 %v1052, %v1049
    %v1170 = vpack.c.b16 %v1053, %v1050
    %v1171 = vpack.c.b16 %v1057, %v1054
    %v1172 = vpack.c.b16 %v1058, %v1055
    %v1173 = vpack.c.b16 %v1059, %v1056
    %v1174 = vpack.c.b16 %v1063, %v1060
    %v1175 = vpack.c.b16 %v1064, %v1061
    %v1176 = vpack.c.b16 %v1065, %v1062
    %v1177 = vpack.c.b16 %v1069, %v1066
    %v1178 = vpack.c.b16 %v1070, %v1067
    %v1179 = vpack.c.b16 %v1071, %v1068
    %v1180 = vpack.c.b16 %v1075, %v1072
    %v1181 = vpack.c.b16 %v1076, %v1073
    %v1182 = vpack.c.b16 %v1077, %v1074
    %v1183 = vpack.c.b16 %v1081, %v1078
    %v1184 = vpack.c.b16 %v1082, %v1079
    %v1185 = vpack.c.b16 %v1083, %v1080
    %v1186 = vpack.c.b16 %v1087, %v1084
    %v1187 = vpack.c.b16 %v1088, %v1085
    %v1188 = vpack.c.b16 %v1089, %v1086
    %v1189 = vpack.c.b16 %v1093, %v1090
    %v1190 = vpack.c.b16 %v1094, %v1091
    %v1191 = vpack.c.b16 %v1095, %v1092
    %1288 = vmatpush.bf16.msra.mxu0 %v1117
    %1289 = vmatpush.bf16.msra.mxu0 %v1114
    %1290 = vmatpush.bf16.msra.mxu0 %v1111
    %1291 = vmatpush.bf16.msra.mxu0 %v1108
    %1292 = vmatpush.bf16.msra.mxu0 %v1105
    %1293 = vmatpush.bf16.msra.mxu0 %v1102
    %1294 = vmatpush.bf16.msra.mxu0 %v1099
    %1295 = vmatpush.bf16.msra.mxu0 %v1096
    %1296 = vmatmul.bf16.gmra.mxu0 %v607
    %v1297 = vpop.f32.mrf.mxu0
    %v1298 = vadd.f32 %v770, %v1297
    %v1299 = vpop.f32.mrf.mxu0
    %v1300 = vadd.f32 %v770, %v1299
    %1301 = vmatmul.bf16.gmra.mxu0 %v611
    %v1302 = vpop.f32.mrf.mxu0
    %v1303 = vadd.f32 %v770, %v1302
    %v1304 = vpop.f32.mrf.mxu0
    %v1305 = vadd.f32 %v770, %v1304
    %1306 = vmatmul.bf16.gmra.mxu0 %v615
    %v1307 = vpop.f32.mrf.mxu0
    %v1308 = vadd.f32 %v770, %v1307
    %v1309 = vpop.f32.mrf.mxu0
    %v1310 = vadd.f32 %v770, %v1309
    %1311 = vmatmul.bf16.gmra.mxu0 %v619
    %v1312 = vpop.f32.mrf.mxu0
    %v1313 = vadd.f32 %v770, %v1312
    %v1314 = vpop.f32.mrf.mxu0
    %v1315 = vadd.f32 %v770, %v1314
    %1316 = vmatmul.bf16.gmra.mxu0 %v623
    %v1317 = vpop.f32.mrf.mxu0
    %v1318 = vadd.f32 %v770, %v1317
    %v1319 = vpop.f32.mrf.mxu0
    %v1320 = vadd.f32 %v770, %v1319
    %1321 = vmatmul.bf16.gmra.mxu0 %v627
    %v1322 = vpop.f32.mrf.mxu0
    %v1323 = vadd.f32 %v770, %v1322
    %v1324 = vpop.f32.mrf.mxu0
    %v1325 = vadd.f32 %v770, %v1324
    %1326 = vmatmul.bf16.gmra.mxu0 %v631
    %v1327 = vpop.f32.mrf.mxu0
    %v1328 = vadd.f32 %v770, %v1327
    %v1329 = vpop.f32.mrf.mxu0
    %v1330 = vadd.f32 %v770, %v1329
    %1331 = vmatmul.bf16.gmra.mxu0 %v635
    %v1332 = vpop.f32.mrf.mxu0
    %v1333 = vadd.f32 %v770, %v1332
    %v1334 = vpop.f32.mrf.mxu0
    %v1335 = vadd.f32 %v770, %v1334
    %1336 = vdwg.mxu0
    %1337 = vmatpush.bf16.msra.mxu0 %v1141
    %1338 = vmatpush.bf16.msra.mxu0 %v1138
    %1339 = vmatpush.bf16.msra.mxu0 %v1135
    %1340 = vmatpush.bf16.msra.mxu0 %v1132
    %1341 = vmatpush.bf16.msra.mxu0 %v1129
    %1342 = vmatpush.bf16.msra.mxu0 %v1126
    %1343 = vmatpush.bf16.msra.mxu0 %v1123
    %1344 = vmatpush.bf16.msra.mxu0 %v1120
    %1345 = vmatmul.bf16.gmra.mxu0 %v608
    %v1346 = vpop.f32.mrf.mxu0
    %v1347 = vadd.f32 %v1298, %v1346
    %v1348 = vpop.f32.mrf.mxu0
    %v1349 = vadd.f32 %v1300, %v1348
    %1350 = vmatmul.bf16.gmra.mxu0 %v612
    %v1351 = vpop.f32.mrf.mxu0
    %v1352 = vadd.f32 %v1303, %v1351
    %v1353 = vpop.f32.mrf.mxu0
    %v1354 = vadd.f32 %v1305, %v1353
    %1355 = vmatmul.bf16.gmra.mxu0 %v616
    %v1356 = vpop.f32.mrf.mxu0
    %v1357 = vadd.f32 %v1308, %v1356
    %v1358 = vpop.f32.mrf.mxu0
    %v1359 = vadd.f32 %v1310, %v1358
    %1360 = vmatmul.bf16.gmra.mxu0 %v620
    %v1361 = vpop.f32.mrf.mxu0
    %v1362 = vadd.f32 %v1313, %v1361
    %v1363 = vpop.f32.mrf.mxu0
    %v1364 = vadd.f32 %v1315, %v1363
    %1365 = vmatmul.bf16.gmra.mxu0 %v624
    %v1366 = vpop.f32.mrf.mxu0
    %v1367 = vadd.f32 %v1318, %v1366
    %v1368 = vpop.f32.mrf.mxu0
    %v1369 = vadd.f32 %v1320, %v1368
    %1370 = vmatmul.bf16.gmra.mxu0 %v628
    %v1371 = vpop.f32.mrf.mxu0
    %v1372 = vadd.f32 %v1323, %v1371
    %v1373 = vpop.f32.mrf.mxu0
    %v1374 = vadd.f32 %v1325, %v1373
    %1375 = vmatmul.bf16.gmra.mxu0 %v632
    %v1376 = vpop.f32.mrf.mxu0
    %v1377 = vadd.f32 %v1328, %v1376
    %v1378 = vpop.f32.mrf.mxu0
    %v1379 = vadd.f32 %v1330, %v1378
    %1380 = vmatmul.bf16.gmra.mxu0 %v636
    %v1381 = vpop.f32.mrf.mxu0
    %v1382 = vadd.f32 %v1333, %v1381
    %v1383 = vpop.f32.mrf.mxu0
    %v1384 = vadd.f32 %v1335, %v1383
    %1385 = vdwg.mxu0
    %1386 = vmatpush.bf16.msra.mxu0 %v1165
    %1387 = vmatpush.bf16.msra.mxu0 %v1162
    %1388 = vmatpush.bf16.msra.mxu0 %v1159
    %1389 = vmatpush.bf16.msra.mxu0 %v1156
    %1390 = vmatpush.bf16.msra.mxu0 %v1153
    %1391 = vmatpush.bf16.msra.mxu0 %v1150
    %1392 = vmatpush.bf16.msra.mxu0 %v1147
    %1393 = vmatpush.bf16.msra.mxu0 %v1144
    %1394 = vmatmul.bf16.gmra.mxu0 %v609
    %v1395 = vpop.f32.mrf.mxu0
    %v1396 = vadd.f32 %v1347, %v1395
    %v1397 = vpop.f32.mrf.mxu0
    %v1398 = vadd.f32 %v1349, %v1397
    %1399 = vmatmul.bf16.gmra.mxu0 %v613
    %v1400 = vpop.f32.mrf.mxu0
    %v1401 = vadd.f32 %v1352, %v1400
    %v1402 = vpop.f32.mrf.mxu0
    %v1403 = vadd.f32 %v1354, %v1402
    %1404 = vmatmul.bf16.gmra.mxu0 %v617
    %v1405 = vpop.f32.mrf.mxu0
    %v1406 = vadd.f32 %v1357, %v1405
    %v1407 = vpop.f32.mrf.mxu0
    %v1408 = vadd.f32 %v1359, %v1407
    %1409 = vmatmul.bf16.gmra.mxu0 %v621
    %v1410 = vpop.f32.mrf.mxu0
    %v1411 = vadd.f32 %v1362, %v1410
    %v1412 = vpop.f32.mrf.mxu0
    %v1413 = vadd.f32 %v1364, %v1412
    %1414 = vmatmul.bf16.gmra.mxu0 %v625
    %v1415 = vpop.f32.mrf.mxu0
    %v1416 = vadd.f32 %v1367, %v1415
    %v1417 = vpop.f32.mrf.mxu0
    %v1418 = vadd.f32 %v1369, %v1417
    %1419 = vmatmul.bf16.gmra.mxu0 %v629
    %v1420 = vpop.f32.mrf.mxu0
    %v1421 = vadd.f32 %v1372, %v1420
    %v1422 = vpop.f32.mrf.mxu0
    %v1423 = vadd.f32 %v1374, %v1422
    %1424 = vmatmul.bf16.gmra.mxu0 %v633
    %v1425 = vpop.f32.mrf.mxu0
    %v1426 = vadd.f32 %v1377, %v1425
    %v1427 = vpop.f32.mrf.mxu0
    %v1428 = vadd.f32 %v1379, %v1427
    %1429 = vmatmul.bf16.gmra.mxu0 %v637
    %v1430 = vpop.f32.mrf.mxu0
    %v1431 = vadd.f32 %v1382, %v1430
    %v1432 = vpop.f32.mrf.mxu0
    %v1433 = vadd.f32 %v1384, %v1432
    %1434 = vdwg.mxu0
    %1435 = vmatpush.bf16.msra.mxu0 %v1189
    %1436 = vmatpush.bf16.msra.mxu0 %v1186
    %1437 = vmatpush.bf16.msra.mxu0 %v1183
    %1438 = vmatpush.bf16.msra.mxu0 %v1180
    %1439 = vmatpush.bf16.msra.mxu0 %v1177
    %1440 = vmatpush.bf16.msra.mxu0 %v1174
    %1441 = vmatpush.bf16.msra.mxu0 %v1171
    %1442 = vmatpush.bf16.msra.mxu0 %v1168
    %1443 = vmatmul.bf16.gmra.mxu0 %v610
    %v1444 = vpop.f32.mrf.mxu0
    %v1445 = vadd.f32 %v1396, %v1444
    %v1446 = vpop.f32.mrf.mxu0
    %v1447 = vadd.f32 %v1398, %v1446
    %1448 = vmatmul.bf16.gmra.mxu0 %v614
    %v1449 = vpop.f32.mrf.mxu0
    %v1450 = vadd.f32 %v1401, %v1449
    %v1451 = vpop.f32.mrf.mxu0
    %v1452 = vadd.f32 %v1403, %v1451
    %1453 = vmatmul.bf16.gmra.mxu0 %v618
    %v1454 = vpop.f32.mrf.mxu0
    %v1455 = vadd.f32 %v1406, %v1454
    %v1456 = vpop.f32.mrf.mxu0
    %v1457 = vadd.f32 %v1408, %v1456
    %1458 = vmatmul.bf16.gmra.mxu0 %v622
    %v1459 = vpop.f32.mrf.mxu0
    %v1460 = vadd.f32 %v1411, %v1459
    %v1461 = vpop.f32.mrf.mxu0
    %v1462 = vadd.f32 %v1413, %v1461
    %1463 = vmatmul.bf16.gmra.mxu0 %v626
    %v1464 = vpop.f32.mrf.mxu0
    %v1465 = vadd.f32 %v1416, %v1464
    %v1466 = vpop.f32.mrf.mxu0
    %v1467 = vadd.f32 %v1418, %v1466
    %1468 = vmatmul.bf16.gmra.mxu0 %v630
    %v1469 = vpop.f32.mrf.mxu0
    %v1470 = vadd.f32 %v1421, %v1469
    %v1471 = vpop.f32.mrf.mxu0
    %v1472 = vadd.f32 %v1423, %v1471
    %1473 = vmatmul.bf16.gmra.mxu0 %v634
    %v1474 = vpop.f32.mrf.mxu0
    %v1475 = vadd.f32 %v1426, %v1474
    %v1476 = vpop.f32.mrf.mxu0
    %v1477 = vadd.f32 %v1428, %v1476
    %1478 = vmatmul.bf16.gmra.mxu0 %v638
    %v1479 = vpop.f32.mrf.mxu0
    %v1480 = vadd.f32 %v1431, %v1479
    %v1481 = vpop.f32.mrf.mxu0
    %v1482 = vadd.f32 %v1433, %v1481
    %1483 = vdwg.mxu0
    %1484 = vmatpush.bf16.msra.mxu0 %v1118
    %1485 = vmatpush.bf16.msra.mxu0 %v1115
    %1486 = vmatpush.bf16.msra.mxu0 %v1112
    %1487 = vmatpush.bf16.msra.mxu0 %v1109
    %1488 = vmatpush.bf16.msra.mxu0 %v1106
    %1489 = vmatpush.bf16.msra.mxu0 %v1103
    %1490 = vmatpush.bf16.msra.mxu0 %v1100
    %1491 = vmatpush.bf16.msra.mxu0 %v1097
    %1492 = vmatmul.bf16.gmra.mxu0 %v607
    %v1493 = vpop.f32.mrf.mxu0
    %v1494 = vadd.f32 %v771, %v1493
    %v1495 = vpop.f32.mrf.mxu0
    %v1496 = vadd.f32 %v771, %v1495
    %1497 = vmatmul.bf16.gmra.mxu0 %v611
    %v1498 = vpop.f32.mrf.mxu0
    %v1499 = vadd.f32 %v771, %v1498
    %v1500 = vpop.f32.mrf.mxu0
    %v1501 = vadd.f32 %v771, %v1500
    %1502 = vmatmul.bf16.gmra.mxu0 %v615
    %v1503 = vpop.f32.mrf.mxu0
    %v1504 = vadd.f32 %v771, %v1503
    %v1505 = vpop.f32.mrf.mxu0
    %v1506 = vadd.f32 %v771, %v1505
    %1507 = vmatmul.bf16.gmra.mxu0 %v619
    %v1508 = vpop.f32.mrf.mxu0
    %v1509 = vadd.f32 %v771, %v1508
    %v1510 = vpop.f32.mrf.mxu0
    %v1511 = vadd.f32 %v771, %v1510
    %1512 = vmatmul.bf16.gmra.mxu0 %v623
    %v1513 = vpop.f32.mrf.mxu0
    %v1514 = vadd.f32 %v771, %v1513
    %v1515 = vpop.f32.mrf.mxu0
    %v1516 = vadd.f32 %v771, %v1515
    %1517 = vmatmul.bf16.gmra.mxu0 %v627
    %v1518 = vpop.f32.mrf.mxu0
    %v1519 = vadd.f32 %v771, %v1518
    %v1520 = vpop.f32.mrf.mxu0
    %v1521 = vadd.f32 %v771, %v1520
    %1522 = vmatmul.bf16.gmra.mxu0 %v631
    %v1523 = vpop.f32.mrf.mxu0
    %v1524 = vadd.f32 %v771, %v1523
    %v1525 = vpop.f32.mrf.mxu0
    %v1526 = vadd.f32 %v771, %v1525
    %1527 = vmatmul.bf16.gmra.mxu0 %v635
    %v1528 = vpop.f32.mrf.mxu0
    %v1529 = vadd.f32 %v771, %v1528
    %v1530 = vpop.f32.mrf.mxu0
    %v1531 = vadd.f32 %v771, %v1530
    %1532 = vdwg.mxu0
    %1533 = vmatpush.bf16.msra.mxu0 %v1142
    %1534 = vmatpush.bf16.msra.mxu0 %v1139
    %1535 = vmatpush.bf16.msra.mxu0 %v1136
    %1536 = vmatpush.bf16.msra.mxu0 %v1133
    %1537 = vmatpush.bf16.msra.mxu0 %v1130
    %1538 = vmatpush.bf16.msra.mxu0 %v1127
    %1539 = vmatpush.bf16.msra.mxu0 %v1124
    %1540 = vmatpush.bf16.msra.mxu0 %v1121
    %1541 = vmatmul.bf16.gmra.mxu0 %v608
    %v1542 = vpop.f32.mrf.mxu0
    %v1543 = vadd.f32 %v1494, %v1542
    %v1544 = vpop.f32.mrf.mxu0
    %v1545 = vadd.f32 %v1496, %v1544
    %1546 = vmatmul.bf16.gmra.mxu0 %v612
    %v1547 = vpop.f32.mrf.mxu0
    %v1548 = vadd.f32 %v1499, %v1547
    %v1549 = vpop.f32.mrf.mxu0
    %v1550 = vadd.f32 %v1501, %v1549
    %1551 = vmatmul.bf16.gmra.mxu0 %v616
    %v1552 = vpop.f32.mrf.mxu0
    %v1553 = vadd.f32 %v1504, %v1552
    %v1554 = vpop.f32.mrf.mxu0
    %v1555 = vadd.f32 %v1506, %v1554
    %1556 = vmatmul.bf16.gmra.mxu0 %v620
    %v1557 = vpop.f32.mrf.mxu0
    %v1558 = vadd.f32 %v1509, %v1557
    %v1559 = vpop.f32.mrf.mxu0
    %v1560 = vadd.f32 %v1511, %v1559
    %1561 = vmatmul.bf16.gmra.mxu0 %v624
    %v1562 = vpop.f32.mrf.mxu0
    %v1563 = vadd.f32 %v1514, %v1562
    %v1564 = vpop.f32.mrf.mxu0
    %v1565 = vadd.f32 %v1516, %v1564
    %1566 = vmatmul.bf16.gmra.mxu0 %v628
    %v1567 = vpop.f32.mrf.mxu0
    %v1568 = vadd.f32 %v1519, %v1567
    %v1569 = vpop.f32.mrf.mxu0
    %v1570 = vadd.f32 %v1521, %v1569
    %1571 = vmatmul.bf16.gmra.mxu0 %v632
    %v1572 = vpop.f32.mrf.mxu0
    %v1573 = vadd.f32 %v1524, %v1572
    %v1574 = vpop.f32.mrf.mxu0
    %v1575 = vadd.f32 %v1526, %v1574
    %1576 = vmatmul.bf16.gmra.mxu0 %v636
    %v1577 = vpop.f32.mrf.mxu0
    %v1578 = vadd.f32 %v1529, %v1577
    %v1579 = vpop.f32.mrf.mxu0
    %v1580 = vadd.f32 %v1531, %v1579
    %1581 = vdwg.mxu0
    %1582 = vmatpush.bf16.msra.mxu0 %v1166
    %1583 = vmatpush.bf16.msra.mxu0 %v1163
    %1584 = vmatpush.bf16.msra.mxu0 %v1160
    %1585 = vmatpush.bf16.msra.mxu0 %v1157
    %1586 = vmatpush.bf16.msra.mxu0 %v1154
    %1587 = vmatpush.bf16.msra.mxu0 %v1151
    %1588 = vmatpush.bf16.msra.mxu0 %v1148
    %1589 = vmatpush.bf16.msra.mxu0 %v1145
    %1590 = vmatmul.bf16.gmra.mxu0 %v609
    %v1591 = vpop.f32.mrf.mxu0
    %v1592 = vadd.f32 %v1543, %v1591
    %v1593 = vpop.f32.mrf.mxu0
    %v1594 = vadd.f32 %v1545, %v1593
    %1595 = vmatmul.bf16.gmra.mxu0 %v613
    %v1596 = vpop.f32.mrf.mxu0
    %v1597 = vadd.f32 %v1548, %v1596
    %v1598 = vpop.f32.mrf.mxu0
    %v1599 = vadd.f32 %v1550, %v1598
    %1600 = vmatmul.bf16.gmra.mxu0 %v617
    %v1601 = vpop.f32.mrf.mxu0
    %v1602 = vadd.f32 %v1553, %v1601
    %v1603 = vpop.f32.mrf.mxu0
    %v1604 = vadd.f32 %v1555, %v1603
    %1605 = vmatmul.bf16.gmra.mxu0 %v621
    %v1606 = vpop.f32.mrf.mxu0
    %v1607 = vadd.f32 %v1558, %v1606
    %v1608 = vpop.f32.mrf.mxu0
    %v1609 = vadd.f32 %v1560, %v1608
    %1610 = vmatmul.bf16.gmra.mxu0 %v625
    %v1611 = vpop.f32.mrf.mxu0
    %v1612 = vadd.f32 %v1563, %v1611
    %v1613 = vpop.f32.mrf.mxu0
    %v1614 = vadd.f32 %v1565, %v1613
    %1615 = vmatmul.bf16.gmra.mxu0 %v629
    %v1616 = vpop.f32.mrf.mxu0
    %v1617 = vadd.f32 %v1568, %v1616
    %v1618 = vpop.f32.mrf.mxu0
    %v1619 = vadd.f32 %v1570, %v1618
    %1620 = vmatmul.bf16.gmra.mxu0 %v633
    %v1621 = vpop.f32.mrf.mxu0
    %v1622 = vadd.f32 %v1573, %v1621
    %v1623 = vpop.f32.mrf.mxu0
    %v1624 = vadd.f32 %v1575, %v1623
    %1625 = vmatmul.bf16.gmra.mxu0 %v637
    %v1626 = vpop.f32.mrf.mxu0
    %v1627 = vadd.f32 %v1578, %v1626
    %v1628 = vpop.f32.mrf.mxu0
    %v1629 = vadd.f32 %v1580, %v1628
    %1630 = vdwg.mxu0
    %1631 = vmatpush.bf16.msra.mxu0 %v1190
    %1632 = vmatpush.bf16.msra.mxu0 %v1187
    %1633 = vmatpush.bf16.msra.mxu0 %v1184
    %1634 = vmatpush.bf16.msra.mxu0 %v1181
    %1635 = vmatpush.bf16.msra.mxu0 %v1178
    %1636 = vmatpush.bf16.msra.mxu0 %v1175
    %1637 = vmatpush.bf16.msra.mxu0 %v1172
    %1638 = vmatpush.bf16.msra.mxu0 %v1169
    %1639 = vmatmul.bf16.gmra.mxu0 %v610
    %v1640 = vpop.f32.mrf.mxu0
    %v1641 = vadd.f32 %v1592, %v1640
    %v1642 = vpop.f32.mrf.mxu0
    %v1643 = vadd.f32 %v1594, %v1642
    %1644 = vmatmul.bf16.gmra.mxu0 %v614
    %v1645 = vpop.f32.mrf.mxu0
    %v1646 = vadd.f32 %v1597, %v1645
    %v1647 = vpop.f32.mrf.mxu0
    %v1648 = vadd.f32 %v1599, %v1647
    %1649 = vmatmul.bf16.gmra.mxu0 %v618
    %v1650 = vpop.f32.mrf.mxu0
    %v1651 = vadd.f32 %v1602, %v1650
    %v1652 = vpop.f32.mrf.mxu0
    %v1653 = vadd.f32 %v1604, %v1652
    %1654 = vmatmul.bf16.gmra.mxu0 %v622
    %v1655 = vpop.f32.mrf.mxu0
    %v1656 = vadd.f32 %v1607, %v1655
    %v1657 = vpop.f32.mrf.mxu0
    %v1658 = vadd.f32 %v1609, %v1657
    %1659 = vmatmul.bf16.gmra.mxu0 %v626
    %v1660 = vpop.f32.mrf.mxu0
    %v1661 = vadd.f32 %v1612, %v1660
    %v1662 = vpop.f32.mrf.mxu0
    %v1663 = vadd.f32 %v1614, %v1662
    %1664 = vmatmul.bf16.gmra.mxu0 %v630
    %v1665 = vpop.f32.mrf.mxu0
    %v1666 = vadd.f32 %v1617, %v1665
    %v1667 = vpop.f32.mrf.mxu0
    %v1668 = vadd.f32 %v1619, %v1667
    %1669 = vmatmul.bf16.gmra.mxu0 %v634
    %v1670 = vpop.f32.mrf.mxu0
    %v1671 = vadd.f32 %v1622, %v1670
    %v1672 = vpop.f32.mrf.mxu0
    %v1673 = vadd.f32 %v1624, %v1672
    %1674 = vmatmul.bf16.gmra.mxu0 %v638
    %v1675 = vpop.f32.mrf.mxu0
    %v1676 = vadd.f32 %v1627, %v1675
    %v1677 = vpop.f32.mrf.mxu0
    %v1678 = vadd.f32 %v1629, %v1677
    %1679 = vdwg.mxu0
    %1680 = vmatpush.bf16.msra.mxu0 %v1119
    %1681 = vmatpush.bf16.msra.mxu0 %v1116
    %1682 = vmatpush.bf16.msra.mxu0 %v1113
    %1683 = vmatpush.bf16.msra.mxu0 %v1110
    %1684 = vmatpush.bf16.msra.mxu0 %v1107
    %1685 = vmatpush.bf16.msra.mxu0 %v1104
    %1686 = vmatpush.bf16.msra.mxu0 %v1101
    %1687 = vmatpush.bf16.msra.mxu0 %v1098
    %1688 = vmatmul.bf16.gmra.mxu0 %v607
    %v1689 = vpop.f32.mrf.mxu0
    %v1690 = vadd.f32 %v772, %v1689
    %v1691 = vpop.f32.mrf.mxu0
    %v1692 = vadd.f32 %v772, %v1691
    %1693 = vmatmul.bf16.gmra.mxu0 %v611
    %v1694 = vpop.f32.mrf.mxu0
    %v1695 = vadd.f32 %v772, %v1694
    %v1696 = vpop.f32.mrf.mxu0
    %v1697 = vadd.f32 %v772, %v1696
    %1698 = vmatmul.bf16.gmra.mxu0 %v615
    %v1699 = vpop.f32.mrf.mxu0
    %v1700 = vadd.f32 %v772, %v1699
    %v1701 = vpop.f32.mrf.mxu0
    %v1702 = vadd.f32 %v772, %v1701
    %1703 = vmatmul.bf16.gmra.mxu0 %v619
    %v1704 = vpop.f32.mrf.mxu0
    %v1705 = vadd.f32 %v772, %v1704
    %v1706 = vpop.f32.mrf.mxu0
    %v1707 = vadd.f32 %v772, %v1706
    %1708 = vmatmul.bf16.gmra.mxu0 %v623
    %v1709 = vpop.f32.mrf.mxu0
    %v1710 = vadd.f32 %v772, %v1709
    %v1711 = vpop.f32.mrf.mxu0
    %v1712 = vadd.f32 %v772, %v1711
    %1713 = vmatmul.bf16.gmra.mxu0 %v627
    %v1714 = vpop.f32.mrf.mxu0
    %v1715 = vadd.f32 %v772, %v1714
    %v1716 = vpop.f32.mrf.mxu0
    %v1717 = vadd.f32 %v772, %v1716
    %1718 = vmatmul.bf16.gmra.mxu0 %v631
    %v1719 = vpop.f32.mrf.mxu0
    %v1720 = vadd.f32 %v772, %v1719
    %v1721 = vpop.f32.mrf.mxu0
    %v1722 = vadd.f32 %v772, %v1721
    %1723 = vmatmul.bf16.gmra.mxu0 %v635
    %v1724 = vpop.f32.mrf.mxu0
    %v1725 = vadd.f32 %v772, %v1724
    %v1726 = vpop.f32.mrf.mxu0
    %v1727 = vadd.f32 %v772, %v1726
    %1728 = vdwg.mxu0
    %1729 = vmatpush.bf16.msra.mxu0 %v1143
    %1730 = vmatpush.bf16.msra.mxu0 %v1140
    %1731 = vmatpush.bf16.msra.mxu0 %v1137
    %1732 = vmatpush.bf16.msra.mxu0 %v1134
    %1733 = vmatpush.bf16.msra.mxu0 %v1131
    %1734 = vmatpush.bf16.msra.mxu0 %v1128
    %1735 = vmatpush.bf16.msra.mxu0 %v1125
    %1736 = vmatpush.bf16.msra.mxu0 %v1122
    %1737 = vmatmul.bf16.gmra.mxu0 %v608
    %v1738 = vpop.f32.mrf.mxu0
    %v1739 = vadd.f32 %v1690, %v1738
    %v1740 = vpop.f32.mrf.mxu0
    %v1741 = vadd.f32 %v1692, %v1740
    %1742 = vmatmul.bf16.gmra.mxu0 %v612
    %v1743 = vpop.f32.mrf.mxu0
    %v1744 = vadd.f32 %v1695, %v1743
    %v1745 = vpop.f32.mrf.mxu0
    %v1746 = vadd.f32 %v1697, %v1745
    %1747 = vmatmul.bf16.gmra.mxu0 %v616
    %v1748 = vpop.f32.mrf.mxu0
    %v1749 = vadd.f32 %v1700, %v1748
    %v1750 = vpop.f32.mrf.mxu0
    %v1751 = vadd.f32 %v1702, %v1750
    %1752 = vmatmul.bf16.gmra.mxu0 %v620
    %v1753 = vpop.f32.mrf.mxu0
    %v1754 = vadd.f32 %v1705, %v1753
    %v1755 = vpop.f32.mrf.mxu0
    %v1756 = vadd.f32 %v1707, %v1755
    %1757 = vmatmul.bf16.gmra.mxu0 %v624
    %v1758 = vpop.f32.mrf.mxu0
    %v1759 = vadd.f32 %v1710, %v1758
    %v1760 = vpop.f32.mrf.mxu0
    %v1761 = vadd.f32 %v1712, %v1760
    %1762 = vmatmul.bf16.gmra.mxu0 %v628
    %v1763 = vpop.f32.mrf.mxu0
    %v1764 = vadd.f32 %v1715, %v1763
    %v1765 = vpop.f32.mrf.mxu0
    %v1766 = vadd.f32 %v1717, %v1765
    %1767 = vmatmul.bf16.gmra.mxu0 %v632
    %v1768 = vpop.f32.mrf.mxu0
    %v1769 = vadd.f32 %v1720, %v1768
    %v1770 = vpop.f32.mrf.mxu0
    %v1771 = vadd.f32 %v1722, %v1770
    %1772 = vmatmul.bf16.gmra.mxu0 %v636
    %v1773 = vpop.f32.mrf.mxu0
    %v1774 = vadd.f32 %v1725, %v1773
    %v1775 = vpop.f32.mrf.mxu0
    %v1776 = vadd.f32 %v1727, %v1775
    %1777 = vdwg.mxu0
    %1778 = vmatpush.bf16.msra.mxu0 %v1167
    %1779 = vmatpush.bf16.msra.mxu0 %v1164
    %1780 = vmatpush.bf16.msra.mxu0 %v1161
    %1781 = vmatpush.bf16.msra.mxu0 %v1158
    %1782 = vmatpush.bf16.msra.mxu0 %v1155
    %1783 = vmatpush.bf16.msra.mxu0 %v1152
    %1784 = vmatpush.bf16.msra.mxu0 %v1149
    %1785 = vmatpush.bf16.msra.mxu0 %v1146
    %1786 = vmatmul.bf16.gmra.mxu0 %v609
    %v1787 = vpop.f32.mrf.mxu0
    %v1788 = vadd.f32 %v1739, %v1787
    %v1789 = vpop.f32.mrf.mxu0
    %v1790 = vadd.f32 %v1741, %v1789
    %1791 = vmatmul.bf16.gmra.mxu0 %v613
    %v1792 = vpop.f32.mrf.mxu0
    %v1793 = vadd.f32 %v1744, %v1792
    %v1794 = vpop.f32.mrf.mxu0
    %v1795 = vadd.f32 %v1746, %v1794
    %1796 = vmatmul.bf16.gmra.mxu0 %v617
    %v1797 = vpop.f32.mrf.mxu0
    %v1798 = vadd.f32 %v1749, %v1797
    %v1799 = vpop.f32.mrf.mxu0
    %v1800 = vadd.f32 %v1751, %v1799
    %1801 = vmatmul.bf16.gmra.mxu0 %v621
    %v1802 = vpop.f32.mrf.mxu0
    %v1803 = vadd.f32 %v1754, %v1802
    %v1804 = vpop.f32.mrf.mxu0
    %v1805 = vadd.f32 %v1756, %v1804
    %1806 = vmatmul.bf16.gmra.mxu0 %v625
    %v1807 = vpop.f32.mrf.mxu0
    %v1808 = vadd.f32 %v1759, %v1807
    %v1809 = vpop.f32.mrf.mxu0
    %v1810 = vadd.f32 %v1761, %v1809
    %1811 = vmatmul.bf16.gmra.mxu0 %v629
    %v1812 = vpop.f32.mrf.mxu0
    %v1813 = vadd.f32 %v1764, %v1812
    %v1814 = vpop.f32.mrf.mxu0
    %v1815 = vadd.f32 %v1766, %v1814
    %1816 = vmatmul.bf16.gmra.mxu0 %v633
    %v1817 = vpop.f32.mrf.mxu0
    %v1818 = vadd.f32 %v1769, %v1817
    %v1819 = vpop.f32.mrf.mxu0
    %v1820 = vadd.f32 %v1771, %v1819
    %1821 = vmatmul.bf16.gmra.mxu0 %v637
    %v1822 = vpop.f32.mrf.mxu0
    %v1823 = vadd.f32 %v1774, %v1822
    %v1824 = vpop.f32.mrf.mxu0
    %v1825 = vadd.f32 %v1776, %v1824
    %1826 = vdwg.mxu0
    %1827 = vmatpush.bf16.msra.mxu0 %v1191
    %1828 = vmatpush.bf16.msra.mxu0 %v1188
    %1829 = vmatpush.bf16.msra.mxu0 %v1185
    %1830 = vmatpush.bf16.msra.mxu0 %v1182
    %1831 = vmatpush.bf16.msra.mxu0 %v1179
    %1832 = vmatpush.bf16.msra.mxu0 %v1176
    %1833 = vmatpush.bf16.msra.mxu0 %v1173
    %1834 = vmatpush.bf16.msra.mxu0 %v1170
    %1835 = vmatmul.bf16.gmra.mxu0 %v610
    %v1836 = vpop.f32.mrf.mxu0
    %v1837 = vadd.f32 %v1788, %v1836
    %v1838 = vpop.f32.mrf.mxu0
    %v1839 = vadd.f32 %v1790, %v1838
    %1840 = vmatmul.bf16.gmra.mxu0 %v614
    %v1841 = vpop.f32.mrf.mxu0
    %v1842 = vadd.f32 %v1793, %v1841
    %v1843 = vpop.f32.mrf.mxu0
    %v1844 = vadd.f32 %v1795, %v1843
    %1845 = vmatmul.bf16.gmra.mxu0 %v618
    %v1846 = vpop.f32.mrf.mxu0
    %v1847 = vadd.f32 %v1798, %v1846
    %v1848 = vpop.f32.mrf.mxu0
    %v1849 = vadd.f32 %v1800, %v1848
    %1850 = vmatmul.bf16.gmra.mxu0 %v622
    %v1851 = vpop.f32.mrf.mxu0
    %v1852 = vadd.f32 %v1803, %v1851
    %v1853 = vpop.f32.mrf.mxu0
    %v1854 = vadd.f32 %v1805, %v1853
    %1855 = vmatmul.bf16.gmra.mxu0 %v626
    %v1856 = vpop.f32.mrf.mxu0
    %v1857 = vadd.f32 %v1808, %v1856
    %v1858 = vpop.f32.mrf.mxu0
    %v1859 = vadd.f32 %v1810, %v1858
    %1860 = vmatmul.bf16.gmra.mxu0 %v630
    %v1861 = vpop.f32.mrf.mxu0
    %v1862 = vadd.f32 %v1813, %v1861
    %v1863 = vpop.f32.mrf.mxu0
    %v1864 = vadd.f32 %v1815, %v1863
    %1865 = vmatmul.bf16.gmra.mxu0 %v634
    %v1866 = vpop.f32.mrf.mxu0
    %v1867 = vadd.f32 %v1818, %v1866
    %v1868 = vpop.f32.mrf.mxu0
    %v1869 = vadd.f32 %v1820, %v1868
    %1870 = vmatmul.bf16.gmra.mxu0 %v638
    %v1871 = vpop.f32.mrf.mxu0
    %v1872 = vadd.f32 %v1823, %v1871
    %v1873 = vpop.f32.mrf.mxu0
    %v1874 = vadd.f32 %v1825, %v1873
    %1875 = vdwg.mxu0
    %v1876 = vmax.f32 %v1445, 0.0
    %v1877 = vmax.f32 %v1641, 0.0
    %v1878 = vmax.f32 %v1837, 0.0
    %v1879 = vmax.f32 %v1447, 0.0
    %v1880 = vmax.f32 %v1643, 0.0
    %v1881 = vmax.f32 %v1839, 0.0
    %v1882 = vmax.f32 %v1450, 0.0
    %v1883 = vmax.f32 %v1646, 0.0
    %v1884 = vmax.f32 %v1842, 0.0
    %v1885 = vmax.f32 %v1452, 0.0
    %v1886 = vmax.f32 %v1648, 0.0
    %v1887 = vmax.f32 %v1844, 0.0
    %v1888 = vmax.f32 %v1455, 0.0
    %v1889 = vmax.f32 %v1651, 0.0
    %v1890 = vmax.f32 %v1847, 0.0
    %v1891 = vmax.f32 %v1457, 0.0
    %v1892 = vmax.f32 %v1653, 0.0
    %v1893 = vmax.f32 %v1849, 0.0
    %v1894 = vmax.f32 %v1460, 0.0
    %v1895 = vmax.f32 %v1656, 0.0
    %v1896 = vmax.f32 %v1852, 0.0
    %v1897 = vmax.f32 %v1462, 0.0
    %v1898 = vmax.f32 %v1658, 0.0
    %v1899 = vmax.f32 %v1854, 0.0
    %v1900 = vmax.f32 %v1465, 0.0
    %v1901 = vmax.f32 %v1661, 0.0
    %v1902 = vmax.f32 %v1857, 0.0
    %v1903 = vmax.f32 %v1467, 0.0
    %v1904 = vmax.f32 %v1663, 0.0
    %v1905 = vmax.f32 %v1859, 0.0
    %v1906 = vmax.f32 %v1470, 0.0
    %v1907 = vmax.f32 %v1666, 0.0
    %v1908 = vmax.f32 %v1862, 0.0
    %v1909 = vmax.f32 %v1472, 0.0
    %v1910 = vmax.f32 %v1668, 0.0
    %v1911 = vmax.f32 %v1864, 0.0
    %v1912 = vmax.f32 %v1475, 0.0
    %v1913 = vmax.f32 %v1671, 0.0
    %v1914 = vmax.f32 %v1867, 0.0
    %v1915 = vmax.f32 %v1477, 0.0
    %v1916 = vmax.f32 %v1673, 0.0
    %v1917 = vmax.f32 %v1869, 0.0
    %v1918 = vmax.f32 %v1480, 0.0
    %v1919 = vmax.f32 %v1676, 0.0
    %v1920 = vmax.f32 %v1872, 0.0
    %v1921 = vmax.f32 %v1482, 0.0
    %v1922 = vmax.f32 %v1678, 0.0
    %v1923 = vmax.f32 %v1874, 0.0
    %v1924 = vpack.c.bf16 %v1879, %v1876
    %v1925 = vpack.c.bf16 %v1880, %v1877
    %v1926 = vpack.c.bf16 %v1881, %v1878
    %v1927 = vpack.c.bf16 %v1885, %v1882
    %v1928 = vpack.c.bf16 %v1886, %v1883
    %v1929 = vpack.c.bf16 %v1887, %v1884
    %v1930 = vpack.c.bf16 %v1891, %v1888
    %v1931 = vpack.c.bf16 %v1892, %v1889
    %v1932 = vpack.c.bf16 %v1893, %v1890
    %v1933 = vpack.c.bf16 %v1897, %v1894
    %v1934 = vpack.c.bf16 %v1898, %v1895
    %v1935 = vpack.c.bf16 %v1899, %v1896
    %v1936 = vpack.c.bf16 %v1903, %v1900
    %v1937 = vpack.c.bf16 %v1904, %v1901
    %v1938 = vpack.c.bf16 %v1905, %v1902
    %v1939 = vpack.c.bf16 %v1909, %v1906
    %v1940 = vpack.c.bf16 %v1910, %v1907
    %v1941 = vpack.c.bf16 %v1911, %v1908
    %v1942 = vpack.c.bf16 %v1915, %v1912
    %v1943 = vpack.c.bf16 %v1916, %v1913
    %v1944 = vpack.c.bf16 %v1917, %v1914
    %v1945 = vpack.c.bf16 %v1921, %v1918
    %v1946 = vpack.c.bf16 %v1922, %v1919
    %v1947 = vpack.c.bf16 %v1923, %v1920
    %v1948 = vld [vmem:[#allocation7 + $0x300] sm:$0xff]
    %v1949 = vld [vmem:[#allocation7 + $0x308] sm:$0xf]
    %v1950 = vld [vmem:[#allocation7 + $0x30c] sm:$0xff]
    %v1951 = vld [vmem:[#allocation7 + $0x314] sm:$0xf]
    %v1952 = vld [vmem:[#allocation7 + $0x318] sm:$0xff]
    %v1953 = vld [vmem:[#allocation7 + $0x320] sm:$0xf]
    %v1954 = vld [vmem:[#allocation7 + $0x324] sm:$0xff]
    %v1955 = vld [vmem:[#allocation7 + $0x32c] sm:$0xf]
    %v1956 = vld [vmem:[#allocation7 + $0x330] sm:$0xff]
    %v1957 = vld [vmem:[#allocation7 + $0x338] sm:$0xf]
    %v1958 = vld [vmem:[#allocation7 + $0x33c] sm:$0xff]
    %v1959 = vld [vmem:[#allocation7 + $0x344] sm:$0xf]
    %v1960 = vld [vmem:[#allocation7 + $0x348] sm:$0xff]
    %v1961 = vld [vmem:[#allocation7 + $0x350] sm:$0xf]
    %v1962 = vld [vmem:[#allocation7 + $0x354] sm:$0xff]
    %v1963 = vld [vmem:[#allocation7 + $0x35c] sm:$0xf]
    %v1964 = vld [vmem:[#allocation7 + $0x360] sm:$0xff]
    %v1965 = vld [vmem:[#allocation7 + $0x368] sm:$0xf]
    %v1966 = vld [vmem:[#allocation7 + $0x36c] sm:$0xff]
    %v1967 = vld [vmem:[#allocation7 + $0x374] sm:$0xf]
    %v1968 = vld [vmem:[#allocation7 + $0x378] sm:$0xff]
    %v1969 = vld [vmem:[#allocation7 + $0x380] sm:$0xf]
    %v1970 = vld [vmem:[#allocation7 + $0x384] sm:$0xff]
    %v1971 = vld [vmem:[#allocation7 + $0x38c] sm:$0xf]
    %v1972 = vld [vmem:[#allocation7 + $0x390] sm:$0xff]
    %v1973 = vld [vmem:[#allocation7 + $0x398] sm:$0xf]
    %v1974 = vld [vmem:[#allocation7 + $0x39c] sm:$0xff]
    %v1975 = vld [vmem:[#allocation7 + $0x3a4] sm:$0xf]
    %v1976 = vld [vmem:[#allocation7 + $0x3a8] sm:$0xff]
    %v1977 = vld [vmem:[#allocation7 + $0x3b0] sm:$0xf]
    %v1978 = vld [vmem:[#allocation7 + $0x3b4] sm:$0xff]
    %v1979 = vld [vmem:[#allocation7 + $0x3bc] sm:$0xf]
    %v1980 = vld [vmem:[#allocation7 + $0x3c0] sm:$0xff]
    %v1981 = vld [vmem:[#allocation7 + $0x3c8] sm:$0xf]
    %v1982 = vld [vmem:[#allocation7 + $0x3cc] sm:$0xff]
    %v1983 = vld [vmem:[#allocation7 + $0x3d4] sm:$0xf]
    %v1984 = vld [vmem:[#allocation7 + $0x3d8] sm:$0xff]
    %v1985 = vld [vmem:[#allocation7 + $0x3e0] sm:$0xf]
    %v1986 = vld [vmem:[#allocation7 + $0x3e4] sm:$0xff]
    %v1987 = vld [vmem:[#allocation7 + $0x3ec] sm:$0xf]
    %v1988 = vld [vmem:[#allocation7 + $0x3f0] sm:$0xff]
    %v1989 = vld [vmem:[#allocation7 + $0x3f8] sm:$0xf]
    %v1990 = vld [vmem:[#allocation7 + $0x3fc] sm:$0xff]
    %v1991 = vld [vmem:[#allocation7 + $0x404] sm:$0xf]
    %v1992 = vld [vmem:[#allocation7 + $0x408] sm:$0xff]
    %v1993 = vld [vmem:[#allocation7 + $0x410] sm:$0xf]
    %v1994 = vld [vmem:[#allocation7 + $0x414] sm:$0xff]
    %v1995 = vld [vmem:[#allocation7 + $0x41c] sm:$0xf]
    %v1996 = vld [vmem:[#allocation7 + $0x420] sm:$0xff]
    %v1997 = vld [vmem:[#allocation7 + $0x428] sm:$0xf]
    %v1998 = vld [vmem:[#allocation7 + $0x42c] sm:$0xff]
    %v1999 = vld [vmem:[#allocation7 + $0x434] sm:$0xf]
    %v2000 = vld [vmem:[#allocation7 + $0x438] sm:$0xff]
    %v2001 = vld [vmem:[#allocation7 + $0x440] sm:$0xf]
    %v2002 = vld [vmem:[#allocation7 + $0x444] sm:$0xff]
    %v2003 = vld [vmem:[#allocation7 + $0x44c] sm:$0xf]
    %v2004 = vld [vmem:[#allocation7 + $0x450] sm:$0xff]
    %v2005 = vld [vmem:[#allocation7 + $0x458] sm:$0xf]
    %v2006 = vld [vmem:[#allocation7 + $0x45c] sm:$0xff]
    %v2007 = vld [vmem:[#allocation7 + $0x464] sm:$0xf]
    %v2008 = vld [vmem:[#allocation7 + $0x468] sm:$0xff]
    %v2009 = vld [vmem:[#allocation7 + $0x470] sm:$0xf]
    %v2010 = vld [vmem:[#allocation7 + $0x474] sm:$0xff]
    %v2011 = vld [vmem:[#allocation7 + $0x47c] sm:$0xf]
    %v2012 = vld [vmem:[#allocation7 + $0x480] sm:$0xff]
    %v2013 = vld [vmem:[#allocation7 + $0x488] sm:$0xf]
    %v2014 = vld [vmem:[#allocation7 + $0x48c] sm:$0xff]
    %v2015 = vld [vmem:[#allocation7 + $0x494] sm:$0xf]
    %v2016 = vld [vmem:[#allocation7 + $0x498] sm:$0xff]
    %v2017 = vld [vmem:[#allocation7 + $0x4a0] sm:$0xf]
    %v2018 = vld [vmem:[#allocation7 + $0x4a4] sm:$0xff]
    %v2019 = vld [vmem:[#allocation7 + $0x4ac] sm:$0xf]
    %v2020 = vld [vmem:[#allocation7 + $0x4b0] sm:$0xff]
    %v2021 = vld [vmem:[#allocation7 + $0x4b8] sm:$0xf]
    %v2022 = vld [vmem:[#allocation7 + $0x4bc] sm:$0xff]
    %v2023 = vld [vmem:[#allocation7 + $0x4c4] sm:$0xf]
    %v2024 = vld [vmem:[#allocation7 + $0x4c8] sm:$0xff]
    %v2025 = vld [vmem:[#allocation7 + $0x4d0] sm:$0xf]
    %v2026 = vld [vmem:[#allocation7 + $0x4d4] sm:$0xff]
    %v2027 = vld [vmem:[#allocation7 + $0x4dc] sm:$0xf]
    %v2028 = vld [vmem:[#allocation7 + $0x4e0] sm:$0xff]
    %v2029 = vld [vmem:[#allocation7 + $0x4e8] sm:$0xf]
    %v2030 = vld [vmem:[#allocation7 + $0x4ec] sm:$0xff]
    %v2031 = vld [vmem:[#allocation7 + $0x4f4] sm:$0xf]
    %v2032 = vld [vmem:[#allocation7 + $0x4f8] sm:$0xff]
    %v2033 = vld [vmem:[#allocation7 + $0x500] sm:$0xf]
    %v2034 = vld [vmem:[#allocation7 + $0x504] sm:$0xff]
    %v2035 = vld [vmem:[#allocation7 + $0x50c] sm:$0xf]
    %v2036 = vld [vmem:[#allocation7 + $0x510] sm:$0xff]
    %v2037 = vld [vmem:[#allocation7 + $0x518] sm:$0xf]
    %v2038 = vld [vmem:[#allocation7 + $0x51c] sm:$0xff]
    %v2039 = vld [vmem:[#allocation7 + $0x524] sm:$0xf]
    %v2040 = vld [vmem:[#allocation7 + $0x528] sm:$0xff]
    %v2041 = vld [vmem:[#allocation7 + $0x530] sm:$0xf]
    %v2042 = vld [vmem:[#allocation7 + $0x534] sm:$0xff]
    %v2043 = vld [vmem:[#allocation7 + $0x53c] sm:$0xf]
    %s2044 = scalar_lea.vmem [#allocation8], 64
    %v2045 = vld [vmem:[%s2044] ss:$8 sm:$0x7]
    %v2047 = vperm.slane %v2045, 0
    %v2048 = vperm.slane %v2045, 1
    %v2049 = vperm.slane %v2045, 2
    %v2149 = vunpack.c.l.b16 %v1948
    %v2150 = vunpack.c.h.b16 %v1948
    %v2151 = vunpack.c.l.b16 %v1949
    %v2152 = vunpack.c.l.b16 %v1950
    %v2153 = vunpack.c.h.b16 %v1950
    %v2154 = vunpack.c.l.b16 %v1951
    %v2155 = vunpack.c.l.b16 %v1952
    %v2156 = vunpack.c.h.b16 %v1952
    %v2157 = vunpack.c.l.b16 %v1953
    %v2158 = vunpack.c.l.b16 %v1954
    %v2159 = vunpack.c.h.b16 %v1954
    %v2160 = vunpack.c.l.b16 %v1955
    %v2161 = vunpack.c.l.b16 %v1956
    %v2162 = vunpack.c.h.b16 %v1956
    %v2163 = vunpack.c.l.b16 %v1957
    %v2164 = vunpack.c.l.b16 %v1958
    %v2165 = vunpack.c.h.b16 %v1958
    %v2166 = vunpack.c.l.b16 %v1959
    %v2167 = vunpack.c.l.b16 %v1960
    %v2168 = vunpack.c.h.b16 %v1960
    %v2169 = vunpack.c.l.b16 %v1961
    %v2170 = vunpack.c.l.b16 %v1962
    %v2171 = vunpack.c.h.b16 %v1962
    %v2172 = vunpack.c.l.b16 %v1963
    %v2173 = vunpack.c.l.b16 %v1964
    %v2174 = vunpack.c.h.b16 %v1964
    %v2175 = vunpack.c.l.b16 %v1965
    %v2176 = vunpack.c.l.b16 %v1966
    %v2177 = vunpack.c.h.b16 %v1966
    %v2178 = vunpack.c.l.b16 %v1967
    %v2179 = vunpack.c.l.b16 %v1968
    %v2180 = vunpack.c.h.b16 %v1968
    %v2181 = vunpack.c.l.b16 %v1969
    %v2182 = vunpack.c.l.b16 %v1970
    %v2183 = vunpack.c.h.b16 %v1970
    %v2184 = vunpack.c.l.b16 %v1971
    %v2185 = vunpack.c.l.b16 %v1972
    %v2186 = vunpack.c.h.b16 %v1972
    %v2187 = vunpack.c.l.b16 %v1973
    %v2188 = vunpack.c.l.b16 %v1974
    %v2189 = vunpack.c.h.b16 %v1974
    %v2190 = vunpack.c.l.b16 %v1975
    %v2191 = vunpack.c.l.b16 %v1976
    %v2192 = vunpack.c.h.b16 %v1976
    %v2193 = vunpack.c.l.b16 %v1977
    %v2194 = vunpack.c.l.b16 %v1978
    %v2195 = vunpack.c.h.b16 %v1978
    %v2196 = vunpack.c.l.b16 %v1979
    %v2197 = vunpack.c.l.b16 %v1980
    %v2198 = vunpack.c.h.b16 %v1980
    %v2199 = vunpack.c.l.b16 %v1981
    %v2200 = vunpack.c.l.b16 %v1982
    %v2201 = vunpack.c.h.b16 %v1982
    %v2202 = vunpack.c.l.b16 %v1983
    %v2203 = vunpack.c.l.b16 %v1984
    %v2204 = vunpack.c.h.b16 %v1984
    %v2205 = vunpack.c.l.b16 %v1985
    %v2206 = vunpack.c.l.b16 %v1986
    %v2207 = vunpack.c.h.b16 %v1986
    %v2208 = vunpack.c.l.b16 %v1987
    %v2209 = vunpack.c.l.b16 %v1988
    %v2210 = vunpack.c.h.b16 %v1988
    %v2211 = vunpack.c.l.b16 %v1989
    %v2212 = vunpack.c.l.b16 %v1990
    %v2213 = vunpack.c.h.b16 %v1990
    %v2214 = vunpack.c.l.b16 %v1991
    %v2215 = vunpack.c.l.b16 %v1992
    %v2216 = vunpack.c.h.b16 %v1992
    %v2217 = vunpack.c.l.b16 %v1993
    %v2218 = vunpack.c.l.b16 %v1994
    %v2219 = vunpack.c.h.b16 %v1994
    %v2220 = vunpack.c.l.b16 %v1995
    %v2221 = vunpack.c.l.b16 %v1996
    %v2222 = vunpack.c.h.b16 %v1996
    %v2223 = vunpack.c.l.b16 %v1997
    %v2224 = vunpack.c.l.b16 %v1998
    %v2225 = vunpack.c.h.b16 %v1998
    %v2226 = vunpack.c.l.b16 %v1999
    %v2227 = vunpack.c.l.b16 %v2000
    %v2228 = vunpack.c.h.b16 %v2000
    %v2229 = vunpack.c.l.b16 %v2001
    %v2230 = vunpack.c.l.b16 %v2002
    %v2231 = vunpack.c.h.b16 %v2002
    %v2232 = vunpack.c.l.b16 %v2003
    %v2233 = vunpack.c.l.b16 %v2004
    %v2234 = vunpack.c.h.b16 %v2004
    %v2235 = vunpack.c.l.b16 %v2005
    %v2236 = vunpack.c.l.b16 %v2006
    %v2237 = vunpack.c.h.b16 %v2006
    %v2238 = vunpack.c.l.b16 %v2007
    %v2239 = vunpack.c.l.b16 %v2008
    %v2240 = vunpack.c.h.b16 %v2008
    %v2241 = vunpack.c.l.b16 %v2009
    %v2242 = vunpack.c.l.b16 %v2010
    %v2243 = vunpack.c.h.b16 %v2010
    %v2244 = vunpack.c.l.b16 %v2011
    %v2245 = vunpack.c.l.b16 %v2012
    %v2246 = vunpack.c.h.b16 %v2012
    %v2247 = vunpack.c.l.b16 %v2013
    %v2248 = vunpack.c.l.b16 %v2014
    %v2249 = vunpack.c.h.b16 %v2014
    %v2250 = vunpack.c.l.b16 %v2015
    %v2251 = vunpack.c.l.b16 %v2016
    %v2252 = vunpack.c.h.b16 %v2016
    %v2253 = vunpack.c.l.b16 %v2017
    %v2254 = vunpack.c.l.b16 %v2018
    %v2255 = vunpack.c.h.b16 %v2018
    %v2256 = vunpack.c.l.b16 %v2019
    %v2257 = vunpack.c.l.b16 %v2020
    %v2258 = vunpack.c.h.b16 %v2020
    %v2259 = vunpack.c.l.b16 %v2021
    %v2260 = vunpack.c.l.b16 %v2022
    %v2261 = vunpack.c.h.b16 %v2022
    %v2262 = vunpack.c.l.b16 %v2023
    %v2263 = vunpack.c.l.b16 %v2024
    %v2264 = vunpack.c.h.b16 %v2024
    %v2265 = vunpack.c.l.b16 %v2025
    %v2266 = vunpack.c.l.b16 %v2026
    %v2267 = vunpack.c.h.b16 %v2026
    %v2268 = vunpack.c.l.b16 %v2027
    %v2269 = vunpack.c.l.b16 %v2028
    %v2270 = vunpack.c.h.b16 %v2028
    %v2271 = vunpack.c.l.b16 %v2029
    %v2272 = vunpack.c.l.b16 %v2030
    %v2273 = vunpack.c.h.b16 %v2030
    %v2274 = vunpack.c.l.b16 %v2031
    %v2275 = vunpack.c.l.b16 %v2032
    %v2276 = vunpack.c.h.b16 %v2032
    %v2277 = vunpack.c.l.b16 %v2033
    %v2278 = vunpack.c.l.b16 %v2034
    %v2279 = vunpack.c.h.b16 %v2034
    %v2280 = vunpack.c.l.b16 %v2035
    %v2281 = vunpack.c.l.b16 %v2036
    %v2282 = vunpack.c.h.b16 %v2036
    %v2283 = vunpack.c.l.b16 %v2037
    %v2284 = vunpack.c.l.b16 %v2038
    %v2285 = vunpack.c.h.b16 %v2038
    %v2286 = vunpack.c.l.b16 %v2039
    %v2287 = vunpack.c.l.b16 %v2040
    %v2288 = vunpack.c.h.b16 %v2040
    %v2289 = vunpack.c.l.b16 %v2041
    %v2290 = vunpack.c.l.b16 %v2042
    %v2291 = vunpack.c.h.b16 %v2042
    %v2292 = vunpack.c.l.b16 %v2043
    %v2293 = vpack.c.b16 %v2152, %v2149
    %v2294 = vpack.c.b16 %v2153, %v2150
    %v2295 = vpack.c.b16 %v2154, %v2151
    %v2296 = vpack.c.b16 %v2158, %v2155
    %v2297 = vpack.c.b16 %v2159, %v2156
    %v2298 = vpack.c.b16 %v2160, %v2157
    %v2299 = vpack.c.b16 %v2164, %v2161
    %v2300 = vpack.c.b16 %v2165, %v2162
    %v2301 = vpack.c.b16 %v2166, %v2163
    %v2302 = vpack.c.b16 %v2170, %v2167
    %v2303 = vpack.c.b16 %v2171, %v2168
    %v2304 = vpack.c.b16 %v2172, %v2169
    %v2305 = vpack.c.b16 %v2176, %v2173
    %v2306 = vpack.c.b16 %v2177, %v2174
    %v2307 = vpack.c.b16 %v2178, %v2175
    %v2308 = vpack.c.b16 %v2182, %v2179
    %v2309 = vpack.c.b16 %v2183, %v2180
    %v2310 = vpack.c.b16 %v2184, %v2181
    %v2311 = vpack.c.b16 %v2188, %v2185
    %v2312 = vpack.c.b16 %v2189, %v2186
    %v2313 = vpack.c.b16 %v2190, %v2187
    %v2314 = vpack.c.b16 %v2194, %v2191
    %v2315 = vpack.c.b16 %v2195, %v2192
    %v2316 = vpack.c.b16 %v2196, %v2193
    %v2317 = vpack.c.b16 %v2200, %v2197
    %v2318 = vpack.c.b16 %v2201, %v2198
    %v2319 = vpack.c.b16 %v2202, %v2199
    %v2320 = vpack.c.b16 %v2206, %v2203
    %v2321 = vpack.c.b16 %v2207, %v2204
    %v2322 = vpack.c.b16 %v2208, %v2205
    %v2323 = vpack.c.b16 %v2212, %v2209
    %v2324 = vpack.c.b16 %v2213, %v2210
    %v2325 = vpack.c.b16 %v2214, %v2211
    %v2326 = vpack.c.b16 %v2218, %v2215
    %v2327 = vpack.c.b16 %v2219, %v2216
    %v2328 = vpack.c.b16 %v2220, %v2217
    %v2329 = vpack.c.b16 %v2224, %v2221
    %v2330 = vpack.c.b16 %v2225, %v2222
    %v2331 = vpack.c.b16 %v2226, %v2223
    %v2332 = vpack.c.b16 %v2230, %v2227
    %v2333 = vpack.c.b16 %v2231, %v2228
    %v2334 = vpack.c.b16 %v2232, %v2229
    %v2335 = vpack.c.b16 %v2236, %v2233
    %v2336 = vpack.c.b16 %v2237, %v2234
    %v2337 = vpack.c.b16 %v2238, %v2235
    %v2338 = vpack.c.b16 %v2242, %v2239
    %v2339 = vpack.c.b16 %v2243, %v2240
    %v2340 = vpack.c.b16 %v2244, %v2241
    %v2341 = vpack.c.b16 %v2248, %v2245
    %v2342 = vpack.c.b16 %v2249, %v2246
    %v2343 = vpack.c.b16 %v2250, %v2247
    %v2344 = vpack.c.b16 %v2254, %v2251
    %v2345 = vpack.c.b16 %v2255, %v2252
    %v2346 = vpack.c.b16 %v2256, %v2253
    %v2347 = vpack.c.b16 %v2260, %v2257
    %v2348 = vpack.c.b16 %v2261, %v2258
    %v2349 = vpack.c.b16 %v2262, %v2259
    %v2350 = vpack.c.b16 %v2266, %v2263
    %v2351 = vpack.c.b16 %v2267, %v2264
    %v2352 = vpack.c.b16 %v2268, %v2265
    %v2353 = vpack.c.b16 %v2272, %v2269
    %v2354 = vpack.c.b16 %v2273, %v2270
    %v2355 = vpack.c.b16 %v2274, %v2271
    %v2356 = vpack.c.b16 %v2278, %v2275
    %v2357 = vpack.c.b16 %v2279, %v2276
    %v2358 = vpack.c.b16 %v2280, %v2277
    %v2359 = vpack.c.b16 %v2284, %v2281
    %v2360 = vpack.c.b16 %v2285, %v2282
    %v2361 = vpack.c.b16 %v2286, %v2283
    %v2362 = vpack.c.b16 %v2290, %v2287
    %v2363 = vpack.c.b16 %v2291, %v2288
    %v2364 = vpack.c.b16 %v2292, %v2289
    %2437 = vmatpush.bf16.msra.mxu0 %v2314
    %2438 = vmatpush.bf16.msra.mxu0 %v2311
    %2439 = vmatpush.bf16.msra.mxu0 %v2308
    %2440 = vmatpush.bf16.msra.mxu0 %v2305
    %2441 = vmatpush.bf16.msra.mxu0 %v2302
    %2442 = vmatpush.bf16.msra.mxu0 %v2299
    %2443 = vmatpush.bf16.msra.mxu0 %v2296
    %2444 = vmatpush.bf16.msra.mxu0 %v2293
    %2445 = vmatmul.bf16.gmra.mxu0 %v1924
    %v2446 = vpop.f32.mrf.mxu0
    %v2447 = vadd.f32 %v2047, %v2446
    %v2448 = vpop.f32.mrf.mxu0
    %v2449 = vadd.f32 %v2047, %v2448
    %2450 = vmatmul.bf16.gmra.mxu0 %v1927
    %v2451 = vpop.f32.mrf.mxu0
    %v2452 = vadd.f32 %v2047, %v2451
    %v2453 = vpop.f32.mrf.mxu0
    %v2454 = vadd.f32 %v2047, %v2453
    %2455 = vmatmul.bf16.gmra.mxu0 %v1930
    %v2456 = vpop.f32.mrf.mxu0
    %v2457 = vadd.f32 %v2047, %v2456
    %v2458 = vpop.f32.mrf.mxu0
    %v2459 = vadd.f32 %v2047, %v2458
    %2460 = vmatmul.bf16.gmra.mxu0 %v1933
    %v2461 = vpop.f32.mrf.mxu0
    %v2462 = vadd.f32 %v2047, %v2461
    %v2463 = vpop.f32.mrf.mxu0
    %v2464 = vadd.f32 %v2047, %v2463
    %2465 = vmatmul.bf16.gmra.mxu0 %v1936
    %v2466 = vpop.f32.mrf.mxu0
    %v2467 = vadd.f32 %v2047, %v2466
    %v2468 = vpop.f32.mrf.mxu0
    %v2469 = vadd.f32 %v2047, %v2468
    %2470 = vmatmul.bf16.gmra.mxu0 %v1939
    %v2471 = vpop.f32.mrf.mxu0
    %v2472 = vadd.f32 %v2047, %v2471
    %v2473 = vpop.f32.mrf.mxu0
    %v2474 = vadd.f32 %v2047, %v2473
    %2475 = vmatmul.bf16.gmra.mxu0 %v1942
    %v2476 = vpop.f32.mrf.mxu0
    %v2477 = vadd.f32 %v2047, %v2476
    %v2478 = vpop.f32.mrf.mxu0
    %v2479 = vadd.f32 %v2047, %v2478
    %2480 = vmatmul.bf16.gmra.mxu0 %v1945
    %v2481 = vpop.f32.mrf.mxu0
    %v2482 = vadd.f32 %v2047, %v2481
    %v2483 = vpop.f32.mrf.mxu0
    %v2484 = vadd.f32 %v2047, %v2483
    %2485 = vdwg.mxu0
    %2486 = vmatpush.bf16.msra.mxu0 %v2338
    %2487 = vmatpush.bf16.msra.mxu0 %v2335
    %2488 = vmatpush.bf16.msra.mxu0 %v2332
    %2489 = vmatpush.bf16.msra.mxu0 %v2329
    %2490 = vmatpush.bf16.msra.mxu0 %v2326
    %2491 = vmatpush.bf16.msra.mxu0 %v2323
    %2492 = vmatpush.bf16.msra.mxu0 %v2320
    %2493 = vmatpush.bf16.msra.mxu0 %v2317
    %2494 = vmatmul.bf16.gmra.mxu0 %v1925
    %v2495 = vpop.f32.mrf.mxu0
    %v2496 = vadd.f32 %v2447, %v2495
    %v2497 = vpop.f32.mrf.mxu0
    %v2498 = vadd.f32 %v2449, %v2497
    %2499 = vmatmul.bf16.gmra.mxu0 %v1928
    %v2500 = vpop.f32.mrf.mxu0
    %v2501 = vadd.f32 %v2452, %v2500
    %v2502 = vpop.f32.mrf.mxu0
    %v2503 = vadd.f32 %v2454, %v2502
    %2504 = vmatmul.bf16.gmra.mxu0 %v1931
    %v2505 = vpop.f32.mrf.mxu0
    %v2506 = vadd.f32 %v2457, %v2505
    %v2507 = vpop.f32.mrf.mxu0
    %v2508 = vadd.f32 %v2459, %v2507
    %2509 = vmatmul.bf16.gmra.mxu0 %v1934
    %v2510 = vpop.f32.mrf.mxu0
    %v2511 = vadd.f32 %v2462, %v2510
    %v2512 = vpop.f32.mrf.mxu0
    %v2513 = vadd.f32 %v2464, %v2512
    %2514 = vmatmul.bf16.gmra.mxu0 %v1937
    %v2515 = vpop.f32.mrf.mxu0
    %v2516 = vadd.f32 %v2467, %v2515
    %v2517 = vpop.f32.mrf.mxu0
    %v2518 = vadd.f32 %v2469, %v2517
    %2519 = vmatmul.bf16.gmra.mxu0 %v1940
    %v2520 = vpop.f32.mrf.mxu0
    %v2521 = vadd.f32 %v2472, %v2520
    %v2522 = vpop.f32.mrf.mxu0
    %v2523 = vadd.f32 %v2474, %v2522
    %2524 = vmatmul.bf16.gmra.mxu0 %v1943
    %v2525 = vpop.f32.mrf.mxu0
    %v2526 = vadd.f32 %v2477, %v2525
    %v2527 = vpop.f32.mrf.mxu0
    %v2528 = vadd.f32 %v2479, %v2527
    %2529 = vmatmul.bf16.gmra.mxu0 %v1946
    %v2530 = vpop.f32.mrf.mxu0
    %v2531 = vadd.f32 %v2482, %v2530
    %v2532 = vpop.f32.mrf.mxu0
    %v2533 = vadd.f32 %v2484, %v2532
    %2534 = vdwg.mxu0
    %2535 = vmatpush.bf16.msra.mxu0 %v2362
    %2536 = vmatpush.bf16.msra.mxu0 %v2359
    %2537 = vmatpush.bf16.msra.mxu0 %v2356
    %2538 = vmatpush.bf16.msra.mxu0 %v2353
    %2539 = vmatpush.bf16.msra.mxu0 %v2350
    %2540 = vmatpush.bf16.msra.mxu0 %v2347
    %2541 = vmatpush.bf16.msra.mxu0 %v2344
    %2542 = vmatpush.bf16.msra.mxu0 %v2341
    %2543 = vmatmul.bf16.gmra.mxu0 %v1926
    %v2544 = vpop.f32.mrf.mxu0
    %v2545 = vadd.f32 %v2496, %v2544
    %v2546 = vpop.f32.mrf.mxu0
    %v2547 = vadd.f32 %v2498, %v2546
    %2548 = vmatmul.bf16.gmra.mxu0 %v1929
    %v2549 = vpop.f32.mrf.mxu0
    %v2550 = vadd.f32 %v2501, %v2549
    %v2551 = vpop.f32.mrf.mxu0
    %v2552 = vadd.f32 %v2503, %v2551
    %2553 = vmatmul.bf16.gmra.mxu0 %v1932
    %v2554 = vpop.f32.mrf.mxu0
    %v2555 = vadd.f32 %v2506, %v2554
    %v2556 = vpop.f32.mrf.mxu0
    %v2557 = vadd.f32 %v2508, %v2556
    %2558 = vmatmul.bf16.gmra.mxu0 %v1935
    %v2559 = vpop.f32.mrf.mxu0
    %v2560 = vadd.f32 %v2511, %v2559
    %v2561 = vpop.f32.mrf.mxu0
    %v2562 = vadd.f32 %v2513, %v2561
    %2563 = vmatmul.bf16.gmra.mxu0 %v1938
    %v2564 = vpop.f32.mrf.mxu0
    %v2565 = vadd.f32 %v2516, %v2564
    %v2566 = vpop.f32.mrf.mxu0
    %v2567 = vadd.f32 %v2518, %v2566
    %2568 = vmatmul.bf16.gmra.mxu0 %v1941
    %v2569 = vpop.f32.mrf.mxu0
    %v2570 = vadd.f32 %v2521, %v2569
    %v2571 = vpop.f32.mrf.mxu0
    %v2572 = vadd.f32 %v2523, %v2571
    %2573 = vmatmul.bf16.gmra.mxu0 %v1944
    %v2574 = vpop.f32.mrf.mxu0
    %v2575 = vadd.f32 %v2526, %v2574
    %v2576 = vpop.f32.mrf.mxu0
    %v2577 = vadd.f32 %v2528, %v2576
    %2578 = vmatmul.bf16.gmra.mxu0 %v1947
    %v2579 = vpop.f32.mrf.mxu0
    %v2580 = vadd.f32 %v2531, %v2579
    %v2581 = vpop.f32.mrf.mxu0
    %v2582 = vadd.f32 %v2533, %v2581
    %2583 = vdwg.mxu0
    %2584 = vmatpush.bf16.msra.mxu0 %v2315
    %2585 = vmatpush.bf16.msra.mxu0 %v2312
    %2586 = vmatpush.bf16.msra.mxu0 %v2309
    %2587 = vmatpush.bf16.msra.mxu0 %v2306
    %2588 = vmatpush.bf16.msra.mxu0 %v2303
    %2589 = vmatpush.bf16.msra.mxu0 %v2300
    %2590 = vmatpush.bf16.msra.mxu0 %v2297
    %2591 = vmatpush.bf16.msra.mxu0 %v2294
    %2592 = vmatmul.bf16.gmra.mxu0 %v1924
    %v2593 = vpop.f32.mrf.mxu0
    %v2594 = vadd.f32 %v2048, %v2593
    %v2595 = vpop.f32.mrf.mxu0
    %v2596 = vadd.f32 %v2048, %v2595
    %2597 = vmatmul.bf16.gmra.mxu0 %v1927
    %v2598 = vpop.f32.mrf.mxu0
    %v2599 = vadd.f32 %v2048, %v2598
    %v2600 = vpop.f32.mrf.mxu0
    %v2601 = vadd.f32 %v2048, %v2600
    %2602 = vmatmul.bf16.gmra.mxu0 %v1930
    %v2603 = vpop.f32.mrf.mxu0
    %v2604 = vadd.f32 %v2048, %v2603
    %v2605 = vpop.f32.mrf.mxu0
    %v2606 = vadd.f32 %v2048, %v2605
    %2607 = vmatmul.bf16.gmra.mxu0 %v1933
    %v2608 = vpop.f32.mrf.mxu0
    %v2609 = vadd.f32 %v2048, %v2608
    %v2610 = vpop.f32.mrf.mxu0
    %v2611 = vadd.f32 %v2048, %v2610
    %2612 = vmatmul.bf16.gmra.mxu0 %v1936
    %v2613 = vpop.f32.mrf.mxu0
    %v2614 = vadd.f32 %v2048, %v2613
    %v2615 = vpop.f32.mrf.mxu0
    %v2616 = vadd.f32 %v2048, %v2615
    %2617 = vmatmul.bf16.gmra.mxu0 %v1939
    %v2618 = vpop.f32.mrf.mxu0
    %v2619 = vadd.f32 %v2048, %v2618
    %v2620 = vpop.f32.mrf.mxu0
    %v2621 = vadd.f32 %v2048, %v2620
    %2622 = vmatmul.bf16.gmra.mxu0 %v1942
    %v2623 = vpop.f32.mrf.mxu0
    %v2624 = vadd.f32 %v2048, %v2623
    %v2625 = vpop.f32.mrf.mxu0
    %v2626 = vadd.f32 %v2048, %v2625
    %2627 = vmatmul.bf16.gmra.mxu0 %v1945
    %v2628 = vpop.f32.mrf.mxu0
    %v2629 = vadd.f32 %v2048, %v2628
    %v2630 = vpop.f32.mrf.mxu0
    %v2631 = vadd.f32 %v2048, %v2630
    %2632 = vdwg.mxu0
    %2633 = vmatpush.bf16.msra.mxu0 %v2339
    %2634 = vmatpush.bf16.msra.mxu0 %v2336
    %2635 = vmatpush.bf16.msra.mxu0 %v2333
    %2636 = vmatpush.bf16.msra.mxu0 %v2330
    %2637 = vmatpush.bf16.msra.mxu0 %v2327
    %2638 = vmatpush.bf16.msra.mxu0 %v2324
    %2639 = vmatpush.bf16.msra.mxu0 %v2321
    %2640 = vmatpush.bf16.msra.mxu0 %v2318
    %2641 = vmatmul.bf16.gmra.mxu0 %v1925
    %v2642 = vpop.f32.mrf.mxu0
    %v2643 = vadd.f32 %v2594, %v2642
    %v2644 = vpop.f32.mrf.mxu0
    %v2645 = vadd.f32 %v2596, %v2644
    %2646 = vmatmul.bf16.gmra.mxu0 %v1928
    %v2647 = vpop.f32.mrf.mxu0
    %v2648 = vadd.f32 %v2599, %v2647
    %v2649 = vpop.f32.mrf.mxu0
    %v2650 = vadd.f32 %v2601, %v2649
    %2651 = vmatmul.bf16.gmra.mxu0 %v1931
    %v2652 = vpop.f32.mrf.mxu0
    %v2653 = vadd.f32 %v2604, %v2652
    %v2654 = vpop.f32.mrf.mxu0
    %v2655 = vadd.f32 %v2606, %v2654
    %2656 = vmatmul.bf16.gmra.mxu0 %v1934
    %v2657 = vpop.f32.mrf.mxu0
    %v2658 = vadd.f32 %v2609, %v2657
    %v2659 = vpop.f32.mrf.mxu0
    %v2660 = vadd.f32 %v2611, %v2659
    %2661 = vmatmul.bf16.gmra.mxu0 %v1937
    %v2662 = vpop.f32.mrf.mxu0
    %v2663 = vadd.f32 %v2614, %v2662
    %v2664 = vpop.f32.mrf.mxu0
    %v2665 = vadd.f32 %v2616, %v2664
    %2666 = vmatmul.bf16.gmra.mxu0 %v1940
    %v2667 = vpop.f32.mrf.mxu0
    %v2668 = vadd.f32 %v2619, %v2667
    %v2669 = vpop.f32.mrf.mxu0
    %v2670 = vadd.f32 %v2621, %v2669
    %2671 = vmatmul.bf16.gmra.mxu0 %v1943
    %v2672 = vpop.f32.mrf.mxu0
    %v2673 = vadd.f32 %v2624, %v2672
    %v2674 = vpop.f32.mrf.mxu0
    %v2675 = vadd.f32 %v2626, %v2674
    %2676 = vmatmul.bf16.gmra.mxu0 %v1946
    %v2677 = vpop.f32.mrf.mxu0
    %v2678 = vadd.f32 %v2629, %v2677
    %v2679 = vpop.f32.mrf.mxu0
    %v2680 = vadd.f32 %v2631, %v2679
    %2681 = vdwg.mxu0
    %2682 = vmatpush.bf16.msra.mxu0 %v2363
    %2683 = vmatpush.bf16.msra.mxu0 %v2360
    %2684 = vmatpush.bf16.msra.mxu0 %v2357
    %2685 = vmatpush.bf16.msra.mxu0 %v2354
    %2686 = vmatpush.bf16.msra.mxu0 %v2351
    %2687 = vmatpush.bf16.msra.mxu0 %v2348
    %2688 = vmatpush.bf16.msra.mxu0 %v2345
    %2689 = vmatpush.bf16.msra.mxu0 %v2342
    %2690 = vmatmul.bf16.gmra.mxu0 %v1926
    %v2691 = vpop.f32.mrf.mxu0
    %v2692 = vadd.f32 %v2643, %v2691
    %v2693 = vpop.f32.mrf.mxu0
    %v2694 = vadd.f32 %v2645, %v2693
    %2695 = vmatmul.bf16.gmra.mxu0 %v1929
    %v2696 = vpop.f32.mrf.mxu0
    %v2697 = vadd.f32 %v2648, %v2696
    %v2698 = vpop.f32.mrf.mxu0
    %v2699 = vadd.f32 %v2650, %v2698
    %2700 = vmatmul.bf16.gmra.mxu0 %v1932
    %v2701 = vpop.f32.mrf.mxu0
    %v2702 = vadd.f32 %v2653, %v2701
    %v2703 = vpop.f32.mrf.mxu0
    %v2704 = vadd.f32 %v2655, %v2703
    %2705 = vmatmul.bf16.gmra.mxu0 %v1935
    %v2706 = vpop.f32.mrf.mxu0
    %v2707 = vadd.f32 %v2658, %v2706
    %v2708 = vpop.f32.mrf.mxu0
    %v2709 = vadd.f32 %v2660, %v2708
    %2710 = vmatmul.bf16.gmra.mxu0 %v1938
    %v2711 = vpop.f32.mrf.mxu0
    %v2712 = vadd.f32 %v2663, %v2711
    %v2713 = vpop.f32.mrf.mxu0
    %v2714 = vadd.f32 %v2665, %v2713
    %2715 = vmatmul.bf16.gmra.mxu0 %v1941
    %v2716 = vpop.f32.mrf.mxu0
    %v2717 = vadd.f32 %v2668, %v2716
    %v2718 = vpop.f32.mrf.mxu0
    %v2719 = vadd.f32 %v2670, %v2718
    %2720 = vmatmul.bf16.gmra.mxu0 %v1944
    %v2721 = vpop.f32.mrf.mxu0
    %v2722 = vadd.f32 %v2673, %v2721
    %v2723 = vpop.f32.mrf.mxu0
    %v2724 = vadd.f32 %v2675, %v2723
    %2725 = vmatmul.bf16.gmra.mxu0 %v1947
    %v2726 = vpop.f32.mrf.mxu0
    %v2727 = vadd.f32 %v2678, %v2726
    %v2728 = vpop.f32.mrf.mxu0
    %v2729 = vadd.f32 %v2680, %v2728
    %2730 = vdwg.mxu0
    %2731 = vmatpush.bf16.msra.mxu0 %v2316
    %2732 = vmatpush.bf16.msra.mxu0 %v2313
    %2733 = vmatpush.bf16.msra.mxu0 %v2310
    %2734 = vmatpush.bf16.msra.mxu0 %v2307
    %2735 = vmatpush.bf16.msra.mxu0 %v2304
    %2736 = vmatpush.bf16.msra.mxu0 %v2301
    %2737 = vmatpush.bf16.msra.mxu0 %v2298
    %2738 = vmatpush.bf16.msra.mxu0 %v2295
    %2739 = vmatmul.bf16.gmra.mxu0 %v1924
    %v2740 = vpop.f32.mrf.mxu0
    %v2741 = vadd.f32 %v2049, %v2740
    %v2742 = vpop.f32.mrf.mxu0
    %v2743 = vadd.f32 %v2049, %v2742
    %2744 = vmatmul.bf16.gmra.mxu0 %v1927
    %v2745 = vpop.f32.mrf.mxu0
    %v2746 = vadd.f32 %v2049, %v2745
    %v2747 = vpop.f32.mrf.mxu0
    %v2748 = vadd.f32 %v2049, %v2747
    %2749 = vmatmul.bf16.gmra.mxu0 %v1930
    %v2750 = vpop.f32.mrf.mxu0
    %v2751 = vadd.f32 %v2049, %v2750
    %v2752 = vpop.f32.mrf.mxu0
    %v2753 = vadd.f32 %v2049, %v2752
    %2754 = vmatmul.bf16.gmra.mxu0 %v1933
    %v2755 = vpop.f32.mrf.mxu0
    %v2756 = vadd.f32 %v2049, %v2755
    %v2757 = vpop.f32.mrf.mxu0
    %v2758 = vadd.f32 %v2049, %v2757
    %2759 = vmatmul.bf16.gmra.mxu0 %v1936
    %v2760 = vpop.f32.mrf.mxu0
    %v2761 = vadd.f32 %v2049, %v2760
    %v2762 = vpop.f32.mrf.mxu0
    %v2763 = vadd.f32 %v2049, %v2762
    %2764 = vmatmul.bf16.gmra.mxu0 %v1939
    %v2765 = vpop.f32.mrf.mxu0
    %v2766 = vadd.f32 %v2049, %v2765
    %v2767 = vpop.f32.mrf.mxu0
    %v2768 = vadd.f32 %v2049, %v2767
    %2769 = vmatmul.bf16.gmra.mxu0 %v1942
    %v2770 = vpop.f32.mrf.mxu0
    %v2771 = vadd.f32 %v2049, %v2770
    %v2772 = vpop.f32.mrf.mxu0
    %v2773 = vadd.f32 %v2049, %v2772
    %2774 = vmatmul.bf16.gmra.mxu0 %v1945
    %v2775 = vpop.f32.mrf.mxu0
    %v2776 = vadd.f32 %v2049, %v2775
    %v2777 = vpop.f32.mrf.mxu0
    %v2778 = vadd.f32 %v2049, %v2777
    %2779 = vdwg.mxu0
    %2780 = vmatpush.bf16.msra.mxu0 %v2340
    %2781 = vmatpush.bf16.msra.mxu0 %v2337
    %2782 = vmatpush.bf16.msra.mxu0 %v2334
    %2783 = vmatpush.bf16.msra.mxu0 %v2331
    %2784 = vmatpush.bf16.msra.mxu0 %v2328
    %2785 = vmatpush.bf16.msra.mxu0 %v2325
    %2786 = vmatpush.bf16.msra.mxu0 %v2322
    %2787 = vmatpush.bf16.msra.mxu0 %v2319
    %2788 = vmatmul.bf16.gmra.mxu0 %v1925
    %v2789 = vpop.f32.mrf.mxu0
    %v2790 = vadd.f32 %v2741, %v2789
    %v2791 = vpop.f32.mrf.mxu0
    %v2792 = vadd.f32 %v2743, %v2791
    %2793 = vmatmul.bf16.gmra.mxu0 %v1928
    %v2794 = vpop.f32.mrf.mxu0
    %v2795 = vadd.f32 %v2746, %v2794
    %v2796 = vpop.f32.mrf.mxu0
    %v2797 = vadd.f32 %v2748, %v2796
    %2798 = vmatmul.bf16.gmra.mxu0 %v1931
    %v2799 = vpop.f32.mrf.mxu0
    %v2800 = vadd.f32 %v2751, %v2799
    %v2801 = vpop.f32.mrf.mxu0
    %v2802 = vadd.f32 %v2753, %v2801
    %2803 = vmatmul.bf16.gmra.mxu0 %v1934
    %v2804 = vpop.f32.mrf.mxu0
    %v2805 = vadd.f32 %v2756, %v2804
    %v2806 = vpop.f32.mrf.mxu0
    %v2807 = vadd.f32 %v2758, %v2806
    %2808 = vmatmul.bf16.gmra.mxu0 %v1937
    %v2809 = vpop.f32.mrf.mxu0
    %v2810 = vadd.f32 %v2761, %v2809
    %v2811 = vpop.f32.mrf.mxu0
    %v2812 = vadd.f32 %v2763, %v2811
    %2813 = vmatmul.bf16.gmra.mxu0 %v1940
    %v2814 = vpop.f32.mrf.mxu0
    %v2815 = vadd.f32 %v2766, %v2814
    %v2816 = vpop.f32.mrf.mxu0
    %v2817 = vadd.f32 %v2768, %v2816
    %2818 = vmatmul.bf16.gmra.mxu0 %v1943
    %v2819 = vpop.f32.mrf.mxu0
    %v2820 = vadd.f32 %v2771, %v2819
    %v2821 = vpop.f32.mrf.mxu0
    %v2822 = vadd.f32 %v2773, %v2821
    %2823 = vmatmul.bf16.gmra.mxu0 %v1946
    %v2824 = vpop.f32.mrf.mxu0
    %v2825 = vadd.f32 %v2776, %v2824
    %v2826 = vpop.f32.mrf.mxu0
    %v2827 = vadd.f32 %v2778, %v2826
    %2828 = vdwg.mxu0
    %2829 = vmatpush.bf16.msra.mxu0 %v2364
    %2830 = vmatpush.bf16.msra.mxu0 %v2361
    %2831 = vmatpush.bf16.msra.mxu0 %v2358
    %2832 = vmatpush.bf16.msra.mxu0 %v2355
    %2833 = vmatpush.bf16.msra.mxu0 %v2352
    %2834 = vmatpush.bf16.msra.mxu0 %v2349
    %2835 = vmatpush.bf16.msra.mxu0 %v2346
    %2836 = vmatpush.bf16.msra.mxu0 %v2343
    %2837 = vmatmul.bf16.gmra.mxu0 %v1926
    %v2838 = vpop.f32.mrf.mxu0
    %v2839 = vadd.f32 %v2790, %v2838
    %v2840 = vpop.f32.mrf.mxu0
    %v2841 = vadd.f32 %v2792, %v2840
    %2842 = vmatmul.bf16.gmra.mxu0 %v1929
    %v2843 = vpop.f32.mrf.mxu0
    %v2844 = vadd.f32 %v2795, %v2843
    %v2845 = vpop.f32.mrf.mxu0
    %v2846 = vadd.f32 %v2797, %v2845
    %2847 = vmatmul.bf16.gmra.mxu0 %v1932
    %v2848 = vpop.f32.mrf.mxu0
    %v2849 = vadd.f32 %v2800, %v2848
    %v2850 = vpop.f32.mrf.mxu0
    %v2851 = vadd.f32 %v2802, %v2850
    %2852 = vmatmul.bf16.gmra.mxu0 %v1935
    %v2853 = vpop.f32.mrf.mxu0
    %v2854 = vadd.f32 %v2805, %v2853
    %v2855 = vpop.f32.mrf.mxu0
    %v2856 = vadd.f32 %v2807, %v2855
    %2857 = vmatmul.bf16.gmra.mxu0 %v1938
    %v2858 = vpop.f32.mrf.mxu0
    %v2859 = vadd.f32 %v2810, %v2858
    %v2860 = vpop.f32.mrf.mxu0
    %v2861 = vadd.f32 %v2812, %v2860
    %2862 = vmatmul.bf16.gmra.mxu0 %v1941
    %v2863 = vpop.f32.mrf.mxu0
    %v2864 = vadd.f32 %v2815, %v2863
    %v2865 = vpop.f32.mrf.mxu0
    %v2866 = vadd.f32 %v2817, %v2865
    %2867 = vmatmul.bf16.gmra.mxu0 %v1944
    %v2868 = vpop.f32.mrf.mxu0
    %v2869 = vadd.f32 %v2820, %v2868
    %v2870 = vpop.f32.mrf.mxu0
    %v2871 = vadd.f32 %v2822, %v2870
    %2872 = vmatmul.bf16.gmra.mxu0 %v1947
    %v2873 = vpop.f32.mrf.mxu0
    %v2874 = vadd.f32 %v2825, %v2873
    %v2875 = vpop.f32.mrf.mxu0
    %v2876 = vadd.f32 %v2827, %v2875
    %2877 = vdwg.mxu0
    %v2878 = vmax.f32 %v2545, 0.0
    %v2879 = vmax.f32 %v2692, 0.0
    %v2880 = vmax.f32 %v2839, 0.0
    %v2881 = vmax.f32 %v2547, 0.0
    %v2882 = vmax.f32 %v2694, 0.0
    %v2883 = vmax.f32 %v2841, 0.0
    %v2884 = vmax.f32 %v2550, 0.0
    %v2885 = vmax.f32 %v2697, 0.0
    %v2886 = vmax.f32 %v2844, 0.0
    %v2887 = vmax.f32 %v2552, 0.0
    %v2888 = vmax.f32 %v2699, 0.0
    %v2889 = vmax.f32 %v2846, 0.0
    %v2890 = vmax.f32 %v2555, 0.0
    %v2891 = vmax.f32 %v2702, 0.0
    %v2892 = vmax.f32 %v2849, 0.0
    %v2893 = vmax.f32 %v2557, 0.0
    %v2894 = vmax.f32 %v2704, 0.0
    %v2895 = vmax.f32 %v2851, 0.0
    %v2896 = vmax.f32 %v2560, 0.0
    %v2897 = vmax.f32 %v2707, 0.0
    %v2898 = vmax.f32 %v2854, 0.0
    %v2899 = vmax.f32 %v2562, 0.0
    %v2900 = vmax.f32 %v2709, 0.0
    %v2901 = vmax.f32 %v2856, 0.0
    %v2902 = vmax.f32 %v2565, 0.0
    %v2903 = vmax.f32 %v2712, 0.0
    %v2904 = vmax.f32 %v2859, 0.0
    %v2905 = vmax.f32 %v2567, 0.0
    %v2906 = vmax.f32 %v2714, 0.0
    %v2907 = vmax.f32 %v2861, 0.0
    %v2908 = vmax.f32 %v2570, 0.0
    %v2909 = vmax.f32 %v2717, 0.0
    %v2910 = vmax.f32 %v2864, 0.0
    %v2911 = vmax.f32 %v2572, 0.0
    %v2912 = vmax.f32 %v2719, 0.0
    %v2913 = vmax.f32 %v2866, 0.0
    %v2914 = vmax.f32 %v2575, 0.0
    %v2915 = vmax.f32 %v2722, 0.0
    %v2916 = vmax.f32 %v2869, 0.0
    %v2917 = vmax.f32 %v2577, 0.0
    %v2918 = vmax.f32 %v2724, 0.0
    %v2919 = vmax.f32 %v2871, 0.0
    %v2920 = vmax.f32 %v2580, 0.0
    %v2921 = vmax.f32 %v2727, 0.0
    %v2922 = vmax.f32 %v2874, 0.0
    %v2923 = vmax.f32 %v2582, 0.0
    %v2924 = vmax.f32 %v2729, 0.0
    %v2925 = vmax.f32 %v2876, 0.0
    %v2926 = vpack.c.bf16 %v2881, %v2878
    %v2927 = vpack.c.bf16 %v2882, %v2879
    %v2928 = vpack.c.bf16 %v2883, %v2880
    %v2929 = vpack.c.bf16 %v2887, %v2884
    %v2930 = vpack.c.bf16 %v2888, %v2885
    %v2931 = vpack.c.bf16 %v2889, %v2886
    %v2932 = vpack.c.bf16 %v2893, %v2890
    %v2933 = vpack.c.bf16 %v2894, %v2891
    %v2934 = vpack.c.bf16 %v2895, %v2892
    %v2935 = vpack.c.bf16 %v2899, %v2896
    %v2936 = vpack.c.bf16 %v2900, %v2897
    %v2937 = vpack.c.bf16 %v2901, %v2898
    %v2938 = vpack.c.bf16 %v2905, %v2902
    %v2939 = vpack.c.bf16 %v2906, %v2903
    %v2940 = vpack.c.bf16 %v2907, %v2904
    %v2941 = vpack.c.bf16 %v2911, %v2908
    %v2942 = vpack.c.bf16 %v2912, %v2909
    %v2943 = vpack.c.bf16 %v2913, %v2910
    %v2944 = vpack.c.bf16 %v2917, %v2914
    %v2945 = vpack.c.bf16 %v2918, %v2915
    %v2946 = vpack.c.bf16 %v2919, %v2916
    %v2947 = vpack.c.bf16 %v2923, %v2920
    %v2948 = vpack.c.bf16 %v2924, %v2921
    %v2949 = vpack.c.bf16 %v2925, %v2922
    %v2950 = vld [vmem:[#allocation7 + $0x540] sm:$0xf]
    %v2951 = vld [vmem:[#allocation7 + $0x54c] sm:$0xf]
    %v2952 = vld [vmem:[#allocation7 + $0x558] sm:$0xf]
    %v2953 = vld [vmem:[#allocation7 + $0x564] sm:$0xf]
    %v2954 = vld [vmem:[#allocation7 + $0x570] sm:$0xf]
    %v2955 = vld [vmem:[#allocation7 + $0x57c] sm:$0xf]
    %v2956 = vld [vmem:[#allocation7 + $0x588] sm:$0xf]
    %v2957 = vld [vmem:[#allocation7 + $0x594] sm:$0xf]
    %v2958 = vld [vmem:[#allocation7 + $0x5a0] sm:$0xf]
    %v2959 = vld [vmem:[#allocation7 + $0x5ac] sm:$0xf]
    %v2960 = vld [vmem:[#allocation7 + $0x5b8] sm:$0xf]
    %v2961 = vld [vmem:[#allocation7 + $0x5c4] sm:$0xf]
    %v2962 = vld [vmem:[#allocation7 + $0x5d0] sm:$0xf]
    %v2963 = vld [vmem:[#allocation7 + $0x5dc] sm:$0xf]
    %v2964 = vld [vmem:[#allocation7 + $0x5e8] sm:$0xf]
    %v2965 = vld [vmem:[#allocation7 + $0x5f4] sm:$0xf]
    %v2966 = vld [vmem:[#allocation7 + $0x600] sm:$0xf]
    %v2967 = vld [vmem:[#allocation7 + $0x60c] sm:$0xf]
    %v2968 = vld [vmem:[#allocation7 + $0x618] sm:$0xf]
    %v2969 = vld [vmem:[#allocation7 + $0x624] sm:$0xf]
    %v2970 = vld [vmem:[#allocation7 + $0x630] sm:$0xf]
    %v2971 = vld [vmem:[#allocation7 + $0x63c] sm:$0xf]
    %v2972 = vld [vmem:[#allocation7 + $0x648] sm:$0xf]
    %v2973 = vld [vmem:[#allocation7 + $0x654] sm:$0xf]
    %v2974 = vld [vmem:[#allocation7 + $0x660] sm:$0xf]
    %v2975 = vld [vmem:[#allocation7 + $0x66c] sm:$0xf]
    %v2976 = vld [vmem:[#allocation7 + $0x678] sm:$0xf]
    %v2977 = vld [vmem:[#allocation7 + $0x684] sm:$0xf]
    %v2978 = vld [vmem:[#allocation7 + $0x690] sm:$0xf]
    %v2979 = vld [vmem:[#allocation7 + $0x69c] sm:$0xf]
    %v2980 = vld [vmem:[#allocation7 + $0x6a8] sm:$0xf]
    %v2981 = vld [vmem:[#allocation7 + $0x6b4] sm:$0xf]
    %v2982 = vld [vmem:[#allocation7 + $0x6c0] sm:$0xf]
    %v2983 = vld [vmem:[#allocation7 + $0x6cc] sm:$0xf]
    %v2984 = vld [vmem:[#allocation7 + $0x6d8] sm:$0xf]
    %v2985 = vld [vmem:[#allocation7 + $0x6e4] sm:$0xf]
    %v2986 = vld [vmem:[#allocation7 + $0x6f0] sm:$0xf]
    %v2987 = vld [vmem:[#allocation7 + $0x6fc] sm:$0xf]
    %v2988 = vld [vmem:[#allocation7 + $0x708] sm:$0xf]
    %v2989 = vld [vmem:[#allocation7 + $0x714] sm:$0xf]
    %v2990 = vld [vmem:[#allocation7 + $0x720] sm:$0xf]
    %v2991 = vld [vmem:[#allocation7 + $0x72c] sm:$0xf]
    %v2992 = vld [vmem:[#allocation7 + $0x738] sm:$0xf]
    %v2993 = vld [vmem:[#allocation7 + $0x744] sm:$0xf]
    %v2994 = vld [vmem:[#allocation7 + $0x750] sm:$0xf]
    %v2995 = vld [vmem:[#allocation7 + $0x75c] sm:$0xf]
    %v2996 = vld [vmem:[#allocation7 + $0x768] sm:$0xf]
    %v2997 = vld [vmem:[#allocation7 + $0x774] sm:$0xf]
    %v2998 = vld [vmem:[#allocation8 + $0x60] ss:$0 sm:$0xff]
    %v3047 = vunpack.c.l.b16 %v2950
    %v3048 = vunpack.c.l.b16 %v2951
    %v3049 = vunpack.c.l.b16 %v2952
    %v3050 = vunpack.c.l.b16 %v2953
    %v3051 = vunpack.c.l.b16 %v2954
    %v3052 = vunpack.c.l.b16 %v2955
    %v3053 = vunpack.c.l.b16 %v2956
    %v3054 = vunpack.c.l.b16 %v2957
    %v3055 = vunpack.c.l.b16 %v2958
    %v3056 = vunpack.c.l.b16 %v2959
    %v3057 = vunpack.c.l.b16 %v2960
    %v3058 = vunpack.c.l.b16 %v2961
    %v3059 = vunpack.c.l.b16 %v2962
    %v3060 = vunpack.c.l.b16 %v2963
    %v3061 = vunpack.c.l.b16 %v2964
    %v3062 = vunpack.c.l.b16 %v2965
    %v3063 = vunpack.c.l.b16 %v2966
    %v3064 = vunpack.c.l.b16 %v2967
    %v3065 = vunpack.c.l.b16 %v2968
    %v3066 = vunpack.c.l.b16 %v2969
    %v3067 = vunpack.c.l.b16 %v2970
    %v3068 = vunpack.c.l.b16 %v2971
    %v3069 = vunpack.c.l.b16 %v2972
    %v3070 = vunpack.c.l.b16 %v2973
    %v3071 = vunpack.c.l.b16 %v2974
    %v3072 = vunpack.c.l.b16 %v2975
    %v3073 = vunpack.c.l.b16 %v2976
    %v3074 = vunpack.c.l.b16 %v2977
    %v3075 = vunpack.c.l.b16 %v2978
    %v3076 = vunpack.c.l.b16 %v2979
    %v3077 = vunpack.c.l.b16 %v2980
    %v3078 = vunpack.c.l.b16 %v2981
    %v3079 = vunpack.c.l.b16 %v2982
    %v3080 = vunpack.c.l.b16 %v2983
    %v3081 = vunpack.c.l.b16 %v2984
    %v3082 = vunpack.c.l.b16 %v2985
    %v3083 = vunpack.c.l.b16 %v2986
    %v3084 = vunpack.c.l.b16 %v2987
    %v3085 = vunpack.c.l.b16 %v2988
    %v3086 = vunpack.c.l.b16 %v2989
    %v3087 = vunpack.c.l.b16 %v2990
    %v3088 = vunpack.c.l.b16 %v2991
    %v3089 = vunpack.c.l.b16 %v2992
    %v3090 = vunpack.c.l.b16 %v2993
    %v3091 = vunpack.c.l.b16 %v2994
    %v3092 = vunpack.c.l.b16 %v2995
    %v3093 = vunpack.c.l.b16 %v2996
    %v3094 = vunpack.c.l.b16 %v2997
    %v3095 = vpack.c.b16 %v3048, %v3047
    %v3096 = vpack.c.b16 %v3050, %v3049
    %v3097 = vpack.c.b16 %v3052, %v3051
    %v3098 = vpack.c.b16 %v3054, %v3053
    %v3099 = vpack.c.b16 %v3056, %v3055
    %v3100 = vpack.c.b16 %v3058, %v3057
    %v3101 = vpack.c.b16 %v3060, %v3059
    %v3102 = vpack.c.b16 %v3062, %v3061
    %v3103 = vpack.c.b16 %v3064, %v3063
    %v3104 = vpack.c.b16 %v3066, %v3065
    %v3105 = vpack.c.b16 %v3068, %v3067
    %v3106 = vpack.c.b16 %v3070, %v3069
    %v3107 = vpack.c.b16 %v3072, %v3071
    %v3108 = vpack.c.b16 %v3074, %v3073
    %v3109 = vpack.c.b16 %v3076, %v3075
    %v3110 = vpack.c.b16 %v3078, %v3077
    %v3111 = vpack.c.b16 %v3080, %v3079
    %v3112 = vpack.c.b16 %v3082, %v3081
    %v3113 = vpack.c.b16 %v3084, %v3083
    %v3114 = vpack.c.b16 %v3086, %v3085
    %v3115 = vpack.c.b16 %v3088, %v3087
    %v3116 = vpack.c.b16 %v3090, %v3089
    %v3117 = vpack.c.b16 %v3092, %v3091
    %v3118 = vpack.c.b16 %v3094, %v3093
    %3143 = vmatpush.bf16.msra.mxu0 %v3102
    %3144 = vmatpush.bf16.msra.mxu0 %v3101
    %3145 = vmatpush.bf16.msra.mxu0 %v3100
    %3146 = vmatpush.bf16.msra.mxu0 %v3099
    %3147 = vmatpush.bf16.msra.mxu0 %v3098
    %3148 = vmatpush.bf16.msra.mxu0 %v3097
    %3149 = vmatpush.bf16.msra.mxu0 %v3096
    %3150 = vmatpush.bf16.msra.mxu0 %v3095
    %3151 = vmatmul.bf16.gmra.mxu0 %v2926
    %v3152 = vpop.f32.mrf.mxu0
    %v3153 = vadd.f32 %v2998, %v3152
    %v3154 = vpop.f32.mrf.mxu0
    %v3155 = vadd.f32 %v2998, %v3154
    %3156 = vmatmul.bf16.gmra.mxu0 %v2929
    %v3157 = vpop.f32.mrf.mxu0
    %v3158 = vadd.f32 %v2998, %v3157
    %v3159 = vpop.f32.mrf.mxu0
    %v3160 = vadd.f32 %v2998, %v3159
    %3161 = vmatmul.bf16.gmra.mxu0 %v2932
    %v3162 = vpop.f32.mrf.mxu0
    %v3163 = vadd.f32 %v2998, %v3162
    %v3164 = vpop.f32.mrf.mxu0
    %v3165 = vadd.f32 %v2998, %v3164
    %3166 = vmatmul.bf16.gmra.mxu0 %v2935
    %v3167 = vpop.f32.mrf.mxu0
    %v3168 = vadd.f32 %v2998, %v3167
    %v3169 = vpop.f32.mrf.mxu0
    %v3170 = vadd.f32 %v2998, %v3169
    %3171 = vmatmul.bf16.gmra.mxu0 %v2938
    %v3172 = vpop.f32.mrf.mxu0
    %v3173 = vadd.f32 %v2998, %v3172
    %v3174 = vpop.f32.mrf.mxu0
    %v3175 = vadd.f32 %v2998, %v3174
    %3176 = vmatmul.bf16.gmra.mxu0 %v2941
    %v3177 = vpop.f32.mrf.mxu0
    %v3178 = vadd.f32 %v2998, %v3177
    %v3179 = vpop.f32.mrf.mxu0
    %v3180 = vadd.f32 %v2998, %v3179
    %3181 = vmatmul.bf16.gmra.mxu0 %v2944
    %v3182 = vpop.f32.mrf.mxu0
    %v3183 = vadd.f32 %v2998, %v3182
    %v3184 = vpop.f32.mrf.mxu0
    %v3185 = vadd.f32 %v2998, %v3184
    %3186 = vmatmul.bf16.gmra.mxu0 %v2947
    %v3187 = vpop.f32.mrf.mxu0
    %v3188 = vadd.f32 %v2998, %v3187
    %v3189 = vpop.f32.mrf.mxu0
    %v3190 = vadd.f32 %v2998, %v3189
    %3191 = vdwg.mxu0
    %3192 = vmatpush.bf16.msra.mxu0 %v3110
    %3193 = vmatpush.bf16.msra.mxu0 %v3109
    %3194 = vmatpush.bf16.msra.mxu0 %v3108
    %3195 = vmatpush.bf16.msra.mxu0 %v3107
    %3196 = vmatpush.bf16.msra.mxu0 %v3106
    %3197 = vmatpush.bf16.msra.mxu0 %v3105
    %3198 = vmatpush.bf16.msra.mxu0 %v3104
    %3199 = vmatpush.bf16.msra.mxu0 %v3103
    %3200 = vmatmul.bf16.gmra.mxu0 %v2927
    %v3201 = vpop.f32.mrf.mxu0
    %v3202 = vadd.f32 %v3153, %v3201
    %v3203 = vpop.f32.mrf.mxu0
    %v3204 = vadd.f32 %v3155, %v3203
    %3205 = vmatmul.bf16.gmra.mxu0 %v2930
    %v3206 = vpop.f32.mrf.mxu0
    %v3207 = vadd.f32 %v3158, %v3206
    %v3208 = vpop.f32.mrf.mxu0
    %v3209 = vadd.f32 %v3160, %v3208
    %3210 = vmatmul.bf16.gmra.mxu0 %v2933
    %v3211 = vpop.f32.mrf.mxu0
    %v3212 = vadd.f32 %v3163, %v3211
    %v3213 = vpop.f32.mrf.mxu0
    %v3214 = vadd.f32 %v3165, %v3213
    %3215 = vmatmul.bf16.gmra.mxu0 %v2936
    %v3216 = vpop.f32.mrf.mxu0
    %v3217 = vadd.f32 %v3168, %v3216
    %v3218 = vpop.f32.mrf.mxu0
    %v3219 = vadd.f32 %v3170, %v3218
    %3220 = vmatmul.bf16.gmra.mxu0 %v2939
    %v3221 = vpop.f32.mrf.mxu0
    %v3222 = vadd.f32 %v3173, %v3221
    %v3223 = vpop.f32.mrf.mxu0
    %v3224 = vadd.f32 %v3175, %v3223
    %3225 = vmatmul.bf16.gmra.mxu0 %v2942
    %v3226 = vpop.f32.mrf.mxu0
    %v3227 = vadd.f32 %v3178, %v3226
    %v3228 = vpop.f32.mrf.mxu0
    %v3229 = vadd.f32 %v3180, %v3228
    %3230 = vmatmul.bf16.gmra.mxu0 %v2945
    %v3231 = vpop.f32.mrf.mxu0
    %v3232 = vadd.f32 %v3183, %v3231
    %v3233 = vpop.f32.mrf.mxu0
    %v3234 = vadd.f32 %v3185, %v3233
    %3235 = vmatmul.bf16.gmra.mxu0 %v2948
    %v3236 = vpop.f32.mrf.mxu0
    %v3237 = vadd.f32 %v3188, %v3236
    %v3238 = vpop.f32.mrf.mxu0
    %v3239 = vadd.f32 %v3190, %v3238
    %3240 = vdwg.mxu0
    %3241 = vmatpush.bf16.msra.mxu0 %v3118
    %3242 = vmatpush.bf16.msra.mxu0 %v3117
    %3243 = vmatpush.bf16.msra.mxu0 %v3116
    %3244 = vmatpush.bf16.msra.mxu0 %v3115
    %3245 = vmatpush.bf16.msra.mxu0 %v3114
    %3246 = vmatpush.bf16.msra.mxu0 %v3113
    %3247 = vmatpush.bf16.msra.mxu0 %v3112
    %3248 = vmatpush.bf16.msra.mxu0 %v3111
    %3249 = vmatmul.bf16.gmra.mxu0 %v2928
    %v3250 = vpop.f32.mrf.mxu0
    %v3251 = vadd.f32 %v3202, %v3250
    %v3252 = vpop.f32.mrf.mxu0
    %v3253 = vadd.f32 %v3204, %v3252
    %3254 = vmatmul.bf16.gmra.mxu0 %v2931
    %v3255 = vpop.f32.mrf.mxu0
    %v3256 = vadd.f32 %v3207, %v3255
    %v3257 = vpop.f32.mrf.mxu0
    %v3258 = vadd.f32 %v3209, %v3257
    %3259 = vmatmul.bf16.gmra.mxu0 %v2934
    %v3260 = vpop.f32.mrf.mxu0
    %v3261 = vadd.f32 %v3212, %v3260
    %v3262 = vpop.f32.mrf.mxu0
    %v3263 = vadd.f32 %v3214, %v3262
    %3264 = vmatmul.bf16.gmra.mxu0 %v2937
    %v3265 = vpop.f32.mrf.mxu0
    %v3266 = vadd.f32 %v3217, %v3265
    %v3267 = vpop.f32.mrf.mxu0
    %v3268 = vadd.f32 %v3219, %v3267
    %3269 = vmatmul.bf16.gmra.mxu0 %v2940
    %v3270 = vpop.f32.mrf.mxu0
    %v3271 = vadd.f32 %v3222, %v3270
    %v3272 = vpop.f32.mrf.mxu0
    %v3273 = vadd.f32 %v3224, %v3272
    %3274 = vmatmul.bf16.gmra.mxu0 %v2943
    %v3275 = vpop.f32.mrf.mxu0
    %v3276 = vadd.f32 %v3227, %v3275
    %v3277 = vpop.f32.mrf.mxu0
    %v3278 = vadd.f32 %v3229, %v3277
    %3279 = vmatmul.bf16.gmra.mxu0 %v2946
    %v3280 = vpop.f32.mrf.mxu0
    %v3281 = vadd.f32 %v3232, %v3280
    %v3282 = vpop.f32.mrf.mxu0
    %v3283 = vadd.f32 %v3234, %v3282
    %3284 = vmatmul.bf16.gmra.mxu0 %v2949
    %v3285 = vpop.f32.mrf.mxu0
    %v3286 = vadd.f32 %v3237, %v3285
    %v3287 = vpop.f32.mrf.mxu0
    %v3288 = vadd.f32 %v3239, %v3287
    %3289 = vdwg.mxu0
    %v3290 = vxor.u32 %v3251, 2147483648
    %v3291 = vxor.u32 %v3253, 2147483648
    %v3292 = vxor.u32 %v3256, 2147483648
    %v3293 = vxor.u32 %v3258, 2147483648
    %v3294 = vxor.u32 %v3261, 2147483648
    %v3295 = vxor.u32 %v3263, 2147483648
    %v3296 = vxor.u32 %v3266, 2147483648
    %v3297 = vxor.u32 %v3268, 2147483648
    %v3298 = vxor.u32 %v3271, 2147483648
    %v3299 = vxor.u32 %v3273, 2147483648
    %v3300 = vxor.u32 %v3276, 2147483648
    %v3301 = vxor.u32 %v3278, 2147483648
    %v3302 = vxor.u32 %v3281, 2147483648
    %v3303 = vxor.u32 %v3283, 2147483648
    %v3304 = vxor.u32 %v3286, 2147483648
    %v3305 = vxor.u32 %v3288, 2147483648
    %v3306 = vmul.f32 %v3290, 1.442695
    %v3307 = vpow.pop %v3306
    %v3308 = vmul.f32 %v3291, 1.442695
    %v3309 = vpow.pop %v3308
    %v3310 = vmul.f32 %v3292, 1.442695
    %v3311 = vpow.pop %v3310
    %v3312 = vmul.f32 %v3293, 1.442695
    %v3313 = vpow.pop %v3312
    %v3314 = vmul.f32 %v3294, 1.442695
    %v3315 = vpow.pop %v3314
    %v3316 = vmul.f32 %v3295, 1.442695
    %v3317 = vpow.pop %v3316
    %v3318 = vmul.f32 %v3296, 1.442695
    %v3319 = vpow.pop %v3318
    %v3320 = vmul.f32 %v3297, 1.442695
    %v3321 = vpow.pop %v3320
    %v3322 = vmul.f32 %v3298, 1.442695
    %v3323 = vpow.pop %v3322
    %v3324 = vmul.f32 %v3299, 1.442695
    %v3325 = vpow.pop %v3324
    %v3326 = vmul.f32 %v3300, 1.442695
    %v3327 = vpow.pop %v3326
    %v3328 = vmul.f32 %v3301, 1.442695
    %v3329 = vpow.pop %v3328
    %v3330 = vmul.f32 %v3302, 1.442695
    %v3331 = vpow.pop %v3330
    %v3332 = vmul.f32 %v3303, 1.442695
    %v3333 = vpow.pop %v3332
    %v3334 = vmul.f32 %v3304, 1.442695
    %v3335 = vpow.pop %v3334
    %v3336 = vmul.f32 %v3305, 1.442695
    %v3337 = vpow.pop %v3336
    %v3338 = vadd.f32 %v3307, 1.0
    %v3339 = vadd.f32 %v3309, 1.0
    %v3340 = vadd.f32 %v3311, 1.0
    %v3341 = vadd.f32 %v3313, 1.0
    %v3342 = vadd.f32 %v3315, 1.0
    %v3343 = vadd.f32 %v3317, 1.0
    %v3344 = vadd.f32 %v3319, 1.0
    %v3345 = vadd.f32 %v3321, 1.0
    %v3346 = vadd.f32 %v3323, 1.0
    %v3347 = vadd.f32 %v3325, 1.0
    %v3348 = vadd.f32 %v3327, 1.0
    %v3349 = vadd.f32 %v3329, 1.0
    %v3350 = vadd.f32 %v3331, 1.0
    %v3351 = vadd.f32 %v3333, 1.0
    %v3352 = vadd.f32 %v3335, 1.0
    %v3353 = vadd.f32 %v3337, 1.0
    %v3354 = vrcp.pop %v3338
    %v3355 = vmul.f32 %v3338, %v3354
    %v3356 = vsub.f32 1.0, %v3355
    %v3357 = vmul.f32 %v3354, %v3356
    %v3358 = vadd.f32 %v3354, %v3357
    %vm3359 = vweird.f32 %v3338
    %vm3360 = vweird.f32 %v3354
    %vm3361 = vmor %vm3359, %vm3360
    %v3362 = vsel %vm3361, %v3354, %v3358
    %v3363 = vand.u32 2147483647, %v3338
    %vm3364 = vcmp.eq.f32.partialorder %v3363, 8.507059e+37
    %v3365 = vand.u32 %v3338, 2147483648
    %v3366 = vor.u32 1.1754944e-38, %v3365
    %v3367 = vsel %vm3364, %v3366, %v3362
    %v3368 = vmul.f32 1.0, %v3367
    %v3369 = vrcp.pop %v3339
    %v3370 = vmul.f32 %v3339, %v3369
    %v3371 = vsub.f32 1.0, %v3370
    %v3372 = vmul.f32 %v3369, %v3371
    %v3373 = vadd.f32 %v3369, %v3372
    %vm3374 = vweird.f32 %v3339
    %vm3375 = vweird.f32 %v3369
    %vm3376 = vmor %vm3374, %vm3375
    %v3377 = vsel %vm3376, %v3369, %v3373
    %v3378 = vand.u32 2147483647, %v3339
    %vm3379 = vcmp.eq.f32.partialorder %v3378, 8.507059e+37
    %v3380 = vand.u32 %v3339, 2147483648
    %v3381 = vor.u32 1.1754944e-38, %v3380
    %v3382 = vsel %vm3379, %v3381, %v3377
    %v3383 = vmul.f32 1.0, %v3382
    %v3384 = vrcp.pop %v3340
    %v3385 = vmul.f32 %v3340, %v3384
    %v3386 = vsub.f32 1.0, %v3385
    %v3387 = vmul.f32 %v3384, %v3386
    %v3388 = vadd.f32 %v3384, %v3387
    %vm3389 = vweird.f32 %v3340
    %vm3390 = vweird.f32 %v3384
    %vm3391 = vmor %vm3389, %vm3390
    %v3392 = vsel %vm3391, %v3384, %v3388
    %v3393 = vand.u32 2147483647, %v3340
    %vm3394 = vcmp.eq.f32.partialorder %v3393, 8.507059e+37
    %v3395 = vand.u32 %v3340, 2147483648
    %v3396 = vor.u32 1.1754944e-38, %v3395
    %v3397 = vsel %vm3394, %v3396, %v3392
    %v3398 = vmul.f32 1.0, %v3397
    %v3399 = vrcp.pop %v3341
    %v3400 = vmul.f32 %v3341, %v3399
    %v3401 = vsub.f32 1.0, %v3400
    %v3402 = vmul.f32 %v3399, %v3401
    %v3403 = vadd.f32 %v3399, %v3402
    %vm3404 = vweird.f32 %v3341
    %vm3405 = vweird.f32 %v3399
    %vm3406 = vmor %vm3404, %vm3405
    %v3407 = vsel %vm3406, %v3399, %v3403
    %v3408 = vand.u32 2147483647, %v3341
    %vm3409 = vcmp.eq.f32.partialorder %v3408, 8.507059e+37
    %v3410 = vand.u32 %v3341, 2147483648
    %v3411 = vor.u32 1.1754944e-38, %v3410
    %v3412 = vsel %vm3409, %v3411, %v3407
    %v3413 = vmul.f32 1.0, %v3412
    %v3414 = vrcp.pop %v3342
    %v3415 = vmul.f32 %v3342, %v3414
    %v3416 = vsub.f32 1.0, %v3415
    %v3417 = vmul.f32 %v3414, %v3416
    %v3418 = vadd.f32 %v3414, %v3417
    %vm3419 = vweird.f32 %v3342
    %vm3420 = vweird.f32 %v3414
    %vm3421 = vmor %vm3419, %vm3420
    %v3422 = vsel %vm3421, %v3414, %v3418
    %v3423 = vand.u32 2147483647, %v3342
    %vm3424 = vcmp.eq.f32.partialorder %v3423, 8.507059e+37
    %v3425 = vand.u32 %v3342, 2147483648
    %v3426 = vor.u32 1.1754944e-38, %v3425
    %v3427 = vsel %vm3424, %v3426, %v3422
    %v3428 = vmul.f32 1.0, %v3427
    %v3429 = vrcp.pop %v3343
    %v3430 = vmul.f32 %v3343, %v3429
    %v3431 = vsub.f32 1.0, %v3430
    %v3432 = vmul.f32 %v3429, %v3431
    %v3433 = vadd.f32 %v3429, %v3432
    %vm3434 = vweird.f32 %v3343
    %vm3435 = vweird.f32 %v3429
    %vm3436 = vmor %vm3434, %vm3435
    %v3437 = vsel %vm3436, %v3429, %v3433
    %v3438 = vand.u32 2147483647, %v3343
    %vm3439 = vcmp.eq.f32.partialorder %v3438, 8.507059e+37
    %v3440 = vand.u32 %v3343, 2147483648
    %v3441 = vor.u32 1.1754944e-38, %v3440
    %v3442 = vsel %vm3439, %v3441, %v3437
    %v3443 = vmul.f32 1.0, %v3442
    %v3444 = vrcp.pop %v3344
    %v3445 = vmul.f32 %v3344, %v3444
    %v3446 = vsub.f32 1.0, %v3445
    %v3447 = vmul.f32 %v3444, %v3446
    %v3448 = vadd.f32 %v3444, %v3447
    %vm3449 = vweird.f32 %v3344
    %vm3450 = vweird.f32 %v3444
    %vm3451 = vmor %vm3449, %vm3450
    %v3452 = vsel %vm3451, %v3444, %v3448
    %v3453 = vand.u32 2147483647, %v3344
    %vm3454 = vcmp.eq.f32.partialorder %v3453, 8.507059e+37
    %v3455 = vand.u32 %v3344, 2147483648
    %v3456 = vor.u32 1.1754944e-38, %v3455
    %v3457 = vsel %vm3454, %v3456, %v3452
    %v3458 = vmul.f32 1.0, %v3457
    %v3459 = vrcp.pop %v3345
    %v3460 = vmul.f32 %v3345, %v3459
    %v3461 = vsub.f32 1.0, %v3460
    %v3462 = vmul.f32 %v3459, %v3461
    %v3463 = vadd.f32 %v3459, %v3462
    %vm3464 = vweird.f32 %v3345
    %vm3465 = vweird.f32 %v3459
    %vm3466 = vmor %vm3464, %vm3465
    %v3467 = vsel %vm3466, %v3459, %v3463
    %v3468 = vand.u32 2147483647, %v3345
    %vm3469 = vcmp.eq.f32.partialorder %v3468, 8.507059e+37
    %v3470 = vand.u32 %v3345, 2147483648
    %v3471 = vor.u32 1.1754944e-38, %v3470
    %v3472 = vsel %vm3469, %v3471, %v3467
    %v3473 = vmul.f32 1.0, %v3472
    %v3474 = vrcp.pop %v3346
    %v3475 = vmul.f32 %v3346, %v3474
    %v3476 = vsub.f32 1.0, %v3475
    %v3477 = vmul.f32 %v3474, %v3476
    %v3478 = vadd.f32 %v3474, %v3477
    %vm3479 = vweird.f32 %v3346
    %vm3480 = vweird.f32 %v3474
    %vm3481 = vmor %vm3479, %vm3480
    %v3482 = vsel %vm3481, %v3474, %v3478
    %v3483 = vand.u32 2147483647, %v3346
    %vm3484 = vcmp.eq.f32.partialorder %v3483, 8.507059e+37
    %v3485 = vand.u32 %v3346, 2147483648
    %v3486 = vor.u32 1.1754944e-38, %v3485
    %v3487 = vsel %vm3484, %v3486, %v3482
    %v3488 = vmul.f32 1.0, %v3487
    %v3489 = vrcp.pop %v3347
    %v3490 = vmul.f32 %v3347, %v3489
    %v3491 = vsub.f32 1.0, %v3490
    %v3492 = vmul.f32 %v3489, %v3491
    %v3493 = vadd.f32 %v3489, %v3492
    %vm3494 = vweird.f32 %v3347
    %vm3495 = vweird.f32 %v3489
    %vm3496 = vmor %vm3494, %vm3495
    %v3497 = vsel %vm3496, %v3489, %v3493
    %v3498 = vand.u32 2147483647, %v3347
    %vm3499 = vcmp.eq.f32.partialorder %v3498, 8.507059e+37
    %v3500 = vand.u32 %v3347, 2147483648
    %v3501 = vor.u32 1.1754944e-38, %v3500
    %v3502 = vsel %vm3499, %v3501, %v3497
    %v3503 = vmul.f32 1.0, %v3502
    %v3504 = vrcp.pop %v3348
    %v3505 = vmul.f32 %v3348, %v3504
    %v3506 = vsub.f32 1.0, %v3505
    %v3507 = vmul.f32 %v3504, %v3506
    %v3508 = vadd.f32 %v3504, %v3507
    %vm3509 = vweird.f32 %v3348
    %vm3510 = vweird.f32 %v3504
    %vm3511 = vmor %vm3509, %vm3510
    %v3512 = vsel %vm3511, %v3504, %v3508
    %v3513 = vand.u32 2147483647, %v3348
    %vm3514 = vcmp.eq.f32.partialorder %v3513, 8.507059e+37
    %v3515 = vand.u32 %v3348, 2147483648
    %v3516 = vor.u32 1.1754944e-38, %v3515
    %v3517 = vsel %vm3514, %v3516, %v3512
    %v3518 = vmul.f32 1.0, %v3517
    %v3519 = vrcp.pop %v3349
    %v3520 = vmul.f32 %v3349, %v3519
    %v3521 = vsub.f32 1.0, %v3520
    %v3522 = vmul.f32 %v3519, %v3521
    %v3523 = vadd.f32 %v3519, %v3522
    %vm3524 = vweird.f32 %v3349
    %vm3525 = vweird.f32 %v3519
    %vm3526 = vmor %vm3524, %vm3525
    %v3527 = vsel %vm3526, %v3519, %v3523
    %v3528 = vand.u32 2147483647, %v3349
    %vm3529 = vcmp.eq.f32.partialorder %v3528, 8.507059e+37
    %v3530 = vand.u32 %v3349, 2147483648
    %v3531 = vor.u32 1.1754944e-38, %v3530
    %v3532 = vsel %vm3529, %v3531, %v3527
    %v3533 = vmul.f32 1.0, %v3532
    %v3534 = vrcp.pop %v3350
    %v3535 = vmul.f32 %v3350, %v3534
    %v3536 = vsub.f32 1.0, %v3535
    %v3537 = vmul.f32 %v3534, %v3536
    %v3538 = vadd.f32 %v3534, %v3537
    %vm3539 = vweird.f32 %v3350
    %vm3540 = vweird.f32 %v3534
    %vm3541 = vmor %vm3539, %vm3540
    %v3542 = vsel %vm3541, %v3534, %v3538
    %v3543 = vand.u32 2147483647, %v3350
    %vm3544 = vcmp.eq.f32.partialorder %v3543, 8.507059e+37
    %v3545 = vand.u32 %v3350, 2147483648
    %v3546 = vor.u32 1.1754944e-38, %v3545
    %v3547 = vsel %vm3544, %v3546, %v3542
    %v3548 = vmul.f32 1.0, %v3547
    %v3549 = vrcp.pop %v3351
    %v3550 = vmul.f32 %v3351, %v3549
    %v3551 = vsub.f32 1.0, %v3550
    %v3552 = vmul.f32 %v3549, %v3551
    %v3553 = vadd.f32 %v3549, %v3552
    %vm3554 = vweird.f32 %v3351
    %vm3555 = vweird.f32 %v3549
    %vm3556 = vmor %vm3554, %vm3555
    %v3557 = vsel %vm3556, %v3549, %v3553
    %v3558 = vand.u32 2147483647, %v3351
    %vm3559 = vcmp.eq.f32.partialorder %v3558, 8.507059e+37
    %v3560 = vand.u32 %v3351, 2147483648
    %v3561 = vor.u32 1.1754944e-38, %v3560
    %v3562 = vsel %vm3559, %v3561, %v3557
    %v3563 = vmul.f32 1.0, %v3562
    %v3564 = vrcp.pop %v3352
    %v3565 = vmul.f32 %v3352, %v3564
    %v3566 = vsub.f32 1.0, %v3565
    %v3567 = vmul.f32 %v3564, %v3566
    %v3568 = vadd.f32 %v3564, %v3567
    %vm3569 = vweird.f32 %v3352
    %vm3570 = vweird.f32 %v3564
    %vm3571 = vmor %vm3569, %vm3570
    %v3572 = vsel %vm3571, %v3564, %v3568
    %v3573 = vand.u32 2147483647, %v3352
    %vm3574 = vcmp.eq.f32.partialorder %v3573, 8.507059e+37
    %v3575 = vand.u32 %v3352, 2147483648
    %v3576 = vor.u32 1.1754944e-38, %v3575
    %v3577 = vsel %vm3574, %v3576, %v3572
    %v3578 = vmul.f32 1.0, %v3577
    %v3579 = vrcp.pop %v3353
    %v3580 = vmul.f32 %v3353, %v3579
    %v3581 = vsub.f32 1.0, %v3580
    %v3582 = vmul.f32 %v3579, %v3581
    %v3583 = vadd.f32 %v3579, %v3582
    %vm3584 = vweird.f32 %v3353
    %vm3585 = vweird.f32 %v3579
    %vm3586 = vmor %vm3584, %vm3585
    %v3587 = vsel %vm3586, %v3579, %v3583
    %v3588 = vand.u32 2147483647, %v3353
    %vm3589 = vcmp.eq.f32.partialorder %v3588, 8.507059e+37
    %v3590 = vand.u32 %v3353, 2147483648
    %v3591 = vor.u32 1.1754944e-38, %v3590
    %v3592 = vsel %vm3589, %v3591, %v3587
    %v3593 = vmul.f32 1.0, %v3592
    %v3594 = vsub.f32 %v3368, 0.5
    %v3595 = vsub.f32 %v3383, 0.5
    %v3596 = vsub.f32 %v3398, 0.5
    %v3597 = vsub.f32 %v3413, 0.5
    %v3598 = vsub.f32 %v3428, 0.5
    %v3599 = vsub.f32 %v3443, 0.5
    %v3600 = vsub.f32 %v3458, 0.5
    %v3601 = vsub.f32 %v3473, 0.5
    %v3602 = vsub.f32 %v3488, 0.5
    %v3603 = vsub.f32 %v3503, 0.5
    %v3604 = vsub.f32 %v3518, 0.5
    %v3605 = vsub.f32 %v3533, 0.5
    %v3606 = vsub.f32 %v3548, 0.5
    %v3607 = vsub.f32 %v3563, 0.5
    %v3608 = vsub.f32 %v3578, 0.5
    %v3609 = vsub.f32 %v3593, 0.5
    %3610 = vst [vmem:[#allocation10] sm:$0xff] %v3594
    %3611 = vst [vmem:[#allocation10 + $0x8] sm:$0xff] %v3595
    %3612 = vst [vmem:[#allocation10 + $0x10] sm:$0xff] %v3596
    %3613 = vst [vmem:[#allocation10 + $0x18] sm:$0xff] %v3597
    %3614 = vst [vmem:[#allocation10 + $0x20] sm:$0xff] %v3598
    %3615 = vst [vmem:[#allocation10 + $0x28] sm:$0xff] %v3599
    %3616 = vst [vmem:[#allocation10 + $0x30] sm:$0xff] %v3600
    %3617 = vst [vmem:[#allocation10 + $0x38] sm:$0xff] %v3601
    %3618 = vst [vmem:[#allocation10 + $0x40] sm:$0xff] %v3602
    %3619 = vst [vmem:[#allocation10 + $0x48] sm:$0xff] %v3603
    %3620 = vst [vmem:[#allocation10 + $0x50] sm:$0xff] %v3604
    %3621 = vst [vmem:[#allocation10 + $0x58] sm:$0xff] %v3605
    %3622 = vst [vmem:[#allocation10 + $0x60] sm:$0xff] %v3606
    %3623 = vst [vmem:[#allocation10 + $0x68] sm:$0xff] %v3607
    %3624 = vst [vmem:[#allocation10 + $0x70] sm:$0xff] %v3608
    %3625 = vst [vmem:[#allocation10 + $0x78] sm:$0xff] %v3609
    // Predicated region
    $region34: #{tpu_custom_call.1} parent=1 // pred_check
      _
    $region35: #{tpu_custom_call.1} parent=1 // pred_check_branch
      %3627 = sbr.rel (0) target = $region37
    $region36: #{tpu_custom_call.1} parent=1 // pred_region
      %3629 = vsyncadd [#allocation4], 0
      %s3630 = sshll.u32 [#allocation10], 4
      %s3631 = int_to_ptr.vmem [resolvable:$true] %s3630
      %s3632 = sshll.u32 %s4, 4
      %s3633 = int_to_ptr.hbm [resolvable:$true] %s3632
      %3638 = dma.vmem_to_hbm [thread:$0]  %s3631, 2048, %s3633, [#allocation4], 128, 128, 8
    $region37: #{tpu_custom_call.1} parent=1 // pred_fallthru
      _
    // Predicated region
    $region38: #{tpu_custom_call.1} parent=1 // pred_check
      _
    $region39: #{tpu_custom_call.1} parent=1 // pred_check_branch
      %3640 = sbr.rel (0) target = $region41
    $region40: #{tpu_custom_call.1} parent=1 // pred_region
      %3642 = dma.done [#allocation4], 2048
    $region41: #{tpu_custom_call.1} parent=1 // pred_fallthru
      _
    %3643 = vsyncpa [#allocation3], 1
    %3644 = vsyncpa [#allocation6], 1
    %3645 = vsyncpa [#allocation9], 1
    %3646 = vsyncpa [#allocation4], 1

</llo_original>
